<compile_context>
chip_gen: v6e
topology: v6e:2x2x1
jax: 0.10.0
libtpu: 0.0.40
codegen_flags: <defaults>
</compile_context>

<pallas_src>
import jax
import jax.numpy as jnp
from jax.experimental import pallas as pl
from jax.experimental.pallas import tpu as pltpu

MINUS_INF = -9000000000000000.0  # matches the PyTorch constant


def _link_attention_kernel(x_ref, wq_ref, bq_ref, m_ref, out_ref, a_ref):
    x = x_ref[...]                     # (bt, L, D)   input dtype (e.g. bf16)
    wq = wq_ref[...]                   # (H, D)       PyTorch Linear weight layout
    bq = bq_ref[...]                   # (H, 1)
    masks2 = m_ref[...]                # (bt*H, L)    dense 2-D slab

    bt, L, D = x.shape
    H = wq.shape[0]

    # query^T: q[b, h, l] = sum_d wq[h, d] * x[b, l, d] + bq[h]
    # Batched MXU contraction over x's last dim; produces the (bt, H, L)
    # layout directly (no x transpose, no post-matmul relayout).
    wq_b = jnp.broadcast_to(wq[None, :, :], (bt, H, D))
    q3 = jnp.einsum('bhd,bld->bhl', wq_b, x,
                    preferred_element_type=jnp.float32)
    q3 = q3 + bq[None, :, :].astype(jnp.float32)         # (bt, H, L) f32

    # Flatten (b, h) onto the sublane axis so masks/e/a are dense 2-D slabs.
    q2 = q3.reshape(bt * H, L)

    # e = where(masks > 0.5, query, -9e15); a = softmax(e, dim=-1)   (f32 math)
    e = jnp.where(masks2 > 0.5, q2, MINUS_INF)
    e_max = jnp.max(e, axis=-1, keepdims=True)
    p = jnp.exp(e - e_max)
    denom = jnp.sum(p, axis=-1, keepdims=True)            # >= 1, safe
    a2 = p * pl.reciprocal(denom, approx=True)            # EUP vrcp slot
    a_ref[...] = a2.astype(a_ref.dtype)                   # dense (bt*H, L) store

    # out[b, j] = sum_h sum_k a[b, h, k] * x[b, j, k]
    # Collapse heads first (cheap sublane reduction), then a VPU broadcast-
    # multiply + lane reduction in f32 (the M=1 matmul alternative under-uses
    # the MXU and pays a fill/drain bubble per batch).
    a_sum = jnp.sum(a2.reshape(bt, H, L), axis=1)          # (bt, L) f32
    out = jnp.sum(x.astype(jnp.float32) * a_sum[:, None, :], axis=-1)  # (bt, L)
    out_ref[...] = out.astype(out_ref.dtype)               # lane-dense (bt, D)


def _vmem_limit_bytes():
    """Per-generation VMEM limit: ~75% of physical capacity (96 MiB on
    v5e/v6e's 128 MiB, 48 MiB on v7x's 64 MiB); conservative fallback."""
    cap = None
    try:
        cap = getattr(pltpu.get_tpu_info(), "vmem_capacity_bytes", None)
    except Exception:
        cap = None
    if not cap:
        cap = 64 * 1024 * 1024          # conservative: v7x physical per-TC VMEM
    return int(cap) * 3 // 4


def _choose_batch_tile(batch, per_batch_bytes, budget_bytes, align):
    """Largest sublane-aligned batch tile that fits the VMEM budget.

    Small batches (<= 2*align) that fit become a single full-span block
    (one grid step); large batches keep >= ~4 grid steps so the auto-pipeline
    (and both TensorCores on v7x) always have work to overlap.
    """
    cap = max(1, budget_bytes // max(1, per_batch_bytes))
    if batch <= cap and batch <= 2 * align:
        return batch                    # one step; block spans full batch dim
    bt = min(cap, batch)
    if bt >= align:
        bt = (bt // align) * align      # keep (bt, D) / (bt*H, L) blocks packed
    # else: degenerate small tile (huge L == D): correct but slow.
    # TODO(synk): add an L/D grid axis instead of shrinking bt below `align`.
    if batch >= 4 * align:
        bt = min(bt, max(align, (batch // (4 * align)) * align))
    return max(1, bt)


def link_attention_pro(x, masks, wq, bq):
    """x: (B, L, D) with L == D; masks: (B, H, L); wq: (H, D); bq: (H,)."""
    B, L, D = x.shape
    H = wq.shape[0]
    assert L == D, "LinkAttention_pro's matmul(a, x.T) requires seq_len == input_dim"
    assert masks.shape == (B, H, L)

    out_dtype = x.dtype
    a_dtype = x.dtype
    bq_col = bq.reshape(H, 1)
    masks2 = masks.reshape(B * H, L)        # free view of a contiguous array

    x_isz = jnp.dtype(x.dtype).itemsize
    m_isz = jnp.dtype(masks.dtype).itemsize
    a_isz = jnp.dtype(a_dtype).itemsize
    o_isz = jnp.dtype(out_dtype).itemsize

    # Per-batch VMEM footprint: double-buffered blocks + in-kernel f32
    # temporaries (q/e/p/a planes, the f32 view of x for the value product,
    # and the wq broadcast).
    per_batch_blocks = L * D * x_isz + H * L * (m_isz + a_isz) + D * o_isz
    per_batch_temps = 4 * H * L * 4 + L * D * 4 + D * 4 + H * D * x_isz
    per_batch = 2 * per_batch_blocks + per_batch_temps

    vmem_limit = _vmem_limit_bytes()
    align = {1: 32, 2: 16}.get(x_isz, 8)    # rows per packed native tile
    bt = _choose_batch_tile(B, per_batch, int(vmem_limit * 0.8), align)

    b_pad = -(-B // bt) * bt
    if b_pad != B:
        pad = b_pad - B
        x_p = jnp.pad(x, ((0, pad), (0, 0), (0, 0)))
        m_p = jnp.pad(masks2, ((0, pad * H), (0, 0)))
    else:
        x_p, m_p = x, masks2

    grid = (b_pad // bt,)

    cost = pl.CostEstimate(
        flops=2 * B * H * L * D + 2 * B * L * D + 5 * B * H * L,
        transcendentals=B * H * L,
        bytes_accessed=(B * L * D * x_isz + B * H * L * (m_isz + a_isz)
                        + B * D * o_isz + H * D * x_isz
                        + H * jnp.dtype(bq.dtype).itemsize),
    )

    out_p, a_p = pl.pallas_call(
        _link_attention_kernel,
        grid=grid,
        in_specs=[
            pl.BlockSpec((bt, L, D), lambda i: (i, 0, 0)),      # x
            pl.BlockSpec((H, D), lambda i: (0, 0)),             # wq (replicated)
            pl.BlockSpec((H, 1), lambda i: (0, 0)),             # bq (replicated)
            pl.BlockSpec((bt * H, L), lambda i: (i, 0)),        # masks, dense 2-D
        ],
        out_specs=[
            pl.BlockSpec((bt, D), lambda i: (i, 0)),            # out, lane-dense
            pl.BlockSpec((bt * H, L), lambda i: (i, 0)),        # a, dense 2-D
        ],
        out_shape=[
            jax.ShapeDtypeStruct((b_pad, D), out_dtype),
            jax.ShapeDtypeStruct((b_pad * H, L), a_dtype),
        ],
        compiler_params=pltpu.CompilerParams(
            dimension_semantics=("parallel",),   # shards batch across TCs on v7x
            vmem_limit_bytes=int(vmem_limit),
        ),
        cost_estimate=cost,
    )(x_p, wq, bq_col, m_p)

    out = jnp.squeeze(out_p[:B])        # torch .squeeze(): drops size-1 dims
    a = a_p[:B * H].reshape(B, H, L)
    return out, a


def _reference(x, masks, wq, bq):
    xf = x.astype(jnp.float32)
    wf = wq.astype(jnp.float32)
    bf = bq.astype(jnp.float32)
    mf = masks.astype(jnp.float32)
    q = jnp.einsum('bld,hd->blh', xf, wf) + bf            # Linear
    q = jnp.transpose(q, (0, 2, 1))                        # (B, H, L)
    e = jnp.where(mf > 0.5, q, MINUS_INF)
    a = jax.nn.softmax(e, axis=-1)
    value = jnp.transpose(xf, (0, 2, 1))                   # (B, D, L)
    out = jnp.einsum('bhk,bkj->bhj', a, value)             # matmul(a, value)
    out = jnp.squeeze(jnp.sum(out, axis=1))                # head sum + squeeze
    return out, a


if __name__ == "__main__":
    key = jax.random.PRNGKey(0)
    B, L, H = 16, 128, 8       # seq == input_dim as the module requires
    D = L

    kx, km, kw, kb = jax.random.split(key, 4)
    x32 = jax.random.normal(kx, (B, L, D), dtype=jnp.float32)
    m32 = (jax.random.uniform(km, (B, H, L)) > 0.3).astype(jnp.float32)
    wq32 = jax.random.normal(kw, (H, D), dtype=jnp.float32) * 0.1
    bq32 = jax.random.normal(kb, (H,), dtype=jnp.float32) * 0.1

    out_ref, a_ref = _reference(x32, m32, wq32, bq32)

    # f32 path (dtype-generic check)
    out32, a32 = link_attention_pro(x32, m32, wq32, bq32)
    jax.block_until_ready((out32, a32))
    assert out32.shape == (B, L) and a32.shape == (B, H, L)
    assert jnp.allclose(out32, out_ref, rtol=2e-2, atol=2e-2)
    assert jnp.allclose(a32, a_ref, rtol=2e-2, atol=2e-2)

    # bf16 path (the bandwidth-optimized path recommended by the review)
    xb, mb, wb, bb = (t.astype(jnp.bfloat16) for t in (x32, m32, wq32, bq32))
    outb, ab = link_attention_pro(xb, mb, wb, bb)
    jax.block_until_ready((outb, ab))
    assert outb.shape == (B, L) and ab.shape == (B, H, L)
    assert jnp.allclose(outb.astype(jnp.float32), out_ref, rtol=6e-2, atol=6e-2)
    assert jnp.allclose(ab.astype(jnp.float32), a_ref, rtol=3e-2, atol=3e-2)

    print("KERNEL_OK")
</pallas_src>

<mosaic_0001>
module attributes {stable_mosaic.version = 11 : i64} {
  func.func @_link_attention_kernel(%arg0: i32, %arg1: memref<16x128x128xf32, #tpu.memory_space<vmem>>, %arg2: memref<8x128xf32, #tpu.memory_space<vmem>>, %arg3: memref<8x1xf32, #tpu.memory_space<vmem>>, %arg4: memref<128x128xf32, #tpu.memory_space<vmem>>, %arg5: memref<16x128xf32, #tpu.memory_space<vmem>>, %arg6: memref<128x128xf32, #tpu.memory_space<vmem>>) attributes {dimension_semantics = [#tpu.dimension_semantics<parallel>], iteration_bounds = array<i64: 1>, scalar_prefetch = 0 : i64, scratch_operands = 0 : i64, tpu.core_type = #tpu.core_type<tc>, window_params = [{transform_indices = @transform_0, window_bounds = array<i64: 16, 128, 128>}, {pipeline_mode = #tpu.pipeline_mode<synchronous>, transform_indices = @transform_1, window_bounds = array<i64: 8, 128>}, {pipeline_mode = #tpu.pipeline_mode<synchronous>, transform_indices = @transform_2, window_bounds = array<i64: 8, 1>}, {transform_indices = @transform_3, window_bounds = array<i64: 128, 128>}, {transform_indices = @transform_4, window_bounds = array<i64: 16, 128>}, {transform_indices = @transform_5, window_bounds = array<i64: 128, 128>}]} {
    %c0 = arith.constant 0 : index
    %c0_0 = arith.constant 0 : index
    %c0_1 = arith.constant 0 : index
    %0 = vector.load %arg1[%c0, %c0_0, %c0_1] : memref<16x128x128xf32, #tpu.memory_space<vmem>>, vector<16x128x128xf32>
    %c0_2 = arith.constant 0 : index
    %c0_3 = arith.constant 0 : index
    %1 = vector.load %arg2[%c0_2, %c0_3] : memref<8x128xf32, #tpu.memory_space<vmem>>, vector<8x128xf32>
    %c0_4 = arith.constant 0 : index
    %c0_5 = arith.constant 0 : index
    %2 = vector.load %arg3[%c0_4, %c0_5] : memref<8x1xf32, #tpu.memory_space<vmem>>, vector<8x1xf32>
    %c0_6 = arith.constant 0 : index
    %c0_7 = arith.constant 0 : index
    %3 = vector.load %arg4[%c0_6, %c0_7] : memref<128x128xf32, #tpu.memory_space<vmem>>, vector<128x128xf32>
    %4 = vector.shape_cast %1 : vector<8x128xf32> to vector<1x8x128xf32>
    %5 = vector.shape_cast %4 : vector<1x8x128xf32> to vector<1x8x128xf32>
    %6 = vector.broadcast %5 : vector<1x8x128xf32> to vector<16x8x128xf32>
    "tpu.trace_start"() <{level = 10 : i32, message = "bhd,bld->bhl"}> : () -> ()
    %cst = arith.constant dense<0.000000e+00> : vector<16x8x128xf32>
    %7 = tpu.matmul %6, %0, %cst {dimension_numbers = #tpu.dot_dimension_numbers<[2], [2], [1], [1], [0, 0, 0, 1, 1, 1], [0], [0]>} : vector<16x8x128xf32>, vector<16x128x128xf32>, vector<16x8x128xf32> -> vector<16x8x128xf32>
    "tpu.trace_stop"() : () -> ()
    %8 = vector.shape_cast %2 : vector<8x1xf32> to vector<1x8x1xf32>
    %9 = vector.broadcast %8 : vector<1x8x1xf32> to vector<16x8x128xf32>
    %10 = arith.addf %7, %9 : vector<16x8x128xf32>
    %11 = vector.shape_cast %10 : vector<16x8x128xf32> to vector<128x128xf32>
    %cst_8 = arith.constant 5.000000e-01 : f32
    %12 = vector.broadcast %cst_8 : f32 to vector<128x128xf32>
    %13 = arith.cmpf ogt, %3, %12 : vector<128x128xf32>
    %cst_9 = arith.constant -9.000000e+15 : f32
    %14 = vector.broadcast %cst_9 : f32 to vector<128x128xf32>
    %15 = arith.select %13, %11, %14 : vector<128x128xi1>, vector<128x128xf32>
    %cst_10 = arith.constant dense<0xFF800000> : vector<128xf32>
    %16 = vector.multi_reduction <maximumf>, %15, %cst_10 [1] : vector<128x128xf32> to vector<128xf32>
    %17 = vector.shape_cast %16 : vector<128xf32> to vector<128x1xf32>
    %18 = vector.broadcast %17 : vector<128x1xf32> to vector<128x128xf32>
    %19 = arith.subf %15, %18 : vector<128x128xf32>
    %20 = math.exp %19 : vector<128x128xf32>
    %cst_11 = arith.constant dense<0.000000e+00> : vector<128xf32>
    %21 = vector.multi_reduction <add>, %20, %cst_11 [1] : vector<128x128xf32> to vector<128xf32>
    %22 = vector.shape_cast %21 : vector<128xf32> to vector<128x1xf32>
    %23 = tpu.reciprocal %22 {approx = true} : vector<128x1xf32> -> vector<128x1xf32>
    %24 = vector.broadcast %23 : vector<128x1xf32> to vector<128x128xf32>
    %25 = arith.mulf %20, %24 : vector<128x128xf32>
    %c0_12 = arith.constant 0 : index
    %c0_13 = arith.constant 0 : index
    %26 = vector.load %arg6[%c0_12, %c0_13] : memref<128x128xf32, #tpu.memory_space<vmem>>, vector<128x128xf32>
    tpu.vector_store %arg6[%c0_12, %c0_13], %25 {strides = array<i32>} : memref<128x128xf32, #tpu.memory_space<vmem>>, vector<128x128xf32>,
    %27 = vector.shape_cast %25 : vector<128x128xf32> to vector<16x8x128xf32>
    %cst_14 = arith.constant dense<0.000000e+00> : vector<16x128xf32>
    %28 = vector.multi_reduction <add>, %27, %cst_14 [1] : vector<16x8x128xf32> to vector<16x128xf32>
    %29 = vector.shape_cast %28 : vector<16x128xf32> to vector<16x1x128xf32>
    %30 = vector.broadcast %29 : vector<16x1x128xf32> to vector<16x128x128xf32>
    %31 = arith.mulf %0, %30 : vector<16x128x128xf32>
    %cst_15 = arith.constant dense<0.000000e+00> : vector<16x128xf32>
    %32 = vector.multi_reduction <add>, %31, %cst_15 [2] : vector<16x128x128xf32> to vector<16x128xf32>
    %c0_16 = arith.constant 0 : index
    %c0_17 = arith.constant 0 : index
    %33 = vector.load %arg5[%c0_16, %c0_17] : memref<16x128xf32, #tpu.memory_space<vmem>>, vector<16x128xf32>
    tpu.vector_store %arg5[%c0_16, %c0_17], %32 {strides = array<i32>} : memref<16x128xf32, #tpu.memory_space<vmem>>, vector<16x128xf32>,
    return
  }
  func.func @transform_0(%arg0: i32) -> (i32, i32, i32) {
    %c0_i32 = arith.constant 0 : i32
    %c0_i32_0 = arith.constant 0 : i32
    %c0_i32_1 = arith.constant 0 : i32
    return %arg0, %c0_i32, %c0_i32_0 : i32, i32, i32
  }
  func.func @transform_1(%arg0: i32) -> (i32, i32) {
    %c0_i32 = arith.constant 0 : i32
    %c0_i32_0 = arith.constant 0 : i32
    %c0_i32_1 = arith.constant 0 : i32
    return %c0_i32, %c0_i32_0 : i32, i32
  }
  func.func @transform_2(%arg0: i32) -> (i32, i32) {
    %c0_i32 = arith.constant 0 : i32
    %c0_i32_0 = arith.constant 0 : i32
    %c0_i32_1 = arith.constant 0 : i32
    return %c0_i32, %c0_i32_0 : i32, i32
  }
  func.func @transform_3(%arg0: i32) -> (i32, i32) {
    %c0_i32 = arith.constant 0 : i32
    %c0_i32_0 = arith.constant 0 : i32
    return %arg0, %c0_i32 : i32, i32
  }
  func.func @transform_4(%arg0: i32) -> (i32, i32) {
    %c0_i32 = arith.constant 0 : i32
    %c0_i32_0 = arith.constant 0 : i32
    return %arg0, %c0_i32 : i32, i32
  }
  func.func @transform_5(%arg0: i32) -> (i32, i32) {
    %c0_i32 = arith.constant 0 : i32
    %c0_i32_0 = arith.constant 0 : i32
    return %arg0, %c0_i32 : i32, i32
  }
}

</mosaic_0001>

<llo_original>
// kernel: tpu_custom_call.1
$region0: #{tpu_custom_call.1}
  #allocation0 [shape = 'u32[]', space=smem, size = 0x4, offset = 0x4, fixed_abs, tag = 'smem constant byte address 0x4 - core index']
  #allocation1 [shape = 'u32[144,128]{1,0:T(1,128)}', space=vmem, size = 0x12000, scoped, tag = 'internal scratch']
  %s0 = inlined_call_operand.hbm [shape: f32[16,128,128], index: 0, kind: input, shape index: {}]
  %s1 = inlined_call_operand.vmem [shape: f32[8,128], index: 1, kind: input, shape index: {}]
  %s2 = inlined_call_operand.vmem [shape: f32[8,1], index: 2, kind: input, shape index: {}]
  %s3 = inlined_call_operand.hbm [shape: f32[128,128], index: 3, kind: input, shape index: {}]
  %s4 = inlined_call_operand.hbm [shape: f32[16,128], index: 4, kind: output, shape index: {0}]
  %s5 = inlined_call_operand.hbm [shape: f32[128,128], index: 5, kind: output, shape index: {1}]
  %6 = xla_tuple %s4, %s5
  %s7 = sld [smem:[#allocation0]]
  $region42: #{tpu_custom_call.1} parent=0
    _
  %s9 = ssub.s32 1, %s7
  %s10 = scalar_select 0, %s9, %s7
  $region1: #{tpu_custom_call.1} parent=0
    #allocation2 [shape = 'u8[1048576]{0}', space=vmem, size = 0x100000, scoped, tag = 'input window, operand 0, single buffered']
    #allocation3 [shape = 's32[1]{0}', space=sflag, size = 0x4, scoped, tag = 'scoped memory for tpu_custom_call.1']
    #allocation4 [shape = 's32[1]{0}', space=sflag, size = 0x4, scoped, tag = 'scoped memory for tpu_custom_call.1']
    #allocation5 [shape = 'u8[65536]{0}', space=vmem, size = 0x10000, scoped, tag = 'input window, operand 3, single buffered']
    #allocation6 [shape = 's32[1]{0}', space=sflag, size = 0x4, scoped, tag = 'scoped memory for tpu_custom_call.1']
    #allocation7 [shape = 'u8[8192]{0}', space=vmem, size = 0x2000, scoped, tag = 'output window, operand 0, single buffered']
    #allocation8 [shape = 'u8[65536]{0}', space=vmem, size = 0x10000, scoped, tag = 'output window, operand 1, single buffered']
    #allocation9 [shape = 's32[1]{0}', space=sflag, size = 0x4, scoped, tag = 'scoped memory for tpu_custom_call.1']
    %11 = vsyncpa [#allocation3], 0
    %12 = vsyncpa [#allocation6], 0
    %13 = vsyncpa [#allocation4], 0
    %14 = vsyncpa [#allocation9], 0
    // Predicated region
    $region2: #{tpu_custom_call.1} parent=1 // pred_check
      _
    $region3: #{tpu_custom_call.1} parent=1 // pred_check_branch
      %16 = sbr.rel (0) target = $region5
    $region4: #{tpu_custom_call.1} parent=1 // pred_region
      %s18 = ssub.s32 32768, 32768
      %19 = vsyncadd [#allocation3], %s18
      %s20 = sshll.u32 [#allocation2], 4
      %s21 = int_to_ptr.vmem [resolvable:$true] %s20
      %26 = dma.hbm_to_vmem [thread:$0]  %s0, 32768, %s21, [#allocation3], 128, 128, 8
    $region5: #{tpu_custom_call.1} parent=1 // pred_fallthru
      _
    // Predicated region
    $region6: #{tpu_custom_call.1} parent=1 // pred_check
      _
    $region7: #{tpu_custom_call.1} parent=1 // pred_check_branch
      %28 = sbr.rel (0) target = $region9
    $region8: #{tpu_custom_call.1} parent=1 // pred_region
      _
    $region9: #{tpu_custom_call.1} parent=1 // pred_fallthru
      _
    // Predicated region
    $region10: #{tpu_custom_call.1} parent=1 // pred_check
      _
    $region11: #{tpu_custom_call.1} parent=1 // pred_check_branch
      %30 = sbr.rel (0) target = $region13
    $region12: #{tpu_custom_call.1} parent=1 // pred_region
      _
    $region13: #{tpu_custom_call.1} parent=1 // pred_fallthru
      _
    // Predicated region
    $region14: #{tpu_custom_call.1} parent=1 // pred_check
      _
    $region15: #{tpu_custom_call.1} parent=1 // pred_check_branch
      %32 = sbr.rel (0) target = $region17
    $region16: #{tpu_custom_call.1} parent=1 // pred_region
      %s34 = ssub.s32 2048, 2048
      %35 = vsyncadd [#allocation6], %s34
      %s36 = sshll.u32 [#allocation5], 4
      %s37 = int_to_ptr.vmem [resolvable:$true] %s36
      %42 = dma.hbm_to_vmem [thread:$0]  %s3, 2048, %s37, [#allocation6], 128, 128, 8
    $region17: #{tpu_custom_call.1} parent=1 // pred_fallthru
      _
    // Predicated region
    $region18: #{tpu_custom_call.1} parent=1 // pred_check
      _
    $region19: #{tpu_custom_call.1} parent=1 // pred_check_branch
      %44 = sbr.rel (0) target = $region21
    $region20: #{tpu_custom_call.1} parent=1 // pred_region
      %45 = dma.done [#allocation3], 32768
    $region21: #{tpu_custom_call.1} parent=1 // pred_fallthru
      _
    // Predicated region
    $region22: #{tpu_custom_call.1} parent=1 // pred_check
      _
    $region23: #{tpu_custom_call.1} parent=1 // pred_check_branch
      %47 = sbr.rel (0) target = $region25
    $region24: #{tpu_custom_call.1} parent=1 // pred_region
      %48 = dma.done [#allocation6], 2048
    $region25: #{tpu_custom_call.1} parent=1 // pred_fallthru
      _
    %v49 = vld [vmem:[#allocation2] sm:$0xff]
    %v50 = vld [vmem:[#allocation2 + $0x8] sm:$0xff]
    %v51 = vld [vmem:[#allocation2 + $0x10] sm:$0xff]
    %v52 = vld [vmem:[#allocation2 + $0x18] sm:$0xff]
    %v53 = vld [vmem:[#allocation2 + $0x20] sm:$0xff]
    %v54 = vld [vmem:[#allocation2 + $0x28] sm:$0xff]
    %v55 = vld [vmem:[#allocation2 + $0x30] sm:$0xff]
    %v56 = vld [vmem:[#allocation2 + $0x38] sm:$0xff]
    %v57 = vld [vmem:[#allocation2 + $0x40] sm:$0xff]
    %v58 = vld [vmem:[#allocation2 + $0x48] sm:$0xff]
    %v59 = vld [vmem:[#allocation2 + $0x50] sm:$0xff]
    %v60 = vld [vmem:[#allocation2 + $0x58] sm:$0xff]
    %v61 = vld [vmem:[#allocation2 + $0x60] sm:$0xff]
    %v62 = vld [vmem:[#allocation2 + $0x68] sm:$0xff]
    %v63 = vld [vmem:[#allocation2 + $0x70] sm:$0xff]
    %v64 = vld [vmem:[#allocation2 + $0x78] sm:$0xff]
    %v65 = vld [vmem:[#allocation2 + $0x80] sm:$0xff]
    %v66 = vld [vmem:[#allocation2 + $0x88] sm:$0xff]
    %v67 = vld [vmem:[#allocation2 + $0x90] sm:$0xff]
    %v68 = vld [vmem:[#allocation2 + $0x98] sm:$0xff]
    %v69 = vld [vmem:[#allocation2 + $0xa0] sm:$0xff]
    %v70 = vld [vmem:[#allocation2 + $0xa8] sm:$0xff]
    %v71 = vld [vmem:[#allocation2 + $0xb0] sm:$0xff]
    %v72 = vld [vmem:[#allocation2 + $0xb8] sm:$0xff]
    %v73 = vld [vmem:[#allocation2 + $0xc0] sm:$0xff]
    %v74 = vld [vmem:[#allocation2 + $0xc8] sm:$0xff]
    %v75 = vld [vmem:[#allocation2 + $0xd0] sm:$0xff]
    %v76 = vld [vmem:[#allocation2 + $0xd8] sm:$0xff]
    %v77 = vld [vmem:[#allocation2 + $0xe0] sm:$0xff]
    %v78 = vld [vmem:[#allocation2 + $0xe8] sm:$0xff]
    %v79 = vld [vmem:[#allocation2 + $0xf0] sm:$0xff]
    %v80 = vld [vmem:[#allocation2 + $0xf8] sm:$0xff]
    %v81 = vld [vmem:[#allocation2 + $0x100] sm:$0xff]
    %v82 = vld [vmem:[#allocation2 + $0x108] sm:$0xff]
    %v83 = vld [vmem:[#allocation2 + $0x110] sm:$0xff]
    %v84 = vld [vmem:[#allocation2 + $0x118] sm:$0xff]
    %v85 = vld [vmem:[#allocation2 + $0x120] sm:$0xff]
    %v86 = vld [vmem:[#allocation2 + $0x128] sm:$0xff]
    %v87 = vld [vmem:[#allocation2 + $0x130] sm:$0xff]
    %v88 = vld [vmem:[#allocation2 + $0x138] sm:$0xff]
    %v89 = vld [vmem:[#allocation2 + $0x140] sm:$0xff]
    %v90 = vld [vmem:[#allocation2 + $0x148] sm:$0xff]
    %v91 = vld [vmem:[#allocation2 + $0x150] sm:$0xff]
    %v92 = vld [vmem:[#allocation2 + $0x158] sm:$0xff]
    %v93 = vld [vmem:[#allocation2 + $0x160] sm:$0xff]
    %v94 = vld [vmem:[#allocation2 + $0x168] sm:$0xff]
    %v95 = vld [vmem:[#allocation2 + $0x170] sm:$0xff]
    %v96 = vld [vmem:[#allocation2 + $0x178] sm:$0xff]
    %v97 = vld [vmem:[#allocation2 + $0x180] sm:$0xff]
    %v98 = vld [vmem:[#allocation2 + $0x188] sm:$0xff]
    %v99 = vld [vmem:[#allocation2 + $0x190] sm:$0xff]
    %v100 = vld [vmem:[#allocation2 + $0x198] sm:$0xff]
    %v101 = vld [vmem:[#allocation2 + $0x1a0] sm:$0xff]
    %v102 = vld [vmem:[#allocation2 + $0x1a8] sm:$0xff]
    %v103 = vld [vmem:[#allocation2 + $0x1b0] sm:$0xff]
    %v104 = vld [vmem:[#allocation2 + $0x1b8] sm:$0xff]
    %v105 = vld [vmem:[#allocation2 + $0x1c0] sm:$0xff]
    %v106 = vld [vmem:[#allocation2 + $0x1c8] sm:$0xff]
    %v107 = vld [vmem:[#allocation2 + $0x1d0] sm:$0xff]
    %v108 = vld [vmem:[#allocation2 + $0x1d8] sm:$0xff]
    %v109 = vld [vmem:[#allocation2 + $0x1e0] sm:$0xff]
    %v110 = vld [vmem:[#allocation2 + $0x1e8] sm:$0xff]
    %v111 = vld [vmem:[#allocation2 + $0x1f0] sm:$0xff]
    %v112 = vld [vmem:[#allocation2 + $0x1f8] sm:$0xff]
    %v113 = vld [vmem:[#allocation2 + $0x200] sm:$0xff]
    %v114 = vld [vmem:[#allocation2 + $0x208] sm:$0xff]
    %v115 = vld [vmem:[#allocation2 + $0x210] sm:$0xff]
    %v116 = vld [vmem:[#allocation2 + $0x218] sm:$0xff]
    %v117 = vld [vmem:[#allocation2 + $0x220] sm:$0xff]
    %v118 = vld [vmem:[#allocation2 + $0x228] sm:$0xff]
    %v119 = vld [vmem:[#allocation2 + $0x230] sm:$0xff]
    %v120 = vld [vmem:[#allocation2 + $0x238] sm:$0xff]
    %v121 = vld [vmem:[#allocation2 + $0x240] sm:$0xff]
    %v122 = vld [vmem:[#allocation2 + $0x248] sm:$0xff]
    %v123 = vld [vmem:[#allocation2 + $0x250] sm:$0xff]
    %v124 = vld [vmem:[#allocation2 + $0x258] sm:$0xff]
    %v125 = vld [vmem:[#allocation2 + $0x260] sm:$0xff]
    %v126 = vld [vmem:[#allocation2 + $0x268] sm:$0xff]
    %v127 = vld [vmem:[#allocation2 + $0x270] sm:$0xff]
    %v128 = vld [vmem:[#allocation2 + $0x278] sm:$0xff]
    %v129 = vld [vmem:[#allocation2 + $0x280] sm:$0xff]
    %v130 = vld [vmem:[#allocation2 + $0x288] sm:$0xff]
    %v131 = vld [vmem:[#allocation2 + $0x290] sm:$0xff]
    %v132 = vld [vmem:[#allocation2 + $0x298] sm:$0xff]
    %v133 = vld [vmem:[#allocation2 + $0x2a0] sm:$0xff]
    %v134 = vld [vmem:[#allocation2 + $0x2a8] sm:$0xff]
    %v135 = vld [vmem:[#allocation2 + $0x2b0] sm:$0xff]
    %v136 = vld [vmem:[#allocation2 + $0x2b8] sm:$0xff]
    %v137 = vld [vmem:[#allocation2 + $0x2c0] sm:$0xff]
    %v138 = vld [vmem:[#allocation2 + $0x2c8] sm:$0xff]
    %v139 = vld [vmem:[#allocation2 + $0x2d0] sm:$0xff]
    %v140 = vld [vmem:[#allocation2 + $0x2d8] sm:$0xff]
    %v141 = vld [vmem:[#allocation2 + $0x2e0] sm:$0xff]
    %v142 = vld [vmem:[#allocation2 + $0x2e8] sm:$0xff]
    %v143 = vld [vmem:[#allocation2 + $0x2f0] sm:$0xff]
    %v144 = vld [vmem:[#allocation2 + $0x2f8] sm:$0xff]
    %v145 = vld [vmem:[#allocation2 + $0x300] sm:$0xff]
    %v146 = vld [vmem:[#allocation2 + $0x308] sm:$0xff]
    %v147 = vld [vmem:[#allocation2 + $0x310] sm:$0xff]
    %v148 = vld [vmem:[#allocation2 + $0x318] sm:$0xff]
    %v149 = vld [vmem:[#allocation2 + $0x320] sm:$0xff]
    %v150 = vld [vmem:[#allocation2 + $0x328] sm:$0xff]
    %v151 = vld [vmem:[#allocation2 + $0x330] sm:$0xff]
    %v152 = vld [vmem:[#allocation2 + $0x338] sm:$0xff]
    %v153 = vld [vmem:[#allocation2 + $0x340] sm:$0xff]
    %v154 = vld [vmem:[#allocation2 + $0x348] sm:$0xff]
    %v155 = vld [vmem:[#allocation2 + $0x350] sm:$0xff]
    %v156 = vld [vmem:[#allocation2 + $0x358] sm:$0xff]
    %v157 = vld [vmem:[#allocation2 + $0x360] sm:$0xff]
    %v158 = vld [vmem:[#allocation2 + $0x368] sm:$0xff]
    %v159 = vld [vmem:[#allocation2 + $0x370] sm:$0xff]
    %v160 = vld [vmem:[#allocation2 + $0x378] sm:$0xff]
    %v161 = vld [vmem:[#allocation2 + $0x380] sm:$0xff]
    %v162 = vld [vmem:[#allocation2 + $0x388] sm:$0xff]
    %v163 = vld [vmem:[#allocation2 + $0x390] sm:$0xff]
    %v164 = vld [vmem:[#allocation2 + $0x398] sm:$0xff]
    %v165 = vld [vmem:[#allocation2 + $0x3a0] sm:$0xff]
    %v166 = vld [vmem:[#allocation2 + $0x3a8] sm:$0xff]
    %v167 = vld [vmem:[#allocation2 + $0x3b0] sm:$0xff]
    %v168 = vld [vmem:[#allocation2 + $0x3b8] sm:$0xff]
    %v169 = vld [vmem:[#allocation2 + $0x3c0] sm:$0xff]
    %v170 = vld [vmem:[#allocation2 + $0x3c8] sm:$0xff]
    %v171 = vld [vmem:[#allocation2 + $0x3d0] sm:$0xff]
    %v172 = vld [vmem:[#allocation2 + $0x3d8] sm:$0xff]
    %v173 = vld [vmem:[#allocation2 + $0x3e0] sm:$0xff]
    %v174 = vld [vmem:[#allocation2 + $0x3e8] sm:$0xff]
    %v175 = vld [vmem:[#allocation2 + $0x3f0] sm:$0xff]
    %v176 = vld [vmem:[#allocation2 + $0x3f8] sm:$0xff]
    %v177 = vld [vmem:[#allocation2 + $0x400] sm:$0xff]
    %v178 = vld [vmem:[#allocation2 + $0x408] sm:$0xff]
    %v179 = vld [vmem:[#allocation2 + $0x410] sm:$0xff]
    %v180 = vld [vmem:[#allocation2 + $0x418] sm:$0xff]
    %v181 = vld [vmem:[#allocation2 + $0x420] sm:$0xff]
    %v182 = vld [vmem:[#allocation2 + $0x428] sm:$0xff]
    %v183 = vld [vmem:[#allocation2 + $0x430] sm:$0xff]
    %v184 = vld [vmem:[#allocation2 + $0x438] sm:$0xff]
    %v185 = vld [vmem:[#allocation2 + $0x440] sm:$0xff]
    %v186 = vld [vmem:[#allocation2 + $0x448] sm:$0xff]
    %v187 = vld [vmem:[#allocation2 + $0x450] sm:$0xff]
    %v188 = vld [vmem:[#allocation2 + $0x458] sm:$0xff]
    %v189 = vld [vmem:[#allocation2 + $0x460] sm:$0xff]
    %v190 = vld [vmem:[#allocation2 + $0x468] sm:$0xff]
    %v191 = vld [vmem:[#allocation2 + $0x470] sm:$0xff]
    %v192 = vld [vmem:[#allocation2 + $0x478] sm:$0xff]
    %v193 = vld [vmem:[#allocation2 + $0x480] sm:$0xff]
    %v194 = vld [vmem:[#allocation2 + $0x488] sm:$0xff]
    %v195 = vld [vmem:[#allocation2 + $0x490] sm:$0xff]
    %v196 = vld [vmem:[#allocation2 + $0x498] sm:$0xff]
    %v197 = vld [vmem:[#allocation2 + $0x4a0] sm:$0xff]
    %v198 = vld [vmem:[#allocation2 + $0x4a8] sm:$0xff]
    %v199 = vld [vmem:[#allocation2 + $0x4b0] sm:$0xff]
    %v200 = vld [vmem:[#allocation2 + $0x4b8] sm:$0xff]
    %v201 = vld [vmem:[#allocation2 + $0x4c0] sm:$0xff]
    %v202 = vld [vmem:[#allocation2 + $0x4c8] sm:$0xff]
    %v203 = vld [vmem:[#allocation2 + $0x4d0] sm:$0xff]
    %v204 = vld [vmem:[#allocation2 + $0x4d8] sm:$0xff]
    %v205 = vld [vmem:[#allocation2 + $0x4e0] sm:$0xff]
    %v206 = vld [vmem:[#allocation2 + $0x4e8] sm:$0xff]
    %v207 = vld [vmem:[#allocation2 + $0x4f0] sm:$0xff]
    %v208 = vld [vmem:[#allocation2 + $0x4f8] sm:$0xff]
    %v209 = vld [vmem:[#allocation2 + $0x500] sm:$0xff]
    %v210 = vld [vmem:[#allocation2 + $0x508] sm:$0xff]
    %v211 = vld [vmem:[#allocation2 + $0x510] sm:$0xff]
    %v212 = vld [vmem:[#allocation2 + $0x518] sm:$0xff]
    %v213 = vld [vmem:[#allocation2 + $0x520] sm:$0xff]
    %v214 = vld [vmem:[#allocation2 + $0x528] sm:$0xff]
    %v215 = vld [vmem:[#allocation2 + $0x530] sm:$0xff]
    %v216 = vld [vmem:[#allocation2 + $0x538] sm:$0xff]
    %v217 = vld [vmem:[#allocation2 + $0x540] sm:$0xff]
    %v218 = vld [vmem:[#allocation2 + $0x548] sm:$0xff]
    %v219 = vld [vmem:[#allocation2 + $0x550] sm:$0xff]
    %v220 = vld [vmem:[#allocation2 + $0x558] sm:$0xff]
    %v221 = vld [vmem:[#allocation2 + $0x560] sm:$0xff]
    %v222 = vld [vmem:[#allocation2 + $0x568] sm:$0xff]
    %v223 = vld [vmem:[#allocation2 + $0x570] sm:$0xff]
    %v224 = vld [vmem:[#allocation2 + $0x578] sm:$0xff]
    %v225 = vld [vmem:[#allocation2 + $0x580] sm:$0xff]
    %v226 = vld [vmem:[#allocation2 + $0x588] sm:$0xff]
    %v227 = vld [vmem:[#allocation2 + $0x590] sm:$0xff]
    %v228 = vld [vmem:[#allocation2 + $0x598] sm:$0xff]
    %v229 = vld [vmem:[#allocation2 + $0x5a0] sm:$0xff]
    %v230 = vld [vmem:[#allocation2 + $0x5a8] sm:$0xff]
    %v231 = vld [vmem:[#allocation2 + $0x5b0] sm:$0xff]
    %v232 = vld [vmem:[#allocation2 + $0x5b8] sm:$0xff]
    %v233 = vld [vmem:[#allocation2 + $0x5c0] sm:$0xff]
    %v234 = vld [vmem:[#allocation2 + $0x5c8] sm:$0xff]
    %v235 = vld [vmem:[#allocation2 + $0x5d0] sm:$0xff]
    %v236 = vld [vmem:[#allocation2 + $0x5d8] sm:$0xff]
    %v237 = vld [vmem:[#allocation2 + $0x5e0] sm:$0xff]
    %v238 = vld [vmem:[#allocation2 + $0x5e8] sm:$0xff]
    %v239 = vld [vmem:[#allocation2 + $0x5f0] sm:$0xff]
    %v240 = vld [vmem:[#allocation2 + $0x5f8] sm:$0xff]
    %v241 = vld [vmem:[#allocation2 + $0x600] sm:$0xff]
    %v242 = vld [vmem:[#allocation2 + $0x608] sm:$0xff]
    %v243 = vld [vmem:[#allocation2 + $0x610] sm:$0xff]
    %v244 = vld [vmem:[#allocation2 + $0x618] sm:$0xff]
    %v245 = vld [vmem:[#allocation2 + $0x620] sm:$0xff]
    %v246 = vld [vmem:[#allocation2 + $0x628] sm:$0xff]
    %v247 = vld [vmem:[#allocation2 + $0x630] sm:$0xff]
    %v248 = vld [vmem:[#allocation2 + $0x638] sm:$0xff]
    %v249 = vld [vmem:[#allocation2 + $0x640] sm:$0xff]
    %v250 = vld [vmem:[#allocation2 + $0x648] sm:$0xff]
    %v251 = vld [vmem:[#allocation2 + $0x650] sm:$0xff]
    %v252 = vld [vmem:[#allocation2 + $0x658] sm:$0xff]
    %v253 = vld [vmem:[#allocation2 + $0x660] sm:$0xff]
    %v254 = vld [vmem:[#allocation2 + $0x668] sm:$0xff]
    %v255 = vld [vmem:[#allocation2 + $0x670] sm:$0xff]
    %v256 = vld [vmem:[#allocation2 + $0x678] sm:$0xff]
    %v257 = vld [vmem:[#allocation2 + $0x680] sm:$0xff]
    %v258 = vld [vmem:[#allocation2 + $0x688] sm:$0xff]
    %v259 = vld [vmem:[#allocation2 + $0x690] sm:$0xff]
    %v260 = vld [vmem:[#allocation2 + $0x698] sm:$0xff]
    %v261 = vld [vmem:[#allocation2 + $0x6a0] sm:$0xff]
    %v262 = vld [vmem:[#allocation2 + $0x6a8] sm:$0xff]
    %v263 = vld [vmem:[#allocation2 + $0x6b0] sm:$0xff]
    %v264 = vld [vmem:[#allocation2 + $0x6b8] sm:$0xff]
    %v265 = vld [vmem:[#allocation2 + $0x6c0] sm:$0xff]
    %v266 = vld [vmem:[#allocation2 + $0x6c8] sm:$0xff]
    %v267 = vld [vmem:[#allocation2 + $0x6d0] sm:$0xff]
    %v268 = vld [vmem:[#allocation2 + $0x6d8] sm:$0xff]
    %v269 = vld [vmem:[#allocation2 + $0x6e0] sm:$0xff]
    %v270 = vld [vmem:[#allocation2 + $0x6e8] sm:$0xff]
    %v271 = vld [vmem:[#allocation2 + $0x6f0] sm:$0xff]
    %v272 = vld [vmem:[#allocation2 + $0x6f8] sm:$0xff]
    %v273 = vld [vmem:[#allocation2 + $0x700] sm:$0xff]
    %v274 = vld [vmem:[#allocation2 + $0x708] sm:$0xff]
    %v275 = vld [vmem:[#allocation2 + $0x710] sm:$0xff]
    %v276 = vld [vmem:[#allocation2 + $0x718] sm:$0xff]
    %v277 = vld [vmem:[#allocation2 + $0x720] sm:$0xff]
    %v278 = vld [vmem:[#allocation2 + $0x728] sm:$0xff]
    %v279 = vld [vmem:[#allocation2 + $0x730] sm:$0xff]
    %v280 = vld [vmem:[#allocation2 + $0x738] sm:$0xff]
    %v281 = vld [vmem:[#allocation2 + $0x740] sm:$0xff]
    %v282 = vld [vmem:[#allocation2 + $0x748] sm:$0xff]
    %v283 = vld [vmem:[#allocation2 + $0x750] sm:$0xff]
    %v284 = vld [vmem:[#allocation2 + $0x758] sm:$0xff]
    %v285 = vld [vmem:[#allocation2 + $0x760] sm:$0xff]
    %v286 = vld [vmem:[#allocation2 + $0x768] sm:$0xff]
    %v287 = vld [vmem:[#allocation2 + $0x770] sm:$0xff]
    %v288 = vld [vmem:[#allocation2 + $0x778] sm:$0xff]
    %v289 = vld [vmem:[#allocation2 + $0x780] sm:$0xff]
    %v290 = vld [vmem:[#allocation2 + $0x788] sm:$0xff]
    %v291 = vld [vmem:[#allocation2 + $0x790] sm:$0xff]
    %v292 = vld [vmem:[#allocation2 + $0x798] sm:$0xff]
    %v293 = vld [vmem:[#allocation2 + $0x7a0] sm:$0xff]
    %v294 = vld [vmem:[#allocation2 + $0x7a8] sm:$0xff]
    %v295 = vld [vmem:[#allocation2 + $0x7b0] sm:$0xff]
    %v296 = vld [vmem:[#allocation2 + $0x7b8] sm:$0xff]
    %v297 = vld [vmem:[#allocation2 + $0x7c0] sm:$0xff]
    %v298 = vld [vmem:[#allocation2 + $0x7c8] sm:$0xff]
    %v299 = vld [vmem:[#allocation2 + $0x7d0] sm:$0xff]
    %v300 = vld [vmem:[#allocation2 + $0x7d8] sm:$0xff]
    %v301 = vld [vmem:[#allocation2 + $0x7e0] sm:$0xff]
    %v302 = vld [vmem:[#allocation2 + $0x7e8] sm:$0xff]
    %v303 = vld [vmem:[#allocation2 + $0x7f0] sm:$0xff]
    %v304 = vld [vmem:[#allocation2 + $0x7f8] sm:$0xff]
    %v305 = vld [vmem:[%s1] sm:$0xff]
    %v306 = vld [vmem:[%s2] sm:$0xff]
    %v307 = vld [vmem:[#allocation5] sm:$0xff]
    %v308 = vld [vmem:[#allocation5 + $0x8] sm:$0xff]
    %v309 = vld [vmem:[#allocation5 + $0x10] sm:$0xff]
    %v310 = vld [vmem:[#allocation5 + $0x18] sm:$0xff]
    %v311 = vld [vmem:[#allocation5 + $0x20] sm:$0xff]
    %v312 = vld [vmem:[#allocation5 + $0x28] sm:$0xff]
    %v313 = vld [vmem:[#allocation5 + $0x30] sm:$0xff]
    %v314 = vld [vmem:[#allocation5 + $0x38] sm:$0xff]
    %v315 = vld [vmem:[#allocation5 + $0x40] sm:$0xff]
    %v316 = vld [vmem:[#allocation5 + $0x48] sm:$0xff]
    %v317 = vld [vmem:[#allocation5 + $0x50] sm:$0xff]
    %v318 = vld [vmem:[#allocation5 + $0x58] sm:$0xff]
    %v319 = vld [vmem:[#allocation5 + $0x60] sm:$0xff]
    %v320 = vld [vmem:[#allocation5 + $0x68] sm:$0xff]
    %v321 = vld [vmem:[#allocation5 + $0x70] sm:$0xff]
    %v322 = vld [vmem:[#allocation5 + $0x78] sm:$0xff]
    %324 = vset.pattern.permute.xlu0 0
    %325 = vperm.xlu0 %324, %v306
    %v326 = vpop.permute.xlu0 %325
    %328 = vmatprep.subr.mxu0 0.0
    %329 = vmatpush1.xpose.msra.mxu0 %v64
    %330 = vmatprep.subr.mxu0 0.0
    %331 = vmatpush1.xpose.msra.mxu0 %v63
    %332 = vmatprep.subr.mxu0 0.0
    %333 = vmatpush1.xpose.msra.mxu0 %v62
    %334 = vmatprep.subr.mxu0 0.0
    %335 = vmatpush1.xpose.msra.mxu0 %v61
    %336 = vmatprep.subr.mxu0 0.0
    %337 = vmatpush1.xpose.msra.mxu0 %v60
    %338 = vmatprep.subr.mxu0 0.0
    %339 = vmatpush1.xpose.msra.mxu0 %v59
    %340 = vmatprep.subr.mxu0 0.0
    %341 = vmatpush1.xpose.msra.mxu0 %v58
    %342 = vmatprep.subr.mxu0 0.0
    %343 = vmatpush1.xpose.msra.mxu0 %v57
    %344 = vmatprep.subr.mxu0 0.0
    %345 = vmatpush1.xpose.msra.mxu0 %v56
    %346 = vmatprep.subr.mxu0 0.0
    %347 = vmatpush1.xpose.msra.mxu0 %v55
    %348 = vmatprep.subr.mxu0 0.0
    %349 = vmatpush1.xpose.msra.mxu0 %v54
    %350 = vmatprep.subr.mxu0 0.0
    %351 = vmatpush1.xpose.msra.mxu0 %v53
    %352 = vmatprep.subr.mxu0 0.0
    %353 = vmatpush1.xpose.msra.mxu0 %v52
    %354 = vmatprep.subr.mxu0 0.0
    %355 = vmatpush1.xpose.msra.mxu0 %v51
    %356 = vmatprep.subr.mxu0 0.0
    %357 = vmatpush1.xpose.msra.mxu0 %v50
    %358 = vmatprep.subr.mxu0 0.0
    %359 = vmatpush1.xpose.msra.mxu0 %v49
    %360 = vmatprep.subr.mxu0 0.0
    %361 = vmatpush2.xpose.msra.mxu0 0.0
    %362 = vmatprep.subr.mxu0 0.0
    %363 = vmatpush2.xpose.msra.mxu0 0.0
    %364 = vmatprep.subr.mxu0 0.0
    %365 = vmatpush2.xpose.msra.mxu0 0.0
    %366 = vmatprep.subr.mxu0 0.0
    %367 = vmatpush2.xpose.msra.mxu0 0.0
    %368 = vmatprep.subr.mxu0 0.0
    %369 = vmatpush2.xpose.msra.mxu0 0.0
    %370 = vmatprep.subr.mxu0 0.0
    %371 = vmatpush2.xpose.msra.mxu0 0.0
    %372 = vmatprep.subr.mxu0 0.0
    %373 = vmatpush2.xpose.msra.mxu0 0.0
    %374 = vmatprep.subr.mxu0 0.0
    %375 = vmatpush2.xpose.msra.mxu0 0.0
    %376 = vmatprep.subr.mxu0 0.0
    %377 = vmatpush2.xpose.msra.mxu0 0.0
    %378 = vmatprep.subr.mxu0 0.0
    %379 = vmatpush2.xpose.msra.mxu0 0.0
    %380 = vmatprep.subr.mxu0 0.0
    %381 = vmatpush2.xpose.msra.mxu0 0.0
    %382 = vmatprep.subr.mxu0 0.0
    %383 = vmatpush2.xpose.msra.mxu0 0.0
    %384 = vmatprep.subr.mxu0 0.0
    %385 = vmatpush2.xpose.msra.mxu0 0.0
    %386 = vmatprep.subr.mxu0 0.0
    %387 = vmatpush2.xpose.msra.mxu0 0.0
    %388 = vmatprep.subr.mxu0 0.0
    %389 = vmatpush2.xpose.msra.mxu0 0.0
    %390 = vmatprep.subr.mxu0 0.0
    %391 = vmatpush2.xpose.msra.mxu0 0.0
    %392 = vmatprep.mubr.f32.mxu0 0.0
    %393 = vmatmul.mubr.f32.gmra.mxu0 %v305
    %v394 = vpop.f32.mrf.mxu0
    %v395 = vadd.f32 %v326, %v394
    %v396 = vpop.f32.mrf.mxu0
    %397 = vdwg.mxu0
    %398 = vmatprep.subr.mxu0 0.0
    %399 = vmatpush1.xpose.msra.mxu0 %v80
    %400 = vmatprep.subr.mxu0 0.0
    %401 = vmatpush1.xpose.msra.mxu0 %v79
    %402 = vmatprep.subr.mxu0 0.0
    %403 = vmatpush1.xpose.msra.mxu0 %v78
    %404 = vmatprep.subr.mxu0 0.0
    %405 = vmatpush1.xpose.msra.mxu0 %v77
    %406 = vmatprep.subr.mxu0 0.0
    %407 = vmatpush1.xpose.msra.mxu0 %v76
    %408 = vmatprep.subr.mxu0 0.0
    %409 = vmatpush1.xpose.msra.mxu0 %v75
    %410 = vmatprep.subr.mxu0 0.0
    %411 = vmatpush1.xpose.msra.mxu0 %v74
    %412 = vmatprep.subr.mxu0 0.0
    %413 = vmatpush1.xpose.msra.mxu0 %v73
    %414 = vmatprep.subr.mxu0 0.0
    %415 = vmatpush1.xpose.msra.mxu0 %v72
    %416 = vmatprep.subr.mxu0 0.0
    %417 = vmatpush1.xpose.msra.mxu0 %v71
    %418 = vmatprep.subr.mxu0 0.0
    %419 = vmatpush1.xpose.msra.mxu0 %v70
    %420 = vmatprep.subr.mxu0 0.0
    %421 = vmatpush1.xpose.msra.mxu0 %v69
    %422 = vmatprep.subr.mxu0 0.0
    %423 = vmatpush1.xpose.msra.mxu0 %v68
    %424 = vmatprep.subr.mxu0 0.0
    %425 = vmatpush1.xpose.msra.mxu0 %v67
    %426 = vmatprep.subr.mxu0 0.0
    %427 = vmatpush1.xpose.msra.mxu0 %v66
    %428 = vmatprep.subr.mxu0 0.0
    %429 = vmatpush1.xpose.msra.mxu0 %v65
    %430 = vmatprep.subr.mxu0 0.0
    %431 = vmatpush2.xpose.msra.mxu0 0.0
    %432 = vmatprep.subr.mxu0 0.0
    %433 = vmatpush2.xpose.msra.mxu0 0.0
    %434 = vmatprep.subr.mxu0 0.0
    %435 = vmatpush2.xpose.msra.mxu0 0.0
    %436 = vmatprep.subr.mxu0 0.0
    %437 = vmatpush2.xpose.msra.mxu0 0.0
    %438 = vmatprep.subr.mxu0 0.0
    %439 = vmatpush2.xpose.msra.mxu0 0.0
    %440 = vmatprep.subr.mxu0 0.0
    %441 = vmatpush2.xpose.msra.mxu0 0.0
    %442 = vmatprep.subr.mxu0 0.0
    %443 = vmatpush2.xpose.msra.mxu0 0.0
    %444 = vmatprep.subr.mxu0 0.0
    %445 = vmatpush2.xpose.msra.mxu0 0.0
    %446 = vmatprep.subr.mxu0 0.0
    %447 = vmatpush2.xpose.msra.mxu0 0.0
    %448 = vmatprep.subr.mxu0 0.0
    %449 = vmatpush2.xpose.msra.mxu0 0.0
    %450 = vmatprep.subr.mxu0 0.0
    %451 = vmatpush2.xpose.msra.mxu0 0.0
    %452 = vmatprep.subr.mxu0 0.0
    %453 = vmatpush2.xpose.msra.mxu0 0.0
    %454 = vmatprep.subr.mxu0 0.0
    %455 = vmatpush2.xpose.msra.mxu0 0.0
    %456 = vmatprep.subr.mxu0 0.0
    %457 = vmatpush2.xpose.msra.mxu0 0.0
    %458 = vmatprep.subr.mxu0 0.0
    %459 = vmatpush2.xpose.msra.mxu0 0.0
    %460 = vmatprep.subr.mxu0 0.0
    %461 = vmatpush2.xpose.msra.mxu0 0.0
    %462 = vmatprep.mubr.f32.mxu0 0.0
    %463 = vmatmul.mubr.f32.gmra.mxu0 %v305
    %v464 = vpop.f32.mrf.mxu0
    %v465 = vadd.f32 %v326, %v464
    %v466 = vpop.f32.mrf.mxu0
    %467 = vdwg.mxu0
    %468 = vmatprep.subr.mxu0 0.0
    %469 = vmatpush1.xpose.msra.mxu0 %v96
    %470 = vmatprep.subr.mxu0 0.0
    %471 = vmatpush1.xpose.msra.mxu0 %v95
    %472 = vmatprep.subr.mxu0 0.0
    %473 = vmatpush1.xpose.msra.mxu0 %v94
    %474 = vmatprep.subr.mxu0 0.0
    %475 = vmatpush1.xpose.msra.mxu0 %v93
    %476 = vmatprep.subr.mxu0 0.0
    %477 = vmatpush1.xpose.msra.mxu0 %v92
    %478 = vmatprep.subr.mxu0 0.0
    %479 = vmatpush1.xpose.msra.mxu0 %v91
    %480 = vmatprep.subr.mxu0 0.0
    %481 = vmatpush1.xpose.msra.mxu0 %v90
    %482 = vmatprep.subr.mxu0 0.0
    %483 = vmatpush1.xpose.msra.mxu0 %v89
    %484 = vmatprep.subr.mxu0 0.0
    %485 = vmatpush1.xpose.msra.mxu0 %v88
    %486 = vmatprep.subr.mxu0 0.0
    %487 = vmatpush1.xpose.msra.mxu0 %v87
    %488 = vmatprep.subr.mxu0 0.0
    %489 = vmatpush1.xpose.msra.mxu0 %v86
    %490 = vmatprep.subr.mxu0 0.0
    %491 = vmatpush1.xpose.msra.mxu0 %v85
    %492 = vmatprep.subr.mxu0 0.0
    %493 = vmatpush1.xpose.msra.mxu0 %v84
    %494 = vmatprep.subr.mxu0 0.0
    %495 = vmatpush1.xpose.msra.mxu0 %v83
    %496 = vmatprep.subr.mxu0 0.0
    %497 = vmatpush1.xpose.msra.mxu0 %v82
    %498 = vmatprep.subr.mxu0 0.0
    %499 = vmatpush1.xpose.msra.mxu0 %v81
    %500 = vmatprep.subr.mxu0 0.0
    %501 = vmatpush2.xpose.msra.mxu0 0.0
    %502 = vmatprep.subr.mxu0 0.0
    %503 = vmatpush2.xpose.msra.mxu0 0.0
    %504 = vmatprep.subr.mxu0 0.0
    %505 = vmatpush2.xpose.msra.mxu0 0.0
    %506 = vmatprep.subr.mxu0 0.0
    %507 = vmatpush2.xpose.msra.mxu0 0.0
    %508 = vmatprep.subr.mxu0 0.0
    %509 = vmatpush2.xpose.msra.mxu0 0.0
    %510 = vmatprep.subr.mxu0 0.0
    %511 = vmatpush2.xpose.msra.mxu0 0.0
    %512 = vmatprep.subr.mxu0 0.0
    %513 = vmatpush2.xpose.msra.mxu0 0.0
    %514 = vmatprep.subr.mxu0 0.0
    %515 = vmatpush2.xpose.msra.mxu0 0.0
    %516 = vmatprep.subr.mxu0 0.0
    %517 = vmatpush2.xpose.msra.mxu0 0.0
    %518 = vmatprep.subr.mxu0 0.0
    %519 = vmatpush2.xpose.msra.mxu0 0.0
    %520 = vmatprep.subr.mxu0 0.0
    %521 = vmatpush2.xpose.msra.mxu0 0.0
    %522 = vmatprep.subr.mxu0 0.0
    %523 = vmatpush2.xpose.msra.mxu0 0.0
    %524 = vmatprep.subr.mxu0 0.0
    %525 = vmatpush2.xpose.msra.mxu0 0.0
    %526 = vmatprep.subr.mxu0 0.0
    %527 = vmatpush2.xpose.msra.mxu0 0.0
    %528 = vmatprep.subr.mxu0 0.0
    %529 = vmatpush2.xpose.msra.mxu0 0.0
    %530 = vmatprep.subr.mxu0 0.0
    %531 = vmatpush2.xpose.msra.mxu0 0.0
    %532 = vmatprep.mubr.f32.mxu0 0.0
    %533 = vmatmul.mubr.f32.gmra.mxu0 %v305
    %v534 = vpop.f32.mrf.mxu0
    %v535 = vadd.f32 %v326, %v534
    %v536 = vpop.f32.mrf.mxu0
    %537 = vdwg.mxu0
    %538 = vmatprep.subr.mxu0 0.0
    %539 = vmatpush1.xpose.msra.mxu0 %v112
    %540 = vmatprep.subr.mxu0 0.0
    %541 = vmatpush1.xpose.msra.mxu0 %v111
    %542 = vmatprep.subr.mxu0 0.0
    %543 = vmatpush1.xpose.msra.mxu0 %v110
    %544 = vmatprep.subr.mxu0 0.0
    %545 = vmatpush1.xpose.msra.mxu0 %v109
    %546 = vmatprep.subr.mxu0 0.0
    %547 = vmatpush1.xpose.msra.mxu0 %v108
    %548 = vmatprep.subr.mxu0 0.0
    %549 = vmatpush1.xpose.msra.mxu0 %v107
    %550 = vmatprep.subr.mxu0 0.0
    %551 = vmatpush1.xpose.msra.mxu0 %v106
    %552 = vmatprep.subr.mxu0 0.0
    %553 = vmatpush1.xpose.msra.mxu0 %v105
    %554 = vmatprep.subr.mxu0 0.0
    %555 = vmatpush1.xpose.msra.mxu0 %v104
    %556 = vmatprep.subr.mxu0 0.0
    %557 = vmatpush1.xpose.msra.mxu0 %v103
    %558 = vmatprep.subr.mxu0 0.0
    %559 = vmatpush1.xpose.msra.mxu0 %v102
    %560 = vmatprep.subr.mxu0 0.0
    %561 = vmatpush1.xpose.msra.mxu0 %v101
    %562 = vmatprep.subr.mxu0 0.0
    %563 = vmatpush1.xpose.msra.mxu0 %v100
    %564 = vmatprep.subr.mxu0 0.0
    %565 = vmatpush1.xpose.msra.mxu0 %v99
    %566 = vmatprep.subr.mxu0 0.0
    %567 = vmatpush1.xpose.msra.mxu0 %v98
    %568 = vmatprep.subr.mxu0 0.0
    %569 = vmatpush1.xpose.msra.mxu0 %v97
    %570 = vmatprep.subr.mxu0 0.0
    %571 = vmatpush2.xpose.msra.mxu0 0.0
    %572 = vmatprep.subr.mxu0 0.0
    %573 = vmatpush2.xpose.msra.mxu0 0.0
    %574 = vmatprep.subr.mxu0 0.0
    %575 = vmatpush2.xpose.msra.mxu0 0.0
    %576 = vmatprep.subr.mxu0 0.0
    %577 = vmatpush2.xpose.msra.mxu0 0.0
    %578 = vmatprep.subr.mxu0 0.0
    %579 = vmatpush2.xpose.msra.mxu0 0.0
    %580 = vmatprep.subr.mxu0 0.0
    %581 = vmatpush2.xpose.msra.mxu0 0.0
    %582 = vmatprep.subr.mxu0 0.0
    %583 = vmatpush2.xpose.msra.mxu0 0.0
    %584 = vmatprep.subr.mxu0 0.0
    %585 = vmatpush2.xpose.msra.mxu0 0.0
    %586 = vmatprep.subr.mxu0 0.0
    %587 = vmatpush2.xpose.msra.mxu0 0.0
    %588 = vmatprep.subr.mxu0 0.0
    %589 = vmatpush2.xpose.msra.mxu0 0.0
    %590 = vmatprep.subr.mxu0 0.0
    %591 = vmatpush2.xpose.msra.mxu0 0.0
    %592 = vmatprep.subr.mxu0 0.0
    %593 = vmatpush2.xpose.msra.mxu0 0.0
    %594 = vmatprep.subr.mxu0 0.0
    %595 = vmatpush2.xpose.msra.mxu0 0.0
    %596 = vmatprep.subr.mxu0 0.0
    %597 = vmatpush2.xpose.msra.mxu0 0.0
    %598 = vmatprep.subr.mxu0 0.0
    %599 = vmatpush2.xpose.msra.mxu0 0.0
    %600 = vmatprep.subr.mxu0 0.0
    %601 = vmatpush2.xpose.msra.mxu0 0.0
    %602 = vmatprep.mubr.f32.mxu0 0.0
    %603 = vmatmul.mubr.f32.gmra.mxu0 %v305
    %v604 = vpop.f32.mrf.mxu0
    %v605 = vadd.f32 %v326, %v604
    %v606 = vpop.f32.mrf.mxu0
    %607 = vdwg.mxu0
    %608 = vmatprep.subr.mxu0 0.0
    %609 = vmatpush1.xpose.msra.mxu0 %v128
    %610 = vmatprep.subr.mxu0 0.0
    %611 = vmatpush1.xpose.msra.mxu0 %v127
    %612 = vmatprep.subr.mxu0 0.0
    %613 = vmatpush1.xpose.msra.mxu0 %v126
    %614 = vmatprep.subr.mxu0 0.0
    %615 = vmatpush1.xpose.msra.mxu0 %v125
    %616 = vmatprep.subr.mxu0 0.0
    %617 = vmatpush1.xpose.msra.mxu0 %v124
    %618 = vmatprep.subr.mxu0 0.0
    %619 = vmatpush1.xpose.msra.mxu0 %v123
    %620 = vmatprep.subr.mxu0 0.0
    %621 = vmatpush1.xpose.msra.mxu0 %v122
    %622 = vmatprep.subr.mxu0 0.0
    %623 = vmatpush1.xpose.msra.mxu0 %v121
    %624 = vmatprep.subr.mxu0 0.0
    %625 = vmatpush1.xpose.msra.mxu0 %v120
    %626 = vmatprep.subr.mxu0 0.0
    %627 = vmatpush1.xpose.msra.mxu0 %v119
    %628 = vmatprep.subr.mxu0 0.0
    %629 = vmatpush1.xpose.msra.mxu0 %v118
    %630 = vmatprep.subr.mxu0 0.0
    %631 = vmatpush1.xpose.msra.mxu0 %v117
    %632 = vmatprep.subr.mxu0 0.0
    %633 = vmatpush1.xpose.msra.mxu0 %v116
    %634 = vmatprep.subr.mxu0 0.0
    %635 = vmatpush1.xpose.msra.mxu0 %v115
    %636 = vmatprep.subr.mxu0 0.0
    %637 = vmatpush1.xpose.msra.mxu0 %v114
    %638 = vmatprep.subr.mxu0 0.0
    %639 = vmatpush1.xpose.msra.mxu0 %v113
    %640 = vmatprep.subr.mxu0 0.0
    %641 = vmatpush2.xpose.msra.mxu0 0.0
    %642 = vmatprep.subr.mxu0 0.0
    %643 = vmatpush2.xpose.msra.mxu0 0.0
    %644 = vmatprep.subr.mxu0 0.0
    %645 = vmatpush2.xpose.msra.mxu0 0.0
    %646 = vmatprep.subr.mxu0 0.0
    %647 = vmatpush2.xpose.msra.mxu0 0.0
    %648 = vmatprep.subr.mxu0 0.0
    %649 = vmatpush2.xpose.msra.mxu0 0.0
    %650 = vmatprep.subr.mxu0 0.0
    %651 = vmatpush2.xpose.msra.mxu0 0.0
    %652 = vmatprep.subr.mxu0 0.0
    %653 = vmatpush2.xpose.msra.mxu0 0.0
    %654 = vmatprep.subr.mxu0 0.0
    %655 = vmatpush2.xpose.msra.mxu0 0.0
    %656 = vmatprep.subr.mxu0 0.0
    %657 = vmatpush2.xpose.msra.mxu0 0.0
    %658 = vmatprep.subr.mxu0 0.0
    %659 = vmatpush2.xpose.msra.mxu0 0.0
    %660 = vmatprep.subr.mxu0 0.0
    %661 = vmatpush2.xpose.msra.mxu0 0.0
    %662 = vmatprep.subr.mxu0 0.0
    %663 = vmatpush2.xpose.msra.mxu0 0.0
    %664 = vmatprep.subr.mxu0 0.0
    %665 = vmatpush2.xpose.msra.mxu0 0.0
    %666 = vmatprep.subr.mxu0 0.0
    %667 = vmatpush2.xpose.msra.mxu0 0.0
    %668 = vmatprep.subr.mxu0 0.0
    %669 = vmatpush2.xpose.msra.mxu0 0.0
    %670 = vmatprep.subr.mxu0 0.0
    %671 = vmatpush2.xpose.msra.mxu0 0.0
    %672 = vmatprep.mubr.f32.mxu0 0.0
    %673 = vmatmul.mubr.f32.gmra.mxu0 %v305
    %v674 = vpop.f32.mrf.mxu0
    %v675 = vadd.f32 %v326, %v674
    %v676 = vpop.f32.mrf.mxu0
    %677 = vdwg.mxu0
    %678 = vmatprep.subr.mxu0 0.0
    %679 = vmatpush1.xpose.msra.mxu0 %v144
    %680 = vmatprep.subr.mxu0 0.0
    %681 = vmatpush1.xpose.msra.mxu0 %v143
    %682 = vmatprep.subr.mxu0 0.0
    %683 = vmatpush1.xpose.msra.mxu0 %v142
    %684 = vmatprep.subr.mxu0 0.0
    %685 = vmatpush1.xpose.msra.mxu0 %v141
    %686 = vmatprep.subr.mxu0 0.0
    %687 = vmatpush1.xpose.msra.mxu0 %v140
    %688 = vmatprep.subr.mxu0 0.0
    %689 = vmatpush1.xpose.msra.mxu0 %v139
    %690 = vmatprep.subr.mxu0 0.0
    %691 = vmatpush1.xpose.msra.mxu0 %v138
    %692 = vmatprep.subr.mxu0 0.0
    %693 = vmatpush1.xpose.msra.mxu0 %v137
    %694 = vmatprep.subr.mxu0 0.0
    %695 = vmatpush1.xpose.msra.mxu0 %v136
    %696 = vmatprep.subr.mxu0 0.0
    %697 = vmatpush1.xpose.msra.mxu0 %v135
    %698 = vmatprep.subr.mxu0 0.0
    %699 = vmatpush1.xpose.msra.mxu0 %v134
    %700 = vmatprep.subr.mxu0 0.0
    %701 = vmatpush1.xpose.msra.mxu0 %v133
    %702 = vmatprep.subr.mxu0 0.0
    %703 = vmatpush1.xpose.msra.mxu0 %v132
    %704 = vmatprep.subr.mxu0 0.0
    %705 = vmatpush1.xpose.msra.mxu0 %v131
    %706 = vmatprep.subr.mxu0 0.0
    %707 = vmatpush1.xpose.msra.mxu0 %v130
    %708 = vmatprep.subr.mxu0 0.0
    %709 = vmatpush1.xpose.msra.mxu0 %v129
    %710 = vmatprep.subr.mxu0 0.0
    %711 = vmatpush2.xpose.msra.mxu0 0.0
    %712 = vmatprep.subr.mxu0 0.0
    %713 = vmatpush2.xpose.msra.mxu0 0.0
    %714 = vmatprep.subr.mxu0 0.0
    %715 = vmatpush2.xpose.msra.mxu0 0.0
    %716 = vmatprep.subr.mxu0 0.0
    %717 = vmatpush2.xpose.msra.mxu0 0.0
    %718 = vmatprep.subr.mxu0 0.0
    %719 = vmatpush2.xpose.msra.mxu0 0.0
    %720 = vmatprep.subr.mxu0 0.0
    %721 = vmatpush2.xpose.msra.mxu0 0.0
    %722 = vmatprep.subr.mxu0 0.0
    %723 = vmatpush2.xpose.msra.mxu0 0.0
    %724 = vmatprep.subr.mxu0 0.0
    %725 = vmatpush2.xpose.msra.mxu0 0.0
    %726 = vmatprep.subr.mxu0 0.0
    %727 = vmatpush2.xpose.msra.mxu0 0.0
    %728 = vmatprep.subr.mxu0 0.0
    %729 = vmatpush2.xpose.msra.mxu0 0.0
    %730 = vmatprep.subr.mxu0 0.0
    %731 = vmatpush2.xpose.msra.mxu0 0.0
    %732 = vmatprep.subr.mxu0 0.0
    %733 = vmatpush2.xpose.msra.mxu0 0.0
    %734 = vmatprep.subr.mxu0 0.0
    %735 = vmatpush2.xpose.msra.mxu0 0.0
    %736 = vmatprep.subr.mxu0 0.0
    %737 = vmatpush2.xpose.msra.mxu0 0.0
    %738 = vmatprep.subr.mxu0 0.0
    %739 = vmatpush2.xpose.msra.mxu0 0.0
    %740 = vmatprep.subr.mxu0 0.0
    %741 = vmatpush2.xpose.msra.mxu0 0.0
    %742 = vmatprep.mubr.f32.mxu0 0.0
    %743 = vmatmul.mubr.f32.gmra.mxu0 %v305
    %v744 = vpop.f32.mrf.mxu0
    %v745 = vadd.f32 %v326, %v744
    %v746 = vpop.f32.mrf.mxu0
    %747 = vdwg.mxu0
    %748 = vmatprep.subr.mxu0 0.0
    %749 = vmatpush1.xpose.msra.mxu0 %v160
    %750 = vmatprep.subr.mxu0 0.0
    %751 = vmatpush1.xpose.msra.mxu0 %v159
    %752 = vmatprep.subr.mxu0 0.0
    %753 = vmatpush1.xpose.msra.mxu0 %v158
    %754 = vmatprep.subr.mxu0 0.0
    %755 = vmatpush1.xpose.msra.mxu0 %v157
    %756 = vmatprep.subr.mxu0 0.0
    %757 = vmatpush1.xpose.msra.mxu0 %v156
    %758 = vmatprep.subr.mxu0 0.0
    %759 = vmatpush1.xpose.msra.mxu0 %v155
    %760 = vmatprep.subr.mxu0 0.0
    %761 = vmatpush1.xpose.msra.mxu0 %v154
    %762 = vmatprep.subr.mxu0 0.0
    %763 = vmatpush1.xpose.msra.mxu0 %v153
    %764 = vmatprep.subr.mxu0 0.0
    %765 = vmatpush1.xpose.msra.mxu0 %v152
    %766 = vmatprep.subr.mxu0 0.0
    %767 = vmatpush1.xpose.msra.mxu0 %v151
    %768 = vmatprep.subr.mxu0 0.0
    %769 = vmatpush1.xpose.msra.mxu0 %v150
    %770 = vmatprep.subr.mxu0 0.0
    %771 = vmatpush1.xpose.msra.mxu0 %v149
    %772 = vmatprep.subr.mxu0 0.0
    %773 = vmatpush1.xpose.msra.mxu0 %v148
    %774 = vmatprep.subr.mxu0 0.0
    %775 = vmatpush1.xpose.msra.mxu0 %v147
    %776 = vmatprep.subr.mxu0 0.0
    %777 = vmatpush1.xpose.msra.mxu0 %v146
    %778 = vmatprep.subr.mxu0 0.0
    %779 = vmatpush1.xpose.msra.mxu0 %v145
    %780 = vmatprep.subr.mxu0 0.0
    %781 = vmatpush2.xpose.msra.mxu0 0.0
    %782 = vmatprep.subr.mxu0 0.0
    %783 = vmatpush2.xpose.msra.mxu0 0.0
    %784 = vmatprep.subr.mxu0 0.0
    %785 = vmatpush2.xpose.msra.mxu0 0.0
    %786 = vmatprep.subr.mxu0 0.0
    %787 = vmatpush2.xpose.msra.mxu0 0.0
    %788 = vmatprep.subr.mxu0 0.0
    %789 = vmatpush2.xpose.msra.mxu0 0.0
    %790 = vmatprep.subr.mxu0 0.0
    %791 = vmatpush2.xpose.msra.mxu0 0.0
    %792 = vmatprep.subr.mxu0 0.0
    %793 = vmatpush2.xpose.msra.mxu0 0.0
    %794 = vmatprep.subr.mxu0 0.0
    %795 = vmatpush2.xpose.msra.mxu0 0.0
    %796 = vmatprep.subr.mxu0 0.0
    %797 = vmatpush2.xpose.msra.mxu0 0.0
    %798 = vmatprep.subr.mxu0 0.0
    %799 = vmatpush2.xpose.msra.mxu0 0.0
    %800 = vmatprep.subr.mxu0 0.0
    %801 = vmatpush2.xpose.msra.mxu0 0.0
    %802 = vmatprep.subr.mxu0 0.0
    %803 = vmatpush2.xpose.msra.mxu0 0.0
    %804 = vmatprep.subr.mxu0 0.0
    %805 = vmatpush2.xpose.msra.mxu0 0.0
    %806 = vmatprep.subr.mxu0 0.0
    %807 = vmatpush2.xpose.msra.mxu0 0.0
    %808 = vmatprep.subr.mxu0 0.0
    %809 = vmatpush2.xpose.msra.mxu0 0.0
    %810 = vmatprep.subr.mxu0 0.0
    %811 = vmatpush2.xpose.msra.mxu0 0.0
    %812 = vmatprep.mubr.f32.mxu0 0.0
    %813 = vmatmul.mubr.f32.gmra.mxu0 %v305
    %v814 = vpop.f32.mrf.mxu0
    %v815 = vadd.f32 %v326, %v814
    %v816 = vpop.f32.mrf.mxu0
    %817 = vdwg.mxu0
    %818 = vmatprep.subr.mxu0 0.0
    %819 = vmatpush1.xpose.msra.mxu0 %v176
    %820 = vmatprep.subr.mxu0 0.0
    %821 = vmatpush1.xpose.msra.mxu0 %v175
    %822 = vmatprep.subr.mxu0 0.0
    %823 = vmatpush1.xpose.msra.mxu0 %v174
    %824 = vmatprep.subr.mxu0 0.0
    %825 = vmatpush1.xpose.msra.mxu0 %v173
    %826 = vmatprep.subr.mxu0 0.0
    %827 = vmatpush1.xpose.msra.mxu0 %v172
    %828 = vmatprep.subr.mxu0 0.0
    %829 = vmatpush1.xpose.msra.mxu0 %v171
    %830 = vmatprep.subr.mxu0 0.0
    %831 = vmatpush1.xpose.msra.mxu0 %v170
    %832 = vmatprep.subr.mxu0 0.0
    %833 = vmatpush1.xpose.msra.mxu0 %v169
    %834 = vmatprep.subr.mxu0 0.0
    %835 = vmatpush1.xpose.msra.mxu0 %v168
    %836 = vmatprep.subr.mxu0 0.0
    %837 = vmatpush1.xpose.msra.mxu0 %v167
    %838 = vmatprep.subr.mxu0 0.0
    %839 = vmatpush1.xpose.msra.mxu0 %v166
    %840 = vmatprep.subr.mxu0 0.0
    %841 = vmatpush1.xpose.msra.mxu0 %v165
    %842 = vmatprep.subr.mxu0 0.0
    %843 = vmatpush1.xpose.msra.mxu0 %v164
    %844 = vmatprep.subr.mxu0 0.0
    %845 = vmatpush1.xpose.msra.mxu0 %v163
    %846 = vmatprep.subr.mxu0 0.0
    %847 = vmatpush1.xpose.msra.mxu0 %v162
    %848 = vmatprep.subr.mxu0 0.0
    %849 = vmatpush1.xpose.msra.mxu0 %v161
    %850 = vmatprep.subr.mxu0 0.0
    %851 = vmatpush2.xpose.msra.mxu0 0.0
    %852 = vmatprep.subr.mxu0 0.0
    %853 = vmatpush2.xpose.msra.mxu0 0.0
    %854 = vmatprep.subr.mxu0 0.0
    %855 = vmatpush2.xpose.msra.mxu0 0.0
    %856 = vmatprep.subr.mxu0 0.0
    %857 = vmatpush2.xpose.msra.mxu0 0.0
    %858 = vmatprep.subr.mxu0 0.0
    %859 = vmatpush2.xpose.msra.mxu0 0.0
    %860 = vmatprep.subr.mxu0 0.0
    %861 = vmatpush2.xpose.msra.mxu0 0.0
    %862 = vmatprep.subr.mxu0 0.0
    %863 = vmatpush2.xpose.msra.mxu0 0.0
    %864 = vmatprep.subr.mxu0 0.0
    %865 = vmatpush2.xpose.msra.mxu0 0.0
    %866 = vmatprep.subr.mxu0 0.0
    %867 = vmatpush2.xpose.msra.mxu0 0.0
    %868 = vmatprep.subr.mxu0 0.0
    %869 = vmatpush2.xpose.msra.mxu0 0.0
    %870 = vmatprep.subr.mxu0 0.0
    %871 = vmatpush2.xpose.msra.mxu0 0.0
    %872 = vmatprep.subr.mxu0 0.0
    %873 = vmatpush2.xpose.msra.mxu0 0.0
    %874 = vmatprep.subr.mxu0 0.0
    %875 = vmatpush2.xpose.msra.mxu0 0.0
    %876 = vmatprep.subr.mxu0 0.0
    %877 = vmatpush2.xpose.msra.mxu0 0.0
    %878 = vmatprep.subr.mxu0 0.0
    %879 = vmatpush2.xpose.msra.mxu0 0.0
    %880 = vmatprep.subr.mxu0 0.0
    %881 = vmatpush2.xpose.msra.mxu0 0.0
    %882 = vmatprep.mubr.f32.mxu0 0.0
    %883 = vmatmul.mubr.f32.gmra.mxu0 %v305
    %v884 = vpop.f32.mrf.mxu0
    %v885 = vadd.f32 %v326, %v884
    %v886 = vpop.f32.mrf.mxu0
    %887 = vdwg.mxu0
    %888 = vmatprep.subr.mxu0 0.0
    %889 = vmatpush1.xpose.msra.mxu0 %v192
    %890 = vmatprep.subr.mxu0 0.0
    %891 = vmatpush1.xpose.msra.mxu0 %v191
    %892 = vmatprep.subr.mxu0 0.0
    %893 = vmatpush1.xpose.msra.mxu0 %v190
    %894 = vmatprep.subr.mxu0 0.0
    %895 = vmatpush1.xpose.msra.mxu0 %v189
    %896 = vmatprep.subr.mxu0 0.0
    %897 = vmatpush1.xpose.msra.mxu0 %v188
    %898 = vmatprep.subr.mxu0 0.0
    %899 = vmatpush1.xpose.msra.mxu0 %v187
    %900 = vmatprep.subr.mxu0 0.0
    %901 = vmatpush1.xpose.msra.mxu0 %v186
    %902 = vmatprep.subr.mxu0 0.0
    %903 = vmatpush1.xpose.msra.mxu0 %v185
    %904 = vmatprep.subr.mxu0 0.0
    %905 = vmatpush1.xpose.msra.mxu0 %v184
    %906 = vmatprep.subr.mxu0 0.0
    %907 = vmatpush1.xpose.msra.mxu0 %v183
    %908 = vmatprep.subr.mxu0 0.0
    %909 = vmatpush1.xpose.msra.mxu0 %v182
    %910 = vmatprep.subr.mxu0 0.0
    %911 = vmatpush1.xpose.msra.mxu0 %v181
    %912 = vmatprep.subr.mxu0 0.0
    %913 = vmatpush1.xpose.msra.mxu0 %v180
    %914 = vmatprep.subr.mxu0 0.0
    %915 = vmatpush1.xpose.msra.mxu0 %v179
    %916 = vmatprep.subr.mxu0 0.0
    %917 = vmatpush1.xpose.msra.mxu0 %v178
    %918 = vmatprep.subr.mxu0 0.0
    %919 = vmatpush1.xpose.msra.mxu0 %v177
    %920 = vmatprep.subr.mxu0 0.0
    %921 = vmatpush2.xpose.msra.mxu0 0.0
    %922 = vmatprep.subr.mxu0 0.0
    %923 = vmatpush2.xpose.msra.mxu0 0.0
    %924 = vmatprep.subr.mxu0 0.0
    %925 = vmatpush2.xpose.msra.mxu0 0.0
    %926 = vmatprep.subr.mxu0 0.0
    %927 = vmatpush2.xpose.msra.mxu0 0.0
    %928 = vmatprep.subr.mxu0 0.0
    %929 = vmatpush2.xpose.msra.mxu0 0.0
    %930 = vmatprep.subr.mxu0 0.0
    %931 = vmatpush2.xpose.msra.mxu0 0.0
    %932 = vmatprep.subr.mxu0 0.0
    %933 = vmatpush2.xpose.msra.mxu0 0.0
    %934 = vmatprep.subr.mxu0 0.0
    %935 = vmatpush2.xpose.msra.mxu0 0.0
    %936 = vmatprep.subr.mxu0 0.0
    %937 = vmatpush2.xpose.msra.mxu0 0.0
    %938 = vmatprep.subr.mxu0 0.0
    %939 = vmatpush2.xpose.msra.mxu0 0.0
    %940 = vmatprep.subr.mxu0 0.0
    %941 = vmatpush2.xpose.msra.mxu0 0.0
    %942 = vmatprep.subr.mxu0 0.0
    %943 = vmatpush2.xpose.msra.mxu0 0.0
    %944 = vmatprep.subr.mxu0 0.0
    %945 = vmatpush2.xpose.msra.mxu0 0.0
    %946 = vmatprep.subr.mxu0 0.0
    %947 = vmatpush2.xpose.msra.mxu0 0.0
    %948 = vmatprep.subr.mxu0 0.0
    %949 = vmatpush2.xpose.msra.mxu0 0.0
    %950 = vmatprep.subr.mxu0 0.0
    %951 = vmatpush2.xpose.msra.mxu0 0.0
    %952 = vmatprep.mubr.f32.mxu0 0.0
    %953 = vmatmul.mubr.f32.gmra.mxu0 %v305
    %v954 = vpop.f32.mrf.mxu0
    %v955 = vadd.f32 %v326, %v954
    %v956 = vpop.f32.mrf.mxu0
    %957 = vdwg.mxu0
    %958 = vmatprep.subr.mxu0 0.0
    %959 = vmatpush1.xpose.msra.mxu0 %v208
    %960 = vmatprep.subr.mxu0 0.0
    %961 = vmatpush1.xpose.msra.mxu0 %v207
    %962 = vmatprep.subr.mxu0 0.0
    %963 = vmatpush1.xpose.msra.mxu0 %v206
    %964 = vmatprep.subr.mxu0 0.0
    %965 = vmatpush1.xpose.msra.mxu0 %v205
    %966 = vmatprep.subr.mxu0 0.0
    %967 = vmatpush1.xpose.msra.mxu0 %v204
    %968 = vmatprep.subr.mxu0 0.0
    %969 = vmatpush1.xpose.msra.mxu0 %v203
    %970 = vmatprep.subr.mxu0 0.0
    %971 = vmatpush1.xpose.msra.mxu0 %v202
    %972 = vmatprep.subr.mxu0 0.0
    %973 = vmatpush1.xpose.msra.mxu0 %v201
    %974 = vmatprep.subr.mxu0 0.0
    %975 = vmatpush1.xpose.msra.mxu0 %v200
    %976 = vmatprep.subr.mxu0 0.0
    %977 = vmatpush1.xpose.msra.mxu0 %v199
    %978 = vmatprep.subr.mxu0 0.0
    %979 = vmatpush1.xpose.msra.mxu0 %v198
    %980 = vmatprep.subr.mxu0 0.0
    %981 = vmatpush1.xpose.msra.mxu0 %v197
    %982 = vmatprep.subr.mxu0 0.0
    %983 = vmatpush1.xpose.msra.mxu0 %v196
    %984 = vmatprep.subr.mxu0 0.0
    %985 = vmatpush1.xpose.msra.mxu0 %v195
    %986 = vmatprep.subr.mxu0 0.0
    %987 = vmatpush1.xpose.msra.mxu0 %v194
    %988 = vmatprep.subr.mxu0 0.0
    %989 = vmatpush1.xpose.msra.mxu0 %v193
    %990 = vmatprep.subr.mxu0 0.0
    %991 = vmatpush2.xpose.msra.mxu0 0.0
    %992 = vmatprep.subr.mxu0 0.0
    %993 = vmatpush2.xpose.msra.mxu0 0.0
    %994 = vmatprep.subr.mxu0 0.0
    %995 = vmatpush2.xpose.msra.mxu0 0.0
    %996 = vmatprep.subr.mxu0 0.0
    %997 = vmatpush2.xpose.msra.mxu0 0.0
    %998 = vmatprep.subr.mxu0 0.0
    %999 = vmatpush2.xpose.msra.mxu0 0.0
    %1000 = vmatprep.subr.mxu0 0.0
    %1001 = vmatpush2.xpose.msra.mxu0 0.0
    %1002 = vmatprep.subr.mxu0 0.0
    %1003 = vmatpush2.xpose.msra.mxu0 0.0
    %1004 = vmatprep.subr.mxu0 0.0
    %1005 = vmatpush2.xpose.msra.mxu0 0.0
    %1006 = vmatprep.subr.mxu0 0.0
    %1007 = vmatpush2.xpose.msra.mxu0 0.0
    %1008 = vmatprep.subr.mxu0 0.0
    %1009 = vmatpush2.xpose.msra.mxu0 0.0
    %1010 = vmatprep.subr.mxu0 0.0
    %1011 = vmatpush2.xpose.msra.mxu0 0.0
    %1012 = vmatprep.subr.mxu0 0.0
    %1013 = vmatpush2.xpose.msra.mxu0 0.0
    %1014 = vmatprep.subr.mxu0 0.0
    %1015 = vmatpush2.xpose.msra.mxu0 0.0
    %1016 = vmatprep.subr.mxu0 0.0
    %1017 = vmatpush2.xpose.msra.mxu0 0.0
    %1018 = vmatprep.subr.mxu0 0.0
    %1019 = vmatpush2.xpose.msra.mxu0 0.0
    %1020 = vmatprep.subr.mxu0 0.0
    %1021 = vmatpush2.xpose.msra.mxu0 0.0
    %1022 = vmatprep.mubr.f32.mxu0 0.0
    %1023 = vmatmul.mubr.f32.gmra.mxu0 %v305
    %v1024 = vpop.f32.mrf.mxu0
    %v1025 = vadd.f32 %v326, %v1024
    %v1026 = vpop.f32.mrf.mxu0
    %1027 = vdwg.mxu0
    %1028 = vmatprep.subr.mxu0 0.0
    %1029 = vmatpush1.xpose.msra.mxu0 %v224
    %1030 = vmatprep.subr.mxu0 0.0
    %1031 = vmatpush1.xpose.msra.mxu0 %v223
    %1032 = vmatprep.subr.mxu0 0.0
    %1033 = vmatpush1.xpose.msra.mxu0 %v222
    %1034 = vmatprep.subr.mxu0 0.0
    %1035 = vmatpush1.xpose.msra.mxu0 %v221
    %1036 = vmatprep.subr.mxu0 0.0
    %1037 = vmatpush1.xpose.msra.mxu0 %v220
    %1038 = vmatprep.subr.mxu0 0.0
    %1039 = vmatpush1.xpose.msra.mxu0 %v219
    %1040 = vmatprep.subr.mxu0 0.0
    %1041 = vmatpush1.xpose.msra.mxu0 %v218
    %1042 = vmatprep.subr.mxu0 0.0
    %1043 = vmatpush1.xpose.msra.mxu0 %v217
    %1044 = vmatprep.subr.mxu0 0.0
    %1045 = vmatpush1.xpose.msra.mxu0 %v216
    %1046 = vmatprep.subr.mxu0 0.0
    %1047 = vmatpush1.xpose.msra.mxu0 %v215
    %1048 = vmatprep.subr.mxu0 0.0
    %1049 = vmatpush1.xpose.msra.mxu0 %v214
    %1050 = vmatprep.subr.mxu0 0.0
    %1051 = vmatpush1.xpose.msra.mxu0 %v213
    %1052 = vmatprep.subr.mxu0 0.0
    %1053 = vmatpush1.xpose.msra.mxu0 %v212
    %1054 = vmatprep.subr.mxu0 0.0
    %1055 = vmatpush1.xpose.msra.mxu0 %v211
    %1056 = vmatprep.subr.mxu0 0.0
    %1057 = vmatpush1.xpose.msra.mxu0 %v210
    %1058 = vmatprep.subr.mxu0 0.0
    %1059 = vmatpush1.xpose.msra.mxu0 %v209
    %1060 = vmatprep.subr.mxu0 0.0
    %1061 = vmatpush2.xpose.msra.mxu0 0.0
    %1062 = vmatprep.subr.mxu0 0.0
    %1063 = vmatpush2.xpose.msra.mxu0 0.0
    %1064 = vmatprep.subr.mxu0 0.0
    %1065 = vmatpush2.xpose.msra.mxu0 0.0
    %1066 = vmatprep.subr.mxu0 0.0
    %1067 = vmatpush2.xpose.msra.mxu0 0.0
    %1068 = vmatprep.subr.mxu0 0.0
    %1069 = vmatpush2.xpose.msra.mxu0 0.0
    %1070 = vmatprep.subr.mxu0 0.0
    %1071 = vmatpush2.xpose.msra.mxu0 0.0
    %1072 = vmatprep.subr.mxu0 0.0
    %1073 = vmatpush2.xpose.msra.mxu0 0.0
    %1074 = vmatprep.subr.mxu0 0.0
    %1075 = vmatpush2.xpose.msra.mxu0 0.0
    %1076 = vmatprep.subr.mxu0 0.0
    %1077 = vmatpush2.xpose.msra.mxu0 0.0
    %1078 = vmatprep.subr.mxu0 0.0
    %1079 = vmatpush2.xpose.msra.mxu0 0.0
    %1080 = vmatprep.subr.mxu0 0.0
    %1081 = vmatpush2.xpose.msra.mxu0 0.0
    %1082 = vmatprep.subr.mxu0 0.0
    %1083 = vmatpush2.xpose.msra.mxu0 0.0
    %1084 = vmatprep.subr.mxu0 0.0
    %1085 = vmatpush2.xpose.msra.mxu0 0.0
    %1086 = vmatprep.subr.mxu0 0.0
    %1087 = vmatpush2.xpose.msra.mxu0 0.0
    %1088 = vmatprep.subr.mxu0 0.0
    %1089 = vmatpush2.xpose.msra.mxu0 0.0
    %1090 = vmatprep.subr.mxu0 0.0
    %1091 = vmatpush2.xpose.msra.mxu0 0.0
    %1092 = vmatprep.mubr.f32.mxu0 0.0
    %1093 = vmatmul.mubr.f32.gmra.mxu0 %v305
    %v1094 = vpop.f32.mrf.mxu0
    %v1095 = vadd.f32 %v326, %v1094
    %v1096 = vpop.f32.mrf.mxu0
    %1097 = vdwg.mxu0
    %1098 = vmatprep.subr.mxu0 0.0
    %1099 = vmatpush1.xpose.msra.mxu0 %v240
    %1100 = vmatprep.subr.mxu0 0.0
    %1101 = vmatpush1.xpose.msra.mxu0 %v239
    %1102 = vmatprep.subr.mxu0 0.0
    %1103 = vmatpush1.xpose.msra.mxu0 %v238
    %1104 = vmatprep.subr.mxu0 0.0
    %1105 = vmatpush1.xpose.msra.mxu0 %v237
    %1106 = vmatprep.subr.mxu0 0.0
    %1107 = vmatpush1.xpose.msra.mxu0 %v236
    %1108 = vmatprep.subr.mxu0 0.0
    %1109 = vmatpush1.xpose.msra.mxu0 %v235
    %1110 = vmatprep.subr.mxu0 0.0
    %1111 = vmatpush1.xpose.msra.mxu0 %v234
    %1112 = vmatprep.subr.mxu0 0.0
    %1113 = vmatpush1.xpose.msra.mxu0 %v233
    %1114 = vmatprep.subr.mxu0 0.0
    %1115 = vmatpush1.xpose.msra.mxu0 %v232
    %1116 = vmatprep.subr.mxu0 0.0
    %1117 = vmatpush1.xpose.msra.mxu0 %v231
    %1118 = vmatprep.subr.mxu0 0.0
    %1119 = vmatpush1.xpose.msra.mxu0 %v230
    %1120 = vmatprep.subr.mxu0 0.0
    %1121 = vmatpush1.xpose.msra.mxu0 %v229
    %1122 = vmatprep.subr.mxu0 0.0
    %1123 = vmatpush1.xpose.msra.mxu0 %v228
    %1124 = vmatprep.subr.mxu0 0.0
    %1125 = vmatpush1.xpose.msra.mxu0 %v227
    %1126 = vmatprep.subr.mxu0 0.0
    %1127 = vmatpush1.xpose.msra.mxu0 %v226
    %1128 = vmatprep.subr.mxu0 0.0
    %1129 = vmatpush1.xpose.msra.mxu0 %v225
    %1130 = vmatprep.subr.mxu0 0.0
    %1131 = vmatpush2.xpose.msra.mxu0 0.0
    %1132 = vmatprep.subr.mxu0 0.0
    %1133 = vmatpush2.xpose.msra.mxu0 0.0
    %1134 = vmatprep.subr.mxu0 0.0
    %1135 = vmatpush2.xpose.msra.mxu0 0.0
    %1136 = vmatprep.subr.mxu0 0.0
    %1137 = vmatpush2.xpose.msra.mxu0 0.0
    %1138 = vmatprep.subr.mxu0 0.0
    %1139 = vmatpush2.xpose.msra.mxu0 0.0
    %1140 = vmatprep.subr.mxu0 0.0
    %1141 = vmatpush2.xpose.msra.mxu0 0.0
    %1142 = vmatprep.subr.mxu0 0.0
    %1143 = vmatpush2.xpose.msra.mxu0 0.0
    %1144 = vmatprep.subr.mxu0 0.0
    %1145 = vmatpush2.xpose.msra.mxu0 0.0
    %1146 = vmatprep.subr.mxu0 0.0
    %1147 = vmatpush2.xpose.msra.mxu0 0.0
    %1148 = vmatprep.subr.mxu0 0.0
    %1149 = vmatpush2.xpose.msra.mxu0 0.0
    %1150 = vmatprep.subr.mxu0 0.0
    %1151 = vmatpush2.xpose.msra.mxu0 0.0
    %1152 = vmatprep.subr.mxu0 0.0
    %1153 = vmatpush2.xpose.msra.mxu0 0.0
    %1154 = vmatprep.subr.mxu0 0.0
    %1155 = vmatpush2.xpose.msra.mxu0 0.0
    %1156 = vmatprep.subr.mxu0 0.0
    %1157 = vmatpush2.xpose.msra.mxu0 0.0
    %1158 = vmatprep.subr.mxu0 0.0
    %1159 = vmatpush2.xpose.msra.mxu0 0.0
    %1160 = vmatprep.subr.mxu0 0.0
    %1161 = vmatpush2.xpose.msra.mxu0 0.0
    %1162 = vmatprep.mubr.f32.mxu0 0.0
    %1163 = vmatmul.mubr.f32.gmra.mxu0 %v305
    %v1164 = vpop.f32.mrf.mxu0
    %v1165 = vadd.f32 %v326, %v1164
    %v1166 = vpop.f32.mrf.mxu0
    %1167 = vdwg.mxu0
    %1168 = vmatprep.subr.mxu0 0.0
    %1169 = vmatpush1.xpose.msra.mxu0 %v256
    %1170 = vmatprep.subr.mxu0 0.0
    %1171 = vmatpush1.xpose.msra.mxu0 %v255
    %1172 = vmatprep.subr.mxu0 0.0
    %1173 = vmatpush1.xpose.msra.mxu0 %v254
    %1174 = vmatprep.subr.mxu0 0.0
    %1175 = vmatpush1.xpose.msra.mxu0 %v253
    %1176 = vmatprep.subr.mxu0 0.0
    %1177 = vmatpush1.xpose.msra.mxu0 %v252
    %1178 = vmatprep.subr.mxu0 0.0
    %1179 = vmatpush1.xpose.msra.mxu0 %v251
    %1180 = vmatprep.subr.mxu0 0.0
    %1181 = vmatpush1.xpose.msra.mxu0 %v250
    %1182 = vmatprep.subr.mxu0 0.0
    %1183 = vmatpush1.xpose.msra.mxu0 %v249
    %1184 = vmatprep.subr.mxu0 0.0
    %1185 = vmatpush1.xpose.msra.mxu0 %v248
    %1186 = vmatprep.subr.mxu0 0.0
    %1187 = vmatpush1.xpose.msra.mxu0 %v247
    %1188 = vmatprep.subr.mxu0 0.0
    %1189 = vmatpush1.xpose.msra.mxu0 %v246
    %1190 = vmatprep.subr.mxu0 0.0
    %1191 = vmatpush1.xpose.msra.mxu0 %v245
    %1192 = vmatprep.subr.mxu0 0.0
    %1193 = vmatpush1.xpose.msra.mxu0 %v244
    %1194 = vmatprep.subr.mxu0 0.0
    %1195 = vmatpush1.xpose.msra.mxu0 %v243
    %1196 = vmatprep.subr.mxu0 0.0
    %1197 = vmatpush1.xpose.msra.mxu0 %v242
    %1198 = vmatprep.subr.mxu0 0.0
    %1199 = vmatpush1.xpose.msra.mxu0 %v241
    %1200 = vmatprep.subr.mxu0 0.0
    %1201 = vmatpush2.xpose.msra.mxu0 0.0
    %1202 = vmatprep.subr.mxu0 0.0
    %1203 = vmatpush2.xpose.msra.mxu0 0.0
    %1204 = vmatprep.subr.mxu0 0.0
    %1205 = vmatpush2.xpose.msra.mxu0 0.0
    %1206 = vmatprep.subr.mxu0 0.0
    %1207 = vmatpush2.xpose.msra.mxu0 0.0
    %1208 = vmatprep.subr.mxu0 0.0
    %1209 = vmatpush2.xpose.msra.mxu0 0.0
    %1210 = vmatprep.subr.mxu0 0.0
    %1211 = vmatpush2.xpose.msra.mxu0 0.0
    %1212 = vmatprep.subr.mxu0 0.0
    %1213 = vmatpush2.xpose.msra.mxu0 0.0
    %1214 = vmatprep.subr.mxu0 0.0
    %1215 = vmatpush2.xpose.msra.mxu0 0.0
    %1216 = vmatprep.subr.mxu0 0.0
    %1217 = vmatpush2.xpose.msra.mxu0 0.0
    %1218 = vmatprep.subr.mxu0 0.0
    %1219 = vmatpush2.xpose.msra.mxu0 0.0
    %1220 = vmatprep.subr.mxu0 0.0
    %1221 = vmatpush2.xpose.msra.mxu0 0.0
    %1222 = vmatprep.subr.mxu0 0.0
    %1223 = vmatpush2.xpose.msra.mxu0 0.0
    %1224 = vmatprep.subr.mxu0 0.0
    %1225 = vmatpush2.xpose.msra.mxu0 0.0
    %1226 = vmatprep.subr.mxu0 0.0
    %1227 = vmatpush2.xpose.msra.mxu0 0.0
    %1228 = vmatprep.subr.mxu0 0.0
    %1229 = vmatpush2.xpose.msra.mxu0 0.0
    %1230 = vmatprep.subr.mxu0 0.0
    %1231 = vmatpush2.xpose.msra.mxu0 0.0
    %1232 = vmatprep.mubr.f32.mxu0 0.0
    %1233 = vmatmul.mubr.f32.gmra.mxu0 %v305
    %v1234 = vpop.f32.mrf.mxu0
    %v1235 = vadd.f32 %v326, %v1234
    %v1236 = vpop.f32.mrf.mxu0
    %1237 = vdwg.mxu0
    %1238 = vmatprep.subr.mxu0 0.0
    %1239 = vmatpush1.xpose.msra.mxu0 %v272
    %1240 = vmatprep.subr.mxu0 0.0
    %1241 = vmatpush1.xpose.msra.mxu0 %v271
    %1242 = vmatprep.subr.mxu0 0.0
    %1243 = vmatpush1.xpose.msra.mxu0 %v270
    %1244 = vmatprep.subr.mxu0 0.0
    %1245 = vmatpush1.xpose.msra.mxu0 %v269
    %1246 = vmatprep.subr.mxu0 0.0
    %1247 = vmatpush1.xpose.msra.mxu0 %v268
    %1248 = vmatprep.subr.mxu0 0.0
    %1249 = vmatpush1.xpose.msra.mxu0 %v267
    %1250 = vmatprep.subr.mxu0 0.0
    %1251 = vmatpush1.xpose.msra.mxu0 %v266
    %1252 = vmatprep.subr.mxu0 0.0
    %1253 = vmatpush1.xpose.msra.mxu0 %v265
    %1254 = vmatprep.subr.mxu0 0.0
    %1255 = vmatpush1.xpose.msra.mxu0 %v264
    %1256 = vmatprep.subr.mxu0 0.0
    %1257 = vmatpush1.xpose.msra.mxu0 %v263
    %1258 = vmatprep.subr.mxu0 0.0
    %1259 = vmatpush1.xpose.msra.mxu0 %v262
    %1260 = vmatprep.subr.mxu0 0.0
    %1261 = vmatpush1.xpose.msra.mxu0 %v261
    %1262 = vmatprep.subr.mxu0 0.0
    %1263 = vmatpush1.xpose.msra.mxu0 %v260
    %1264 = vmatprep.subr.mxu0 0.0
    %1265 = vmatpush1.xpose.msra.mxu0 %v259
    %1266 = vmatprep.subr.mxu0 0.0
    %1267 = vmatpush1.xpose.msra.mxu0 %v258
    %1268 = vmatprep.subr.mxu0 0.0
    %1269 = vmatpush1.xpose.msra.mxu0 %v257
    %1270 = vmatprep.subr.mxu0 0.0
    %1271 = vmatpush2.xpose.msra.mxu0 0.0
    %1272 = vmatprep.subr.mxu0 0.0
    %1273 = vmatpush2.xpose.msra.mxu0 0.0
    %1274 = vmatprep.subr.mxu0 0.0
    %1275 = vmatpush2.xpose.msra.mxu0 0.0
    %1276 = vmatprep.subr.mxu0 0.0
    %1277 = vmatpush2.xpose.msra.mxu0 0.0
    %1278 = vmatprep.subr.mxu0 0.0
    %1279 = vmatpush2.xpose.msra.mxu0 0.0
    %1280 = vmatprep.subr.mxu0 0.0
    %1281 = vmatpush2.xpose.msra.mxu0 0.0
    %1282 = vmatprep.subr.mxu0 0.0
    %1283 = vmatpush2.xpose.msra.mxu0 0.0
    %1284 = vmatprep.subr.mxu0 0.0
    %1285 = vmatpush2.xpose.msra.mxu0 0.0
    %1286 = vmatprep.subr.mxu0 0.0
    %1287 = vmatpush2.xpose.msra.mxu0 0.0
    %1288 = vmatprep.subr.mxu0 0.0
    %1289 = vmatpush2.xpose.msra.mxu0 0.0
    %1290 = vmatprep.subr.mxu0 0.0
    %1291 = vmatpush2.xpose.msra.mxu0 0.0
    %1292 = vmatprep.subr.mxu0 0.0
    %1293 = vmatpush2.xpose.msra.mxu0 0.0
    %1294 = vmatprep.subr.mxu0 0.0
    %1295 = vmatpush2.xpose.msra.mxu0 0.0
    %1296 = vmatprep.subr.mxu0 0.0
    %1297 = vmatpush2.xpose.msra.mxu0 0.0
    %1298 = vmatprep.subr.mxu0 0.0
    %1299 = vmatpush2.xpose.msra.mxu0 0.0
    %1300 = vmatprep.subr.mxu0 0.0
    %1301 = vmatpush2.xpose.msra.mxu0 0.0
    %1302 = vmatprep.mubr.f32.mxu0 0.0
    %1303 = vmatmul.mubr.f32.gmra.mxu0 %v305
    %v1304 = vpop.f32.mrf.mxu0
    %v1305 = vadd.f32 %v326, %v1304
    %v1306 = vpop.f32.mrf.mxu0
    %1307 = vdwg.mxu0
    %1308 = vmatprep.subr.mxu0 0.0
    %1309 = vmatpush1.xpose.msra.mxu0 %v288
    %1310 = vmatprep.subr.mxu0 0.0
    %1311 = vmatpush1.xpose.msra.mxu0 %v287
    %1312 = vmatprep.subr.mxu0 0.0
    %1313 = vmatpush1.xpose.msra.mxu0 %v286
    %1314 = vmatprep.subr.mxu0 0.0
    %1315 = vmatpush1.xpose.msra.mxu0 %v285
    %1316 = vmatprep.subr.mxu0 0.0
    %1317 = vmatpush1.xpose.msra.mxu0 %v284
    %1318 = vmatprep.subr.mxu0 0.0
    %1319 = vmatpush1.xpose.msra.mxu0 %v283
    %1320 = vmatprep.subr.mxu0 0.0
    %1321 = vmatpush1.xpose.msra.mxu0 %v282
    %1322 = vmatprep.subr.mxu0 0.0
    %1323 = vmatpush1.xpose.msra.mxu0 %v281
    %1324 = vmatprep.subr.mxu0 0.0
    %1325 = vmatpush1.xpose.msra.mxu0 %v280
    %1326 = vmatprep.subr.mxu0 0.0
    %1327 = vmatpush1.xpose.msra.mxu0 %v279
    %1328 = vmatprep.subr.mxu0 0.0
    %1329 = vmatpush1.xpose.msra.mxu0 %v278
    %1330 = vmatprep.subr.mxu0 0.0
    %1331 = vmatpush1.xpose.msra.mxu0 %v277
    %1332 = vmatprep.subr.mxu0 0.0
    %1333 = vmatpush1.xpose.msra.mxu0 %v276
    %1334 = vmatprep.subr.mxu0 0.0
    %1335 = vmatpush1.xpose.msra.mxu0 %v275
    %1336 = vmatprep.subr.mxu0 0.0
    %1337 = vmatpush1.xpose.msra.mxu0 %v274
    %1338 = vmatprep.subr.mxu0 0.0
    %1339 = vmatpush1.xpose.msra.mxu0 %v273
    %1340 = vmatprep.subr.mxu0 0.0
    %1341 = vmatpush2.xpose.msra.mxu0 0.0
    %1342 = vmatprep.subr.mxu0 0.0
    %1343 = vmatpush2.xpose.msra.mxu0 0.0
    %1344 = vmatprep.subr.mxu0 0.0
    %1345 = vmatpush2.xpose.msra.mxu0 0.0
    %1346 = vmatprep.subr.mxu0 0.0
    %1347 = vmatpush2.xpose.msra.mxu0 0.0
    %1348 = vmatprep.subr.mxu0 0.0
    %1349 = vmatpush2.xpose.msra.mxu0 0.0
    %1350 = vmatprep.subr.mxu0 0.0
    %1351 = vmatpush2.xpose.msra.mxu0 0.0
    %1352 = vmatprep.subr.mxu0 0.0
    %1353 = vmatpush2.xpose.msra.mxu0 0.0
    %1354 = vmatprep.subr.mxu0 0.0
    %1355 = vmatpush2.xpose.msra.mxu0 0.0
    %1356 = vmatprep.subr.mxu0 0.0
    %1357 = vmatpush2.xpose.msra.mxu0 0.0
    %1358 = vmatprep.subr.mxu0 0.0
    %1359 = vmatpush2.xpose.msra.mxu0 0.0
    %1360 = vmatprep.subr.mxu0 0.0
    %1361 = vmatpush2.xpose.msra.mxu0 0.0
    %1362 = vmatprep.subr.mxu0 0.0
    %1363 = vmatpush2.xpose.msra.mxu0 0.0
    %1364 = vmatprep.subr.mxu0 0.0
    %1365 = vmatpush2.xpose.msra.mxu0 0.0
    %1366 = vmatprep.subr.mxu0 0.0
    %1367 = vmatpush2.xpose.msra.mxu0 0.0
    %1368 = vmatprep.subr.mxu0 0.0
    %1369 = vmatpush2.xpose.msra.mxu0 0.0
    %1370 = vmatprep.subr.mxu0 0.0
    %1371 = vmatpush2.xpose.msra.mxu0 0.0
    %1372 = vmatprep.mubr.f32.mxu0 0.0
    %1373 = vmatmul.mubr.f32.gmra.mxu0 %v305
    %v1374 = vpop.f32.mrf.mxu0
    %v1375 = vadd.f32 %v326, %v1374
    %v1376 = vpop.f32.mrf.mxu0
    %1377 = vdwg.mxu0
    %1378 = vmatprep.subr.mxu0 0.0
    %1379 = vmatpush1.xpose.msra.mxu0 %v304
    %1380 = vmatprep.subr.mxu0 0.0
    %1381 = vmatpush1.xpose.msra.mxu0 %v303
    %1382 = vmatprep.subr.mxu0 0.0
    %1383 = vmatpush1.xpose.msra.mxu0 %v302
    %1384 = vmatprep.subr.mxu0 0.0
    %1385 = vmatpush1.xpose.msra.mxu0 %v301
    %1386 = vmatprep.subr.mxu0 0.0
    %1387 = vmatpush1.xpose.msra.mxu0 %v300
    %1388 = vmatprep.subr.mxu0 0.0
    %1389 = vmatpush1.xpose.msra.mxu0 %v299
    %1390 = vmatprep.subr.mxu0 0.0
    %1391 = vmatpush1.xpose.msra.mxu0 %v298
    %1392 = vmatprep.subr.mxu0 0.0
    %1393 = vmatpush1.xpose.msra.mxu0 %v297
    %1394 = vmatprep.subr.mxu0 0.0
    %1395 = vmatpush1.xpose.msra.mxu0 %v296
    %1396 = vmatprep.subr.mxu0 0.0
    %1397 = vmatpush1.xpose.msra.mxu0 %v295
    %1398 = vmatprep.subr.mxu0 0.0
    %1399 = vmatpush1.xpose.msra.mxu0 %v294
    %1400 = vmatprep.subr.mxu0 0.0
    %1401 = vmatpush1.xpose.msra.mxu0 %v293
    %1402 = vmatprep.subr.mxu0 0.0
    %1403 = vmatpush1.xpose.msra.mxu0 %v292
    %1404 = vmatprep.subr.mxu0 0.0
    %1405 = vmatpush1.xpose.msra.mxu0 %v291
    %1406 = vmatprep.subr.mxu0 0.0
    %1407 = vmatpush1.xpose.msra.mxu0 %v290
    %1408 = vmatprep.subr.mxu0 0.0
    %1409 = vmatpush1.xpose.msra.mxu0 %v289
    %1410 = vmatprep.subr.mxu0 0.0
    %1411 = vmatpush2.xpose.msra.mxu0 0.0
    %1412 = vmatprep.subr.mxu0 0.0
    %1413 = vmatpush2.xpose.msra.mxu0 0.0
    %1414 = vmatprep.subr.mxu0 0.0
    %1415 = vmatpush2.xpose.msra.mxu0 0.0
    %1416 = vmatprep.subr.mxu0 0.0
    %1417 = vmatpush2.xpose.msra.mxu0 0.0
    %1418 = vmatprep.subr.mxu0 0.0
    %1419 = vmatpush2.xpose.msra.mxu0 0.0
    %1420 = vmatprep.subr.mxu0 0.0
    %1421 = vmatpush2.xpose.msra.mxu0 0.0
    %1422 = vmatprep.subr.mxu0 0.0
    %1423 = vmatpush2.xpose.msra.mxu0 0.0
    %1424 = vmatprep.subr.mxu0 0.0
    %1425 = vmatpush2.xpose.msra.mxu0 0.0
    %1426 = vmatprep.subr.mxu0 0.0
    %1427 = vmatpush2.xpose.msra.mxu0 0.0
    %1428 = vmatprep.subr.mxu0 0.0
    %1429 = vmatpush2.xpose.msra.mxu0 0.0
    %1430 = vmatprep.subr.mxu0 0.0
    %1431 = vmatpush2.xpose.msra.mxu0 0.0
    %1432 = vmatprep.subr.mxu0 0.0
    %1433 = vmatpush2.xpose.msra.mxu0 0.0
    %1434 = vmatprep.subr.mxu0 0.0
    %1435 = vmatpush2.xpose.msra.mxu0 0.0
    %1436 = vmatprep.subr.mxu0 0.0
    %1437 = vmatpush2.xpose.msra.mxu0 0.0
    %1438 = vmatprep.subr.mxu0 0.0
    %1439 = vmatpush2.xpose.msra.mxu0 0.0
    %1440 = vmatprep.subr.mxu0 0.0
    %1441 = vmatpush2.xpose.msra.mxu0 0.0
    %1442 = vmatprep.mubr.f32.mxu0 0.0
    %1443 = vmatmul.mubr.f32.gmra.mxu0 %v305
    %v1444 = vpop.f32.mrf.mxu0
    %v1445 = vadd.f32 %v326, %v1444
    %v1446 = vpop.f32.mrf.mxu0
    %1447 = vdwg.mxu0
    %vm1448 = vcmp.gt.f32.partialorder %v307, 0.5
    %vm1449 = vcmp.gt.f32.partialorder %v308, 0.5
    %vm1450 = vcmp.gt.f32.partialorder %v309, 0.5
    %vm1451 = vcmp.gt.f32.partialorder %v310, 0.5
    %vm1452 = vcmp.gt.f32.partialorder %v311, 0.5
    %vm1453 = vcmp.gt.f32.partialorder %v312, 0.5
    %vm1454 = vcmp.gt.f32.partialorder %v313, 0.5
    %vm1455 = vcmp.gt.f32.partialorder %v314, 0.5
    %vm1456 = vcmp.gt.f32.partialorder %v315, 0.5
    %vm1457 = vcmp.gt.f32.partialorder %v316, 0.5
    %vm1458 = vcmp.gt.f32.partialorder %v317, 0.5
    %vm1459 = vcmp.gt.f32.partialorder %v318, 0.5
    %vm1460 = vcmp.gt.f32.partialorder %v319, 0.5
    %vm1461 = vcmp.gt.f32.partialorder %v320, 0.5
    %vm1462 = vcmp.gt.f32.partialorder %v321, 0.5
    %vm1463 = vcmp.gt.f32.partialorder %v322, 0.5
    %v1464 = vsel %vm1448, %v395, -9e+15
    %v1465 = vsel %vm1449, %v465, -9e+15
    %v1466 = vsel %vm1450, %v535, -9e+15
    %v1467 = vsel %vm1451, %v605, -9e+15
    %v1468 = vsel %vm1452, %v675, -9e+15
    %v1469 = vsel %vm1453, %v745, -9e+15
    %v1470 = vsel %vm1454, %v815, -9e+15
    %v1471 = vsel %vm1455, %v885, -9e+15
    %v1472 = vsel %vm1456, %v955, -9e+15
    %v1473 = vsel %vm1457, %v1025, -9e+15
    %v1474 = vsel %vm1458, %v1095, -9e+15
    %v1475 = vsel %vm1459, %v1165, -9e+15
    %v1476 = vsel %vm1460, %v1235, -9e+15
    %v1477 = vsel %vm1461, %v1305, -9e+15
    %v1478 = vsel %vm1462, %v1375, -9e+15
    %v1479 = vsel %vm1463, %v1445, -9e+15
    %1480 = vmax.xlane.f32.xlu0 %v1464
    %v1481 = vpop.xlane.xlu0 %1480
    %1482 = vmax.xlane.f32.xlu0 %v1465
    %v1483 = vpop.xlane.xlu0 %1482
    %1484 = vmax.xlane.f32.xlu0 %v1466
    %v1485 = vpop.xlane.xlu0 %1484
    %1486 = vmax.xlane.f32.xlu0 %v1467
    %v1487 = vpop.xlane.xlu0 %1486
    %1488 = vmax.xlane.f32.xlu0 %v1468
    %v1489 = vpop.xlane.xlu0 %1488
    %1490 = vmax.xlane.f32.xlu0 %v1469
    %v1491 = vpop.xlane.xlu0 %1490
    %1492 = vmax.xlane.f32.xlu0 %v1470
    %v1493 = vpop.xlane.xlu0 %1492
    %1494 = vmax.xlane.f32.xlu0 %v1471
    %v1495 = vpop.xlane.xlu0 %1494
    %1496 = vmax.xlane.f32.xlu0 %v1472
    %v1497 = vpop.xlane.xlu0 %1496
    %1498 = vmax.xlane.f32.xlu0 %v1473
    %v1499 = vpop.xlane.xlu0 %1498
    %1500 = vmax.xlane.f32.xlu0 %v1474
    %v1501 = vpop.xlane.xlu0 %1500
    %1502 = vmax.xlane.f32.xlu0 %v1475
    %v1503 = vpop.xlane.xlu0 %1502
    %1504 = vmax.xlane.f32.xlu0 %v1476
    %v1505 = vpop.xlane.xlu0 %1504
    %1506 = vmax.xlane.f32.xlu0 %v1477
    %v1507 = vpop.xlane.xlu0 %1506
    %1508 = vmax.xlane.f32.xlu0 %v1478
    %v1509 = vpop.xlane.xlu0 %1508
    %1510 = vmax.xlane.f32.xlu0 %v1479
    %v1511 = vpop.xlane.xlu0 %1510
    %v1512 = vsub.f32 %v1464, %v1481
    %v1513 = vsub.f32 %v1465, %v1483
    %v1514 = vsub.f32 %v1466, %v1485
    %v1515 = vsub.f32 %v1467, %v1487
    %v1516 = vsub.f32 %v1468, %v1489
    %v1517 = vsub.f32 %v1469, %v1491
    %v1518 = vsub.f32 %v1470, %v1493
    %v1519 = vsub.f32 %v1471, %v1495
    %v1520 = vsub.f32 %v1472, %v1497
    %v1521 = vsub.f32 %v1473, %v1499
    %v1522 = vsub.f32 %v1474, %v1501
    %v1523 = vsub.f32 %v1475, %v1503
    %v1524 = vsub.f32 %v1476, %v1505
    %v1525 = vsub.f32 %v1477, %v1507
    %v1526 = vsub.f32 %v1478, %v1509
    %v1527 = vsub.f32 %v1479, %v1511
    %v1528 = vmul.f32 %v1512, 1.442695
    %v1529 = vpow.pop %v1528
    %v1530 = vmul.f32 %v1513, 1.442695
    %v1531 = vpow.pop %v1530
    %v1532 = vmul.f32 %v1514, 1.442695
    %v1533 = vpow.pop %v1532
    %v1534 = vmul.f32 %v1515, 1.442695
    %v1535 = vpow.pop %v1534
    %v1536 = vmul.f32 %v1516, 1.442695
    %v1537 = vpow.pop %v1536
    %v1538 = vmul.f32 %v1517, 1.442695
    %v1539 = vpow.pop %v1538
    %v1540 = vmul.f32 %v1518, 1.442695
    %v1541 = vpow.pop %v1540
    %v1542 = vmul.f32 %v1519, 1.442695
    %v1543 = vpow.pop %v1542
    %v1544 = vmul.f32 %v1520, 1.442695
    %v1545 = vpow.pop %v1544
    %v1546 = vmul.f32 %v1521, 1.442695
    %v1547 = vpow.pop %v1546
    %v1548 = vmul.f32 %v1522, 1.442695
    %v1549 = vpow.pop %v1548
    %v1550 = vmul.f32 %v1523, 1.442695
    %v1551 = vpow.pop %v1550
    %v1552 = vmul.f32 %v1524, 1.442695
    %v1553 = vpow.pop %v1552
    %v1554 = vmul.f32 %v1525, 1.442695
    %v1555 = vpow.pop %v1554
    %v1556 = vmul.f32 %v1526, 1.442695
    %v1557 = vpow.pop %v1556
    %v1558 = vmul.f32 %v1527, 1.442695
    %v1559 = vpow.pop %v1558
    %1560 = vadd.xlane.f32.xlu0 %v1529
    %v1561 = vpop.xlane.xlu0 %1560
    %1562 = vadd.xlane.f32.xlu0 %v1531
    %v1563 = vpop.xlane.xlu0 %1562
    %1564 = vadd.xlane.f32.xlu0 %v1533
    %v1565 = vpop.xlane.xlu0 %1564
    %1566 = vadd.xlane.f32.xlu0 %v1535
    %v1567 = vpop.xlane.xlu0 %1566
    %1568 = vadd.xlane.f32.xlu0 %v1537
    %v1569 = vpop.xlane.xlu0 %1568
    %1570 = vadd.xlane.f32.xlu0 %v1539
    %v1571 = vpop.xlane.xlu0 %1570
    %1572 = vadd.xlane.f32.xlu0 %v1541
    %v1573 = vpop.xlane.xlu0 %1572
    %1574 = vadd.xlane.f32.xlu0 %v1543
    %v1575 = vpop.xlane.xlu0 %1574
    %1576 = vadd.xlane.f32.xlu0 %v1545
    %v1577 = vpop.xlane.xlu0 %1576
    %1578 = vadd.xlane.f32.xlu0 %v1547
    %v1579 = vpop.xlane.xlu0 %1578
    %1580 = vadd.xlane.f32.xlu0 %v1549
    %v1581 = vpop.xlane.xlu0 %1580
    %1582 = vadd.xlane.f32.xlu0 %v1551
    %v1583 = vpop.xlane.xlu0 %1582
    %1584 = vadd.xlane.f32.xlu0 %v1553
    %v1585 = vpop.xlane.xlu0 %1584
    %1586 = vadd.xlane.f32.xlu0 %v1555
    %v1587 = vpop.xlane.xlu0 %1586
    %1588 = vadd.xlane.f32.xlu0 %v1557
    %v1589 = vpop.xlane.xlu0 %1588
    %1590 = vadd.xlane.f32.xlu0 %v1559
    %v1591 = vpop.xlane.xlu0 %1590
    %v1592 = vrcp.pop %v1561
    %v1593 = vrcp.pop %v1563
    %v1594 = vrcp.pop %v1565
    %v1595 = vrcp.pop %v1567
    %v1596 = vrcp.pop %v1569
    %v1597 = vrcp.pop %v1571
    %v1598 = vrcp.pop %v1573
    %v1599 = vrcp.pop %v1575
    %v1600 = vrcp.pop %v1577
    %v1601 = vrcp.pop %v1579
    %v1602 = vrcp.pop %v1581
    %v1603 = vrcp.pop %v1583
    %v1604 = vrcp.pop %v1585
    %v1605 = vrcp.pop %v1587
    %v1606 = vrcp.pop %v1589
    %v1607 = vrcp.pop %v1591
    %v1608 = vmul.f32 %v1529, %v1592
    %v1609 = vmul.f32 %v1531, %v1593
    %v1610 = vmul.f32 %v1533, %v1594
    %v1611 = vmul.f32 %v1535, %v1595
    %v1612 = vmul.f32 %v1537, %v1596
    %v1613 = vmul.f32 %v1539, %v1597
    %v1614 = vmul.f32 %v1541, %v1598
    %v1615 = vmul.f32 %v1543, %v1599
    %v1616 = vmul.f32 %v1545, %v1600
    %v1617 = vmul.f32 %v1547, %v1601
    %v1618 = vmul.f32 %v1549, %v1602
    %v1619 = vmul.f32 %v1551, %v1603
    %v1620 = vmul.f32 %v1553, %v1604
    %v1621 = vmul.f32 %v1555, %v1605
    %v1622 = vmul.f32 %v1557, %v1606
    %v1623 = vmul.f32 %v1559, %v1607
    %1624 = vst [vmem:[#allocation8] sm:$0xff] %v1608
    %1625 = vst [vmem:[#allocation8 + $0x8] sm:$0xff] %v1609
    %1626 = vst [vmem:[#allocation8 + $0x10] sm:$0xff] %v1610
    %1627 = vst [vmem:[#allocation8 + $0x18] sm:$0xff] %v1611
    %1628 = vst [vmem:[#allocation8 + $0x20] sm:$0xff] %v1612
    %1629 = vst [vmem:[#allocation8 + $0x28] sm:$0xff] %v1613
    %1630 = vst [vmem:[#allocation8 + $0x30] sm:$0xff] %v1614
    %1631 = vst [vmem:[#allocation8 + $0x38] sm:$0xff] %v1615
    %1632 = vst [vmem:[#allocation8 + $0x40] sm:$0xff] %v1616
    %1633 = vst [vmem:[#allocation8 + $0x48] sm:$0xff] %v1617
    %1634 = vst [vmem:[#allocation8 + $0x50] sm:$0xff] %v1618
    %1635 = vst [vmem:[#allocation8 + $0x58] sm:$0xff] %v1619
    %1636 = vst [vmem:[#allocation8 + $0x60] sm:$0xff] %v1620
    %1637 = vst [vmem:[#allocation8 + $0x68] sm:$0xff] %v1621
    %1638 = vst [vmem:[#allocation8 + $0x70] sm:$0xff] %v1622
    %1639 = vst [vmem:[#allocation8 + $0x78] sm:$0xff] %v1623
    %v1640 = vrot.slane %v1608, 4
    %v1641 = vadd.f32 %v1608, %v1640
    %v1642 = vrot.slane %v1641, 2
    %v1643 = vadd.f32 %v1641, %v1642
    %v1644 = vrot.slane %v1643, 1
    %v1645 = vadd.f32 %v1643, %v1644
    %v1646 = vrot.slane %v1609, 4
    %v1647 = vadd.f32 %v1609, %v1646
    %v1648 = vrot.slane %v1647, 2
    %v1649 = vadd.f32 %v1647, %v1648
    %v1650 = vrot.slane %v1649, 1
    %v1651 = vadd.f32 %v1649, %v1650
    %v1652 = vrot.slane %v1610, 4
    %v1653 = vadd.f32 %v1610, %v1652
    %v1654 = vrot.slane %v1653, 2
    %v1655 = vadd.f32 %v1653, %v1654
    %v1656 = vrot.slane %v1655, 1
    %v1657 = vadd.f32 %v1655, %v1656
    %v1658 = vrot.slane %v1611, 4
    %v1659 = vadd.f32 %v1611, %v1658
    %v1660 = vrot.slane %v1659, 2
    %v1661 = vadd.f32 %v1659, %v1660
    %v1662 = vrot.slane %v1661, 1
    %v1663 = vadd.f32 %v1661, %v1662
    %v1664 = vrot.slane %v1612, 4
    %v1665 = vadd.f32 %v1612, %v1664
    %v1666 = vrot.slane %v1665, 2
    %v1667 = vadd.f32 %v1665, %v1666
    %v1668 = vrot.slane %v1667, 1
    %v1669 = vadd.f32 %v1667, %v1668
    %v1670 = vrot.slane %v1613, 4
    %v1671 = vadd.f32 %v1613, %v1670
    %v1672 = vrot.slane %v1671, 2
    %v1673 = vadd.f32 %v1671, %v1672
    %v1674 = vrot.slane %v1673, 1
    %v1675 = vadd.f32 %v1673, %v1674
    %v1676 = vrot.slane %v1614, 4
    %v1677 = vadd.f32 %v1614, %v1676
    %v1678 = vrot.slane %v1677, 2
    %v1679 = vadd.f32 %v1677, %v1678
    %v1680 = vrot.slane %v1679, 1
    %v1681 = vadd.f32 %v1679, %v1680
    %v1682 = vrot.slane %v1615, 4
    %v1683 = vadd.f32 %v1615, %v1682
    %v1684 = vrot.slane %v1683, 2
    %v1685 = vadd.f32 %v1683, %v1684
    %v1686 = vrot.slane %v1685, 1
    %v1687 = vadd.f32 %v1685, %v1686
    %v1688 = vrot.slane %v1616, 4
    %v1689 = vadd.f32 %v1616, %v1688
    %v1690 = vrot.slane %v1689, 2
    %v1691 = vadd.f32 %v1689, %v1690
    %v1692 = vrot.slane %v1691, 1
    %v1693 = vadd.f32 %v1691, %v1692
    %v1694 = vrot.slane %v1617, 4
    %v1695 = vadd.f32 %v1617, %v1694
    %v1696 = vrot.slane %v1695, 2
    %v1697 = vadd.f32 %v1695, %v1696
    %v1698 = vrot.slane %v1697, 1
    %v1699 = vadd.f32 %v1697, %v1698
    %v1700 = vrot.slane %v1618, 4
    %v1701 = vadd.f32 %v1618, %v1700
    %v1702 = vrot.slane %v1701, 2
    %v1703 = vadd.f32 %v1701, %v1702
    %v1704 = vrot.slane %v1703, 1
    %v1705 = vadd.f32 %v1703, %v1704
    %v1706 = vrot.slane %v1619, 4
    %v1707 = vadd.f32 %v1619, %v1706
    %v1708 = vrot.slane %v1707, 2
    %v1709 = vadd.f32 %v1707, %v1708
    %v1710 = vrot.slane %v1709, 1
    %v1711 = vadd.f32 %v1709, %v1710
    %v1712 = vrot.slane %v1620, 4
    %v1713 = vadd.f32 %v1620, %v1712
    %v1714 = vrot.slane %v1713, 2
    %v1715 = vadd.f32 %v1713, %v1714
    %v1716 = vrot.slane %v1715, 1
    %v1717 = vadd.f32 %v1715, %v1716
    %v1718 = vrot.slane %v1621, 4
    %v1719 = vadd.f32 %v1621, %v1718
    %v1720 = vrot.slane %v1719, 2
    %v1721 = vadd.f32 %v1719, %v1720
    %v1722 = vrot.slane %v1721, 1
    %v1723 = vadd.f32 %v1721, %v1722
    %v1724 = vrot.slane %v1622, 4
    %v1725 = vadd.f32 %v1622, %v1724
    %v1726 = vrot.slane %v1725, 2
    %v1727 = vadd.f32 %v1725, %v1726
    %v1728 = vrot.slane %v1727, 1
    %v1729 = vadd.f32 %v1727, %v1728
    %v1730 = vrot.slane %v1623, 4
    %v1731 = vadd.f32 %v1623, %v1730
    %v1732 = vrot.slane %v1731, 2
    %v1733 = vadd.f32 %v1731, %v1732
    %v1734 = vrot.slane %v1733, 1
    %v1735 = vadd.f32 %v1733, %v1734
    %v1736 = vmul.f32 %v49, %v1645
    %v1737 = vmul.f32 %v50, %v1645
    %v1738 = vmul.f32 %v51, %v1645
    %v1739 = vmul.f32 %v52, %v1645
    %v1740 = vmul.f32 %v53, %v1645
    %v1741 = vmul.f32 %v54, %v1645
    %v1742 = vmul.f32 %v55, %v1645
    %v1743 = vmul.f32 %v56, %v1645
    %v1744 = vmul.f32 %v57, %v1645
    %v1745 = vmul.f32 %v58, %v1645
    %v1746 = vmul.f32 %v59, %v1645
    %v1747 = vmul.f32 %v60, %v1645
    %v1748 = vmul.f32 %v61, %v1645
    %v1749 = vmul.f32 %v62, %v1645
    %v1750 = vmul.f32 %v63, %v1645
    %v1751 = vmul.f32 %v64, %v1645
    %v1752 = vmul.f32 %v65, %v1651
    %v1753 = vmul.f32 %v66, %v1651
    %v1754 = vmul.f32 %v67, %v1651
    %v1755 = vmul.f32 %v68, %v1651
    %v1756 = vmul.f32 %v69, %v1651
    %v1757 = vmul.f32 %v70, %v1651
    %v1758 = vmul.f32 %v71, %v1651
    %v1759 = vmul.f32 %v72, %v1651
    %v1760 = vmul.f32 %v73, %v1651
    %v1761 = vmul.f32 %v74, %v1651
    %v1762 = vmul.f32 %v75, %v1651
    %v1763 = vmul.f32 %v76, %v1651
    %v1764 = vmul.f32 %v77, %v1651
    %v1765 = vmul.f32 %v78, %v1651
    %v1766 = vmul.f32 %v79, %v1651
    %v1767 = vmul.f32 %v80, %v1651
    %v1768 = vmul.f32 %v81, %v1657
    %v1769 = vmul.f32 %v82, %v1657
    %v1770 = vmul.f32 %v83, %v1657
    %v1771 = vmul.f32 %v84, %v1657
    %v1772 = vmul.f32 %v85, %v1657
    %v1773 = vmul.f32 %v86, %v1657
    %v1774 = vmul.f32 %v87, %v1657
    %v1775 = vmul.f32 %v88, %v1657
    %v1776 = vmul.f32 %v89, %v1657
    %v1777 = vmul.f32 %v90, %v1657
    %v1778 = vmul.f32 %v91, %v1657
    %v1779 = vmul.f32 %v92, %v1657
    %v1780 = vmul.f32 %v93, %v1657
    %v1781 = vmul.f32 %v94, %v1657
    %v1782 = vmul.f32 %v95, %v1657
    %v1783 = vmul.f32 %v96, %v1657
    %v1784 = vmul.f32 %v97, %v1663
    %v1785 = vmul.f32 %v98, %v1663
    %v1786 = vmul.f32 %v99, %v1663
    %v1787 = vmul.f32 %v100, %v1663
    %v1788 = vmul.f32 %v101, %v1663
    %v1789 = vmul.f32 %v102, %v1663
    %v1790 = vmul.f32 %v103, %v1663
    %v1791 = vmul.f32 %v104, %v1663
    %v1792 = vmul.f32 %v105, %v1663
    %v1793 = vmul.f32 %v106, %v1663
    %v1794 = vmul.f32 %v107, %v1663
    %v1795 = vmul.f32 %v108, %v1663
    %v1796 = vmul.f32 %v109, %v1663
    %v1797 = vmul.f32 %v110, %v1663
    %v1798 = vmul.f32 %v111, %v1663
    %v1799 = vmul.f32 %v112, %v1663
    %v1800 = vmul.f32 %v113, %v1669
    %v1801 = vmul.f32 %v114, %v1669
    %v1802 = vmul.f32 %v115, %v1669
    %v1803 = vmul.f32 %v116, %v1669
    %v1804 = vmul.f32 %v117, %v1669
    %v1805 = vmul.f32 %v118, %v1669
    %v1806 = vmul.f32 %v119, %v1669
    %v1807 = vmul.f32 %v120, %v1669
    %v1808 = vmul.f32 %v121, %v1669
    %v1809 = vmul.f32 %v122, %v1669
    %v1810 = vmul.f32 %v123, %v1669
    %v1811 = vmul.f32 %v124, %v1669
    %v1812 = vmul.f32 %v125, %v1669
    %v1813 = vmul.f32 %v126, %v1669
    %v1814 = vmul.f32 %v127, %v1669
    %v1815 = vmul.f32 %v128, %v1669
    %v1816 = vmul.f32 %v129, %v1675
    %v1817 = vmul.f32 %v130, %v1675
    %v1818 = vmul.f32 %v131, %v1675
    %v1819 = vmul.f32 %v132, %v1675
    %v1820 = vmul.f32 %v133, %v1675
    %v1821 = vmul.f32 %v134, %v1675
    %v1822 = vmul.f32 %v135, %v1675
    %v1823 = vmul.f32 %v136, %v1675
    %v1824 = vmul.f32 %v137, %v1675
    %v1825 = vmul.f32 %v138, %v1675
    %v1826 = vmul.f32 %v139, %v1675
    %v1827 = vmul.f32 %v140, %v1675
    %v1828 = vmul.f32 %v141, %v1675
    %v1829 = vmul.f32 %v142, %v1675
    %v1830 = vmul.f32 %v143, %v1675
    %v1831 = vmul.f32 %v144, %v1675
    %v1832 = vmul.f32 %v145, %v1681
    %v1833 = vmul.f32 %v146, %v1681
    %v1834 = vmul.f32 %v147, %v1681
    %v1835 = vmul.f32 %v148, %v1681
    %v1836 = vmul.f32 %v149, %v1681
    %v1837 = vmul.f32 %v150, %v1681
    %v1838 = vmul.f32 %v151, %v1681
    %v1839 = vmul.f32 %v152, %v1681
    %v1840 = vmul.f32 %v153, %v1681
    %v1841 = vmul.f32 %v154, %v1681
    %v1842 = vmul.f32 %v155, %v1681
    %v1843 = vmul.f32 %v156, %v1681
    %v1844 = vmul.f32 %v157, %v1681
    %v1845 = vmul.f32 %v158, %v1681
    %v1846 = vmul.f32 %v159, %v1681
    %v1847 = vmul.f32 %v160, %v1681
    %v1848 = vmul.f32 %v161, %v1687
    %v1849 = vmul.f32 %v162, %v1687
    %v1850 = vmul.f32 %v163, %v1687
    %v1851 = vmul.f32 %v164, %v1687
    %v1852 = vmul.f32 %v165, %v1687
    %v1853 = vmul.f32 %v166, %v1687
    %v1854 = vmul.f32 %v167, %v1687
    %v1855 = vmul.f32 %v168, %v1687
    %v1856 = vmul.f32 %v169, %v1687
    %v1857 = vmul.f32 %v170, %v1687
    %v1858 = vmul.f32 %v171, %v1687
    %v1859 = vmul.f32 %v172, %v1687
    %v1860 = vmul.f32 %v173, %v1687
    %v1861 = vmul.f32 %v174, %v1687
    %v1862 = vmul.f32 %v175, %v1687
    %v1863 = vmul.f32 %v176, %v1687
    %v1864 = vmul.f32 %v177, %v1693
    %v1865 = vmul.f32 %v178, %v1693
    %v1866 = vmul.f32 %v179, %v1693
    %v1867 = vmul.f32 %v180, %v1693
    %v1868 = vmul.f32 %v181, %v1693
    %v1869 = vmul.f32 %v182, %v1693
    %v1870 = vmul.f32 %v183, %v1693
    %v1871 = vmul.f32 %v184, %v1693
    %v1872 = vmul.f32 %v185, %v1693
    %v1873 = vmul.f32 %v186, %v1693
    %v1874 = vmul.f32 %v187, %v1693
    %v1875 = vmul.f32 %v188, %v1693
    %v1876 = vmul.f32 %v189, %v1693
    %v1877 = vmul.f32 %v190, %v1693
    %v1878 = vmul.f32 %v191, %v1693
    %v1879 = vmul.f32 %v192, %v1693
    %v1880 = vmul.f32 %v193, %v1699
    %v1881 = vmul.f32 %v194, %v1699
    %v1882 = vmul.f32 %v195, %v1699
    %v1883 = vmul.f32 %v196, %v1699
    %v1884 = vmul.f32 %v197, %v1699
    %v1885 = vmul.f32 %v198, %v1699
    %v1886 = vmul.f32 %v199, %v1699
    %v1887 = vmul.f32 %v200, %v1699
    %v1888 = vmul.f32 %v201, %v1699
    %v1889 = vmul.f32 %v202, %v1699
    %v1890 = vmul.f32 %v203, %v1699
    %v1891 = vmul.f32 %v204, %v1699
    %v1892 = vmul.f32 %v205, %v1699
    %v1893 = vmul.f32 %v206, %v1699
    %v1894 = vmul.f32 %v207, %v1699
    %v1895 = vmul.f32 %v208, %v1699
    %v1896 = vmul.f32 %v209, %v1705
    %v1897 = vmul.f32 %v210, %v1705
    %v1898 = vmul.f32 %v211, %v1705
    %v1899 = vmul.f32 %v212, %v1705
    %v1900 = vmul.f32 %v213, %v1705
    %v1901 = vmul.f32 %v214, %v1705
    %v1902 = vmul.f32 %v215, %v1705
    %v1903 = vmul.f32 %v216, %v1705
    %v1904 = vmul.f32 %v217, %v1705
    %v1905 = vmul.f32 %v218, %v1705
    %v1906 = vmul.f32 %v219, %v1705
    %v1907 = vmul.f32 %v220, %v1705
    %v1908 = vmul.f32 %v221, %v1705
    %v1909 = vmul.f32 %v222, %v1705
    %v1910 = vmul.f32 %v223, %v1705
    %v1911 = vmul.f32 %v224, %v1705
    %v1912 = vmul.f32 %v225, %v1711
    %v1913 = vmul.f32 %v226, %v1711
    %v1914 = vmul.f32 %v227, %v1711
    %v1915 = vmul.f32 %v228, %v1711
    %v1916 = vmul.f32 %v229, %v1711
    %v1917 = vmul.f32 %v230, %v1711
    %v1918 = vmul.f32 %v231, %v1711
    %v1919 = vmul.f32 %v232, %v1711
    %v1920 = vmul.f32 %v233, %v1711
    %v1921 = vmul.f32 %v234, %v1711
    %v1922 = vmul.f32 %v235, %v1711
    %v1923 = vmul.f32 %v236, %v1711
    %v1924 = vmul.f32 %v237, %v1711
    %v1925 = vmul.f32 %v238, %v1711
    %v1926 = vmul.f32 %v239, %v1711
    %v1927 = vmul.f32 %v240, %v1711
    %v1928 = vmul.f32 %v241, %v1717
    %v1929 = vmul.f32 %v242, %v1717
    %v1930 = vmul.f32 %v243, %v1717
    %v1931 = vmul.f32 %v244, %v1717
    %v1932 = vmul.f32 %v245, %v1717
    %v1933 = vmul.f32 %v246, %v1717
    %v1934 = vmul.f32 %v247, %v1717
    %v1935 = vmul.f32 %v248, %v1717
    %v1936 = vmul.f32 %v249, %v1717
    %v1937 = vmul.f32 %v250, %v1717
    %v1938 = vmul.f32 %v251, %v1717
    %v1939 = vmul.f32 %v252, %v1717
    %v1940 = vmul.f32 %v253, %v1717
    %v1941 = vmul.f32 %v254, %v1717
    %v1942 = vmul.f32 %v255, %v1717
    %v1943 = vmul.f32 %v256, %v1717
    %v1944 = vmul.f32 %v257, %v1723
    %v1945 = vmul.f32 %v258, %v1723
    %v1946 = vmul.f32 %v259, %v1723
    %v1947 = vmul.f32 %v260, %v1723
    %v1948 = vmul.f32 %v261, %v1723
    %v1949 = vmul.f32 %v262, %v1723
    %v1950 = vmul.f32 %v263, %v1723
    %v1951 = vmul.f32 %v264, %v1723
    %v1952 = vmul.f32 %v265, %v1723
    %v1953 = vmul.f32 %v266, %v1723
    %v1954 = vmul.f32 %v267, %v1723
    %v1955 = vmul.f32 %v268, %v1723
    %v1956 = vmul.f32 %v269, %v1723
    %v1957 = vmul.f32 %v270, %v1723
    %v1958 = vmul.f32 %v271, %v1723
    %v1959 = vmul.f32 %v272, %v1723
    %v1960 = vmul.f32 %v273, %v1729
    %v1961 = vmul.f32 %v274, %v1729
    %v1962 = vmul.f32 %v275, %v1729
    %v1963 = vmul.f32 %v276, %v1729
    %v1964 = vmul.f32 %v277, %v1729
    %v1965 = vmul.f32 %v278, %v1729
    %v1966 = vmul.f32 %v279, %v1729
    %v1967 = vmul.f32 %v280, %v1729
    %v1968 = vmul.f32 %v281, %v1729
    %v1969 = vmul.f32 %v282, %v1729
    %v1970 = vmul.f32 %v283, %v1729
    %v1971 = vmul.f32 %v284, %v1729
    %v1972 = vmul.f32 %v285, %v1729
    %v1973 = vmul.f32 %v286, %v1729
    %v1974 = vmul.f32 %v287, %v1729
    %v1975 = vmul.f32 %v288, %v1729
    %v1976 = vmul.f32 %v289, %v1735
    %v1977 = vmul.f32 %v290, %v1735
    %v1978 = vmul.f32 %v291, %v1735
    %v1979 = vmul.f32 %v292, %v1735
    %v1980 = vmul.f32 %v293, %v1735
    %v1981 = vmul.f32 %v294, %v1735
    %v1982 = vmul.f32 %v295, %v1735
    %v1983 = vmul.f32 %v296, %v1735
    %v1984 = vmul.f32 %v297, %v1735
    %v1985 = vmul.f32 %v298, %v1735
    %v1986 = vmul.f32 %v299, %v1735
    %v1987 = vmul.f32 %v300, %v1735
    %v1988 = vmul.f32 %v301, %v1735
    %v1989 = vmul.f32 %v302, %v1735
    %v1990 = vmul.f32 %v303, %v1735
    %v1991 = vmul.f32 %v304, %v1735
    %1992 = vadd.xlane.f32.xlu0 %v1736
    %v1993 = vpop.xlane.xlu0 %1992
    %1994 = vadd.xlane.f32.xlu0 %v1737
    %v1995 = vpop.xlane.xlu0 %1994
    %1996 = vadd.xlane.f32.xlu0 %v1738
    %v1997 = vpop.xlane.xlu0 %1996
    %1998 = vadd.xlane.f32.xlu0 %v1739
    %v1999 = vpop.xlane.xlu0 %1998
    %2000 = vadd.xlane.f32.xlu0 %v1740
    %v2001 = vpop.xlane.xlu0 %2000
    %2002 = vadd.xlane.f32.xlu0 %v1741
    %v2003 = vpop.xlane.xlu0 %2002
    %2004 = vadd.xlane.f32.xlu0 %v1742
    %v2005 = vpop.xlane.xlu0 %2004
    %2006 = vadd.xlane.f32.xlu0 %v1743
    %v2007 = vpop.xlane.xlu0 %2006
    %2008 = vadd.xlane.f32.xlu0 %v1744
    %v2009 = vpop.xlane.xlu0 %2008
    %2010 = vadd.xlane.f32.xlu0 %v1745
    %v2011 = vpop.xlane.xlu0 %2010
    %2012 = vadd.xlane.f32.xlu0 %v1746
    %v2013 = vpop.xlane.xlu0 %2012
    %2014 = vadd.xlane.f32.xlu0 %v1747
    %v2015 = vpop.xlane.xlu0 %2014
    %2016 = vadd.xlane.f32.xlu0 %v1748
    %v2017 = vpop.xlane.xlu0 %2016
    %2018 = vadd.xlane.f32.xlu0 %v1749
    %v2019 = vpop.xlane.xlu0 %2018
    %2020 = vadd.xlane.f32.xlu0 %v1750
    %v2021 = vpop.xlane.xlu0 %2020
    %2022 = vadd.xlane.f32.xlu0 %v1751
    %v2023 = vpop.xlane.xlu0 %2022
    %2024 = vadd.xlane.f32.xlu0 %v1752
    %v2025 = vpop.xlane.xlu0 %2024
    %2026 = vadd.xlane.f32.xlu0 %v1753
    %v2027 = vpop.xlane.xlu0 %2026
    %2028 = vadd.xlane.f32.xlu0 %v1754
    %v2029 = vpop.xlane.xlu0 %2028
    %2030 = vadd.xlane.f32.xlu0 %v1755
    %v2031 = vpop.xlane.xlu0 %2030
    %2032 = vadd.xlane.f32.xlu0 %v1756
    %v2033 = vpop.xlane.xlu0 %2032
    %2034 = vadd.xlane.f32.xlu0 %v1757
    %v2035 = vpop.xlane.xlu0 %2034
    %2036 = vadd.xlane.f32.xlu0 %v1758
    %v2037 = vpop.xlane.xlu0 %2036
    %2038 = vadd.xlane.f32.xlu0 %v1759
    %v2039 = vpop.xlane.xlu0 %2038
    %2040 = vadd.xlane.f32.xlu0 %v1760
    %v2041 = vpop.xlane.xlu0 %2040
    %2042 = vadd.xlane.f32.xlu0 %v1761
    %v2043 = vpop.xlane.xlu0 %2042
    %2044 = vadd.xlane.f32.xlu0 %v1762
    %v2045 = vpop.xlane.xlu0 %2044
    %2046 = vadd.xlane.f32.xlu0 %v1763
    %v2047 = vpop.xlane.xlu0 %2046
    %2048 = vadd.xlane.f32.xlu0 %v1764
    %v2049 = vpop.xlane.xlu0 %2048
    %2050 = vadd.xlane.f32.xlu0 %v1765
    %v2051 = vpop.xlane.xlu0 %2050
    %2052 = vadd.xlane.f32.xlu0 %v1766
    %v2053 = vpop.xlane.xlu0 %2052
    %2054 = vadd.xlane.f32.xlu0 %v1767
    %v2055 = vpop.xlane.xlu0 %2054
    %2056 = vadd.xlane.f32.xlu0 %v1768
    %v2057 = vpop.xlane.xlu0 %2056
    %2058 = vadd.xlane.f32.xlu0 %v1769
    %v2059 = vpop.xlane.xlu0 %2058
    %2060 = vadd.xlane.f32.xlu0 %v1770
    %v2061 = vpop.xlane.xlu0 %2060
    %2062 = vadd.xlane.f32.xlu0 %v1771
    %v2063 = vpop.xlane.xlu0 %2062
    %2064 = vadd.xlane.f32.xlu0 %v1772
    %v2065 = vpop.xlane.xlu0 %2064
    %2066 = vadd.xlane.f32.xlu0 %v1773
    %v2067 = vpop.xlane.xlu0 %2066
    %2068 = vadd.xlane.f32.xlu0 %v1774
    %v2069 = vpop.xlane.xlu0 %2068
    %2070 = vadd.xlane.f32.xlu0 %v1775
    %v2071 = vpop.xlane.xlu0 %2070
    %2072 = vadd.xlane.f32.xlu0 %v1776
    %v2073 = vpop.xlane.xlu0 %2072
    %2074 = vadd.xlane.f32.xlu0 %v1777
    %v2075 = vpop.xlane.xlu0 %2074
    %2076 = vadd.xlane.f32.xlu0 %v1778
    %v2077 = vpop.xlane.xlu0 %2076
    %2078 = vadd.xlane.f32.xlu0 %v1779
    %v2079 = vpop.xlane.xlu0 %2078
    %2080 = vadd.xlane.f32.xlu0 %v1780
    %v2081 = vpop.xlane.xlu0 %2080
    %2082 = vadd.xlane.f32.xlu0 %v1781
    %v2083 = vpop.xlane.xlu0 %2082
    %2084 = vadd.xlane.f32.xlu0 %v1782
    %v2085 = vpop.xlane.xlu0 %2084
    %2086 = vadd.xlane.f32.xlu0 %v1783
    %v2087 = vpop.xlane.xlu0 %2086
    %2088 = vadd.xlane.f32.xlu0 %v1784
    %v2089 = vpop.xlane.xlu0 %2088
    %2090 = vadd.xlane.f32.xlu0 %v1785
    %v2091 = vpop.xlane.xlu0 %2090
    %2092 = vadd.xlane.f32.xlu0 %v1786
    %v2093 = vpop.xlane.xlu0 %2092
    %2094 = vadd.xlane.f32.xlu0 %v1787
    %v2095 = vpop.xlane.xlu0 %2094
    %2096 = vadd.xlane.f32.xlu0 %v1788
    %v2097 = vpop.xlane.xlu0 %2096
    %2098 = vadd.xlane.f32.xlu0 %v1789
    %v2099 = vpop.xlane.xlu0 %2098
    %2100 = vadd.xlane.f32.xlu0 %v1790
    %v2101 = vpop.xlane.xlu0 %2100
    %2102 = vadd.xlane.f32.xlu0 %v1791
    %v2103 = vpop.xlane.xlu0 %2102
    %2104 = vadd.xlane.f32.xlu0 %v1792
    %v2105 = vpop.xlane.xlu0 %2104
    %2106 = vadd.xlane.f32.xlu0 %v1793
    %v2107 = vpop.xlane.xlu0 %2106
    %2108 = vadd.xlane.f32.xlu0 %v1794
    %v2109 = vpop.xlane.xlu0 %2108
    %2110 = vadd.xlane.f32.xlu0 %v1795
    %v2111 = vpop.xlane.xlu0 %2110
    %2112 = vadd.xlane.f32.xlu0 %v1796
    %v2113 = vpop.xlane.xlu0 %2112
    %2114 = vadd.xlane.f32.xlu0 %v1797
    %v2115 = vpop.xlane.xlu0 %2114
    %2116 = vadd.xlane.f32.xlu0 %v1798
    %v2117 = vpop.xlane.xlu0 %2116
    %2118 = vadd.xlane.f32.xlu0 %v1799
    %v2119 = vpop.xlane.xlu0 %2118
    %2120 = vadd.xlane.f32.xlu0 %v1800
    %v2121 = vpop.xlane.xlu0 %2120
    %2122 = vadd.xlane.f32.xlu0 %v1801
    %v2123 = vpop.xlane.xlu0 %2122
    %2124 = vadd.xlane.f32.xlu0 %v1802
    %v2125 = vpop.xlane.xlu0 %2124
    %2126 = vadd.xlane.f32.xlu0 %v1803
    %v2127 = vpop.xlane.xlu0 %2126
    %2128 = vadd.xlane.f32.xlu0 %v1804
    %v2129 = vpop.xlane.xlu0 %2128
    %2130 = vadd.xlane.f32.xlu0 %v1805
    %v2131 = vpop.xlane.xlu0 %2130
    %2132 = vadd.xlane.f32.xlu0 %v1806
    %v2133 = vpop.xlane.xlu0 %2132
    %2134 = vadd.xlane.f32.xlu0 %v1807
    %v2135 = vpop.xlane.xlu0 %2134
    %2136 = vadd.xlane.f32.xlu0 %v1808
    %v2137 = vpop.xlane.xlu0 %2136
    %2138 = vadd.xlane.f32.xlu0 %v1809
    %v2139 = vpop.xlane.xlu0 %2138
    %2140 = vadd.xlane.f32.xlu0 %v1810
    %v2141 = vpop.xlane.xlu0 %2140
    %2142 = vadd.xlane.f32.xlu0 %v1811
    %v2143 = vpop.xlane.xlu0 %2142
    %2144 = vadd.xlane.f32.xlu0 %v1812
    %v2145 = vpop.xlane.xlu0 %2144
    %2146 = vadd.xlane.f32.xlu0 %v1813
    %v2147 = vpop.xlane.xlu0 %2146
    %2148 = vadd.xlane.f32.xlu0 %v1814
    %v2149 = vpop.xlane.xlu0 %2148
    %2150 = vadd.xlane.f32.xlu0 %v1815
    %v2151 = vpop.xlane.xlu0 %2150
    %2152 = vadd.xlane.f32.xlu0 %v1816
    %v2153 = vpop.xlane.xlu0 %2152
    %2154 = vadd.xlane.f32.xlu0 %v1817
    %v2155 = vpop.xlane.xlu0 %2154
    %2156 = vadd.xlane.f32.xlu0 %v1818
    %v2157 = vpop.xlane.xlu0 %2156
    %2158 = vadd.xlane.f32.xlu0 %v1819
    %v2159 = vpop.xlane.xlu0 %2158
    %2160 = vadd.xlane.f32.xlu0 %v1820
    %v2161 = vpop.xlane.xlu0 %2160
    %2162 = vadd.xlane.f32.xlu0 %v1821
    %v2163 = vpop.xlane.xlu0 %2162
    %2164 = vadd.xlane.f32.xlu0 %v1822
    %v2165 = vpop.xlane.xlu0 %2164
    %2166 = vadd.xlane.f32.xlu0 %v1823
    %v2167 = vpop.xlane.xlu0 %2166
    %2168 = vadd.xlane.f32.xlu0 %v1824
    %v2169 = vpop.xlane.xlu0 %2168
    %2170 = vadd.xlane.f32.xlu0 %v1825
    %v2171 = vpop.xlane.xlu0 %2170
    %2172 = vadd.xlane.f32.xlu0 %v1826
    %v2173 = vpop.xlane.xlu0 %2172
    %2174 = vadd.xlane.f32.xlu0 %v1827
    %v2175 = vpop.xlane.xlu0 %2174
    %2176 = vadd.xlane.f32.xlu0 %v1828
    %v2177 = vpop.xlane.xlu0 %2176
    %2178 = vadd.xlane.f32.xlu0 %v1829
    %v2179 = vpop.xlane.xlu0 %2178
    %2180 = vadd.xlane.f32.xlu0 %v1830
    %v2181 = vpop.xlane.xlu0 %2180
    %2182 = vadd.xlane.f32.xlu0 %v1831
    %v2183 = vpop.xlane.xlu0 %2182
    %2184 = vadd.xlane.f32.xlu0 %v1832
    %v2185 = vpop.xlane.xlu0 %2184
    %2186 = vadd.xlane.f32.xlu0 %v1833
    %v2187 = vpop.xlane.xlu0 %2186
    %2188 = vadd.xlane.f32.xlu0 %v1834
    %v2189 = vpop.xlane.xlu0 %2188
    %2190 = vadd.xlane.f32.xlu0 %v1835
    %v2191 = vpop.xlane.xlu0 %2190
    %2192 = vadd.xlane.f32.xlu0 %v1836
    %v2193 = vpop.xlane.xlu0 %2192
    %2194 = vadd.xlane.f32.xlu0 %v1837
    %v2195 = vpop.xlane.xlu0 %2194
    %2196 = vadd.xlane.f32.xlu0 %v1838
    %v2197 = vpop.xlane.xlu0 %2196
    %2198 = vadd.xlane.f32.xlu0 %v1839
    %v2199 = vpop.xlane.xlu0 %2198
    %2200 = vadd.xlane.f32.xlu0 %v1840
    %v2201 = vpop.xlane.xlu0 %2200
    %2202 = vadd.xlane.f32.xlu0 %v1841
    %v2203 = vpop.xlane.xlu0 %2202
    %2204 = vadd.xlane.f32.xlu0 %v1842
    %v2205 = vpop.xlane.xlu0 %2204
    %2206 = vadd.xlane.f32.xlu0 %v1843
    %v2207 = vpop.xlane.xlu0 %2206
    %2208 = vadd.xlane.f32.xlu0 %v1844
    %v2209 = vpop.xlane.xlu0 %2208
    %2210 = vadd.xlane.f32.xlu0 %v1845
    %v2211 = vpop.xlane.xlu0 %2210
    %2212 = vadd.xlane.f32.xlu0 %v1846
    %v2213 = vpop.xlane.xlu0 %2212
    %2214 = vadd.xlane.f32.xlu0 %v1847
    %v2215 = vpop.xlane.xlu0 %2214
    %2216 = vadd.xlane.f32.xlu0 %v1848
    %v2217 = vpop.xlane.xlu0 %2216
    %2218 = vadd.xlane.f32.xlu0 %v1849
    %v2219 = vpop.xlane.xlu0 %2218
    %2220 = vadd.xlane.f32.xlu0 %v1850
    %v2221 = vpop.xlane.xlu0 %2220
    %2222 = vadd.xlane.f32.xlu0 %v1851
    %v2223 = vpop.xlane.xlu0 %2222
    %2224 = vadd.xlane.f32.xlu0 %v1852
    %v2225 = vpop.xlane.xlu0 %2224
    %2226 = vadd.xlane.f32.xlu0 %v1853
    %v2227 = vpop.xlane.xlu0 %2226
    %2228 = vadd.xlane.f32.xlu0 %v1854
    %v2229 = vpop.xlane.xlu0 %2228
    %2230 = vadd.xlane.f32.xlu0 %v1855
    %v2231 = vpop.xlane.xlu0 %2230
    %2232 = vadd.xlane.f32.xlu0 %v1856
    %v2233 = vpop.xlane.xlu0 %2232
    %2234 = vadd.xlane.f32.xlu0 %v1857
    %v2235 = vpop.xlane.xlu0 %2234
    %2236 = vadd.xlane.f32.xlu0 %v1858
    %v2237 = vpop.xlane.xlu0 %2236
    %2238 = vadd.xlane.f32.xlu0 %v1859
    %v2239 = vpop.xlane.xlu0 %2238
    %2240 = vadd.xlane.f32.xlu0 %v1860
    %v2241 = vpop.xlane.xlu0 %2240
    %2242 = vadd.xlane.f32.xlu0 %v1861
    %v2243 = vpop.xlane.xlu0 %2242
    %2244 = vadd.xlane.f32.xlu0 %v1862
    %v2245 = vpop.xlane.xlu0 %2244
    %2246 = vadd.xlane.f32.xlu0 %v1863
    %v2247 = vpop.xlane.xlu0 %2246
    %2248 = vadd.xlane.f32.xlu0 %v1864
    %v2249 = vpop.xlane.xlu0 %2248
    %2250 = vadd.xlane.f32.xlu0 %v1865
    %v2251 = vpop.xlane.xlu0 %2250
    %2252 = vadd.xlane.f32.xlu0 %v1866
    %v2253 = vpop.xlane.xlu0 %2252
    %2254 = vadd.xlane.f32.xlu0 %v1867
    %v2255 = vpop.xlane.xlu0 %2254
    %2256 = vadd.xlane.f32.xlu0 %v1868
    %v2257 = vpop.xlane.xlu0 %2256
    %2258 = vadd.xlane.f32.xlu0 %v1869
    %v2259 = vpop.xlane.xlu0 %2258
    %2260 = vadd.xlane.f32.xlu0 %v1870
    %v2261 = vpop.xlane.xlu0 %2260
    %2262 = vadd.xlane.f32.xlu0 %v1871
    %v2263 = vpop.xlane.xlu0 %2262
    %2264 = vadd.xlane.f32.xlu0 %v1872
    %v2265 = vpop.xlane.xlu0 %2264
    %2266 = vadd.xlane.f32.xlu0 %v1873
    %v2267 = vpop.xlane.xlu0 %2266
    %2268 = vadd.xlane.f32.xlu0 %v1874
    %v2269 = vpop.xlane.xlu0 %2268
    %2270 = vadd.xlane.f32.xlu0 %v1875
    %v2271 = vpop.xlane.xlu0 %2270
    %2272 = vadd.xlane.f32.xlu0 %v1876
    %v2273 = vpop.xlane.xlu0 %2272
    %2274 = vadd.xlane.f32.xlu0 %v1877
    %v2275 = vpop.xlane.xlu0 %2274
    %2276 = vadd.xlane.f32.xlu0 %v1878
    %v2277 = vpop.xlane.xlu0 %2276
    %2278 = vadd.xlane.f32.xlu0 %v1879
    %v2279 = vpop.xlane.xlu0 %2278
    %2280 = vadd.xlane.f32.xlu0 %v1880
    %v2281 = vpop.xlane.xlu0 %2280
    %2282 = vadd.xlane.f32.xlu0 %v1881
    %v2283 = vpop.xlane.xlu0 %2282
    %2284 = vadd.xlane.f32.xlu0 %v1882
    %v2285 = vpop.xlane.xlu0 %2284
    %2286 = vadd.xlane.f32.xlu0 %v1883
    %v2287 = vpop.xlane.xlu0 %2286
    %2288 = vadd.xlane.f32.xlu0 %v1884
    %v2289 = vpop.xlane.xlu0 %2288
    %2290 = vadd.xlane.f32.xlu0 %v1885
    %v2291 = vpop.xlane.xlu0 %2290
    %2292 = vadd.xlane.f32.xlu0 %v1886
    %v2293 = vpop.xlane.xlu0 %2292
    %2294 = vadd.xlane.f32.xlu0 %v1887
    %v2295 = vpop.xlane.xlu0 %2294
    %2296 = vadd.xlane.f32.xlu0 %v1888
    %v2297 = vpop.xlane.xlu0 %2296
    %2298 = vadd.xlane.f32.xlu0 %v1889
    %v2299 = vpop.xlane.xlu0 %2298
    %2300 = vadd.xlane.f32.xlu0 %v1890
    %v2301 = vpop.xlane.xlu0 %2300
    %2302 = vadd.xlane.f32.xlu0 %v1891
    %v2303 = vpop.xlane.xlu0 %2302
    %2304 = vadd.xlane.f32.xlu0 %v1892
    %v2305 = vpop.xlane.xlu0 %2304
    %2306 = vadd.xlane.f32.xlu0 %v1893
    %v2307 = vpop.xlane.xlu0 %2306
    %2308 = vadd.xlane.f32.xlu0 %v1894
    %v2309 = vpop.xlane.xlu0 %2308
    %2310 = vadd.xlane.f32.xlu0 %v1895
    %v2311 = vpop.xlane.xlu0 %2310
    %2312 = vadd.xlane.f32.xlu0 %v1896
    %v2313 = vpop.xlane.xlu0 %2312
    %2314 = vadd.xlane.f32.xlu0 %v1897
    %v2315 = vpop.xlane.xlu0 %2314
    %2316 = vadd.xlane.f32.xlu0 %v1898
    %v2317 = vpop.xlane.xlu0 %2316
    %2318 = vadd.xlane.f32.xlu0 %v1899
    %v2319 = vpop.xlane.xlu0 %2318
    %2320 = vadd.xlane.f32.xlu0 %v1900
    %v2321 = vpop.xlane.xlu0 %2320
    %2322 = vadd.xlane.f32.xlu0 %v1901
    %v2323 = vpop.xlane.xlu0 %2322
    %2324 = vadd.xlane.f32.xlu0 %v1902
    %v2325 = vpop.xlane.xlu0 %2324
    %2326 = vadd.xlane.f32.xlu0 %v1903
    %v2327 = vpop.xlane.xlu0 %2326
    %2328 = vadd.xlane.f32.xlu0 %v1904
    %v2329 = vpop.xlane.xlu0 %2328
    %2330 = vadd.xlane.f32.xlu0 %v1905
    %v2331 = vpop.xlane.xlu0 %2330
    %2332 = vadd.xlane.f32.xlu0 %v1906
    %v2333 = vpop.xlane.xlu0 %2332
    %2334 = vadd.xlane.f32.xlu0 %v1907
    %v2335 = vpop.xlane.xlu0 %2334
    %2336 = vadd.xlane.f32.xlu0 %v1908
    %v2337 = vpop.xlane.xlu0 %2336
    %2338 = vadd.xlane.f32.xlu0 %v1909
    %v2339 = vpop.xlane.xlu0 %2338
    %2340 = vadd.xlane.f32.xlu0 %v1910
    %v2341 = vpop.xlane.xlu0 %2340
    %2342 = vadd.xlane.f32.xlu0 %v1911
    %v2343 = vpop.xlane.xlu0 %2342
    %2344 = vadd.xlane.f32.xlu0 %v1912
    %v2345 = vpop.xlane.xlu0 %2344
    %2346 = vadd.xlane.f32.xlu0 %v1913
    %v2347 = vpop.xlane.xlu0 %2346
    %2348 = vadd.xlane.f32.xlu0 %v1914
    %v2349 = vpop.xlane.xlu0 %2348
    %2350 = vadd.xlane.f32.xlu0 %v1915
    %v2351 = vpop.xlane.xlu0 %2350
    %2352 = vadd.xlane.f32.xlu0 %v1916
    %v2353 = vpop.xlane.xlu0 %2352
    %2354 = vadd.xlane.f32.xlu0 %v1917
    %v2355 = vpop.xlane.xlu0 %2354
    %2356 = vadd.xlane.f32.xlu0 %v1918
    %v2357 = vpop.xlane.xlu0 %2356
    %2358 = vadd.xlane.f32.xlu0 %v1919
    %v2359 = vpop.xlane.xlu0 %2358
    %2360 = vadd.xlane.f32.xlu0 %v1920
    %v2361 = vpop.xlane.xlu0 %2360
    %2362 = vadd.xlane.f32.xlu0 %v1921
    %v2363 = vpop.xlane.xlu0 %2362
    %2364 = vadd.xlane.f32.xlu0 %v1922
    %v2365 = vpop.xlane.xlu0 %2364
    %2366 = vadd.xlane.f32.xlu0 %v1923
    %v2367 = vpop.xlane.xlu0 %2366
    %2368 = vadd.xlane.f32.xlu0 %v1924
    %v2369 = vpop.xlane.xlu0 %2368
    %2370 = vadd.xlane.f32.xlu0 %v1925
    %v2371 = vpop.xlane.xlu0 %2370
    %2372 = vadd.xlane.f32.xlu0 %v1926
    %v2373 = vpop.xlane.xlu0 %2372
    %2374 = vadd.xlane.f32.xlu0 %v1927
    %v2375 = vpop.xlane.xlu0 %2374
    %2376 = vadd.xlane.f32.xlu0 %v1928
    %v2377 = vpop.xlane.xlu0 %2376
    %2378 = vadd.xlane.f32.xlu0 %v1929
    %v2379 = vpop.xlane.xlu0 %2378
    %2380 = vadd.xlane.f32.xlu0 %v1930
    %v2381 = vpop.xlane.xlu0 %2380
    %2382 = vadd.xlane.f32.xlu0 %v1931
    %v2383 = vpop.xlane.xlu0 %2382
    %2384 = vadd.xlane.f32.xlu0 %v1932
    %v2385 = vpop.xlane.xlu0 %2384
    %2386 = vadd.xlane.f32.xlu0 %v1933
    %v2387 = vpop.xlane.xlu0 %2386
    %2388 = vadd.xlane.f32.xlu0 %v1934
    %v2389 = vpop.xlane.xlu0 %2388
    %2390 = vadd.xlane.f32.xlu0 %v1935
    %v2391 = vpop.xlane.xlu0 %2390
    %2392 = vadd.xlane.f32.xlu0 %v1936
    %v2393 = vpop.xlane.xlu0 %2392
    %2394 = vadd.xlane.f32.xlu0 %v1937
    %v2395 = vpop.xlane.xlu0 %2394
    %2396 = vadd.xlane.f32.xlu0 %v1938
    %v2397 = vpop.xlane.xlu0 %2396
    %2398 = vadd.xlane.f32.xlu0 %v1939
    %v2399 = vpop.xlane.xlu0 %2398
    %2400 = vadd.xlane.f32.xlu0 %v1940
    %v2401 = vpop.xlane.xlu0 %2400
    %2402 = vadd.xlane.f32.xlu0 %v1941
    %v2403 = vpop.xlane.xlu0 %2402
    %2404 = vadd.xlane.f32.xlu0 %v1942
    %v2405 = vpop.xlane.xlu0 %2404
    %2406 = vadd.xlane.f32.xlu0 %v1943
    %v2407 = vpop.xlane.xlu0 %2406
    %2408 = vadd.xlane.f32.xlu0 %v1944
    %v2409 = vpop.xlane.xlu0 %2408
    %2410 = vadd.xlane.f32.xlu0 %v1945
    %v2411 = vpop.xlane.xlu0 %2410
    %2412 = vadd.xlane.f32.xlu0 %v1946
    %v2413 = vpop.xlane.xlu0 %2412
    %2414 = vadd.xlane.f32.xlu0 %v1947
    %v2415 = vpop.xlane.xlu0 %2414
    %2416 = vadd.xlane.f32.xlu0 %v1948
    %v2417 = vpop.xlane.xlu0 %2416
    %2418 = vadd.xlane.f32.xlu0 %v1949
    %v2419 = vpop.xlane.xlu0 %2418
    %2420 = vadd.xlane.f32.xlu0 %v1950
    %v2421 = vpop.xlane.xlu0 %2420
    %2422 = vadd.xlane.f32.xlu0 %v1951
    %v2423 = vpop.xlane.xlu0 %2422
    %2424 = vadd.xlane.f32.xlu0 %v1952
    %v2425 = vpop.xlane.xlu0 %2424
    %2426 = vadd.xlane.f32.xlu0 %v1953
    %v2427 = vpop.xlane.xlu0 %2426
    %2428 = vadd.xlane.f32.xlu0 %v1954
    %v2429 = vpop.xlane.xlu0 %2428
    %2430 = vadd.xlane.f32.xlu0 %v1955
    %v2431 = vpop.xlane.xlu0 %2430
    %2432 = vadd.xlane.f32.xlu0 %v1956
    %v2433 = vpop.xlane.xlu0 %2432
    %2434 = vadd.xlane.f32.xlu0 %v1957
    %v2435 = vpop.xlane.xlu0 %2434
    %2436 = vadd.xlane.f32.xlu0 %v1958
    %v2437 = vpop.xlane.xlu0 %2436
    %2438 = vadd.xlane.f32.xlu0 %v1959
    %v2439 = vpop.xlane.xlu0 %2438
    %2440 = vadd.xlane.f32.xlu0 %v1960
    %v2441 = vpop.xlane.xlu0 %2440
    %2442 = vadd.xlane.f32.xlu0 %v1961
    %v2443 = vpop.xlane.xlu0 %2442
    %2444 = vadd.xlane.f32.xlu0 %v1962
    %v2445 = vpop.xlane.xlu0 %2444
    %2446 = vadd.xlane.f32.xlu0 %v1963
    %v2447 = vpop.xlane.xlu0 %2446
    %2448 = vadd.xlane.f32.xlu0 %v1964
    %v2449 = vpop.xlane.xlu0 %2448
    %2450 = vadd.xlane.f32.xlu0 %v1965
    %v2451 = vpop.xlane.xlu0 %2450
    %2452 = vadd.xlane.f32.xlu0 %v1966
    %v2453 = vpop.xlane.xlu0 %2452
    %2454 = vadd.xlane.f32.xlu0 %v1967
    %v2455 = vpop.xlane.xlu0 %2454
    %2456 = vadd.xlane.f32.xlu0 %v1968
    %v2457 = vpop.xlane.xlu0 %2456
    %2458 = vadd.xlane.f32.xlu0 %v1969
    %v2459 = vpop.xlane.xlu0 %2458
    %2460 = vadd.xlane.f32.xlu0 %v1970
    %v2461 = vpop.xlane.xlu0 %2460
    %2462 = vadd.xlane.f32.xlu0 %v1971
    %v2463 = vpop.xlane.xlu0 %2462
    %2464 = vadd.xlane.f32.xlu0 %v1972
    %v2465 = vpop.xlane.xlu0 %2464
    %2466 = vadd.xlane.f32.xlu0 %v1973
    %v2467 = vpop.xlane.xlu0 %2466
    %2468 = vadd.xlane.f32.xlu0 %v1974
    %v2469 = vpop.xlane.xlu0 %2468
    %2470 = vadd.xlane.f32.xlu0 %v1975
    %v2471 = vpop.xlane.xlu0 %2470
    %2472 = vadd.xlane.f32.xlu0 %v1976
    %v2473 = vpop.xlane.xlu0 %2472
    %2474 = vadd.xlane.f32.xlu0 %v1977
    %v2475 = vpop.xlane.xlu0 %2474
    %2476 = vadd.xlane.f32.xlu0 %v1978
    %v2477 = vpop.xlane.xlu0 %2476
    %2478 = vadd.xlane.f32.xlu0 %v1979
    %v2479 = vpop.xlane.xlu0 %2478
    %2480 = vadd.xlane.f32.xlu0 %v1980
    %v2481 = vpop.xlane.xlu0 %2480
    %2482 = vadd.xlane.f32.xlu0 %v1981
    %v2483 = vpop.xlane.xlu0 %2482
    %2484 = vadd.xlane.f32.xlu0 %v1982
    %v2485 = vpop.xlane.xlu0 %2484
    %2486 = vadd.xlane.f32.xlu0 %v1983
    %v2487 = vpop.xlane.xlu0 %2486
    %2488 = vadd.xlane.f32.xlu0 %v1984
    %v2489 = vpop.xlane.xlu0 %2488
    %2490 = vadd.xlane.f32.xlu0 %v1985
    %v2491 = vpop.xlane.xlu0 %2490
    %2492 = vadd.xlane.f32.xlu0 %v1986
    %v2493 = vpop.xlane.xlu0 %2492
    %2494 = vadd.xlane.f32.xlu0 %v1987
    %v2495 = vpop.xlane.xlu0 %2494
    %2496 = vadd.xlane.f32.xlu0 %v1988
    %v2497 = vpop.xlane.xlu0 %2496
    %2498 = vadd.xlane.f32.xlu0 %v1989
    %v2499 = vpop.xlane.xlu0 %2498
    %2500 = vadd.xlane.f32.xlu0 %v1990
    %v2501 = vpop.xlane.xlu0 %2500
    %2502 = vadd.xlane.f32.xlu0 %v1991
    %v2503 = vpop.xlane.xlu0 %2502
    %v2760 = vlaneseq
    %v2761 = vand.u32 %v2760, 127
    %v2762 = vlaneseq
    %v2763 = vshrl.u32 %v2762, 7
    %v2764 = vsub.s32 %v2761, %v2763
    %v2765 = vrot.slane %v1993, %v2764
    %v2766 = vadd.s32 %v2761, 4294967288
    %v2767 = vlaneseq
    %v2768 = vshrl.u32 %v2767, 7
    %v2769 = vsub.s32 %v2766, %v2768
    %v2770 = vrot.slane %v1995, %v2769
    %vm2771 = vcmask 130112
    %v2772 = vsel %vm2771, %v2770, %v2765
    %v2773 = vadd.s32 %v2761, 4294967280
    %v2774 = vlaneseq
    %v2775 = vshrl.u32 %v2774, 7
    %v2776 = vsub.s32 %v2773, %v2775
    %v2777 = vrot.slane %v1997, %v2776
    %vm2778 = vcmask 195712
    %v2779 = vsel %vm2778, %v2777, %v2772
    %v2780 = vadd.s32 %v2761, 4294967272
    %v2781 = vlaneseq
    %v2782 = vshrl.u32 %v2781, 7
    %v2783 = vsub.s32 %v2780, %v2782
    %v2784 = vrot.slane %v1999, %v2783
    %vm2785 = vcmask 261312
    %v2786 = vsel %vm2785, %v2784, %v2779
    %v2787 = vadd.s32 %v2761, 4294967264
    %v2788 = vlaneseq
    %v2789 = vshrl.u32 %v2788, 7
    %v2790 = vsub.s32 %v2787, %v2789
    %v2791 = vrot.slane %v2001, %v2790
    %vm2792 = vcmask 326912
    %v2793 = vsel %vm2792, %v2791, %v2786
    %v2794 = vadd.s32 %v2761, 4294967256
    %v2795 = vlaneseq
    %v2796 = vshrl.u32 %v2795, 7
    %v2797 = vsub.s32 %v2794, %v2796
    %v2798 = vrot.slane %v2003, %v2797
    %vm2799 = vcmask 392512
    %v2800 = vsel %vm2799, %v2798, %v2793
    %v2801 = vadd.s32 %v2761, 4294967248
    %v2802 = vlaneseq
    %v2803 = vshrl.u32 %v2802, 7
    %v2804 = vsub.s32 %v2801, %v2803
    %v2805 = vrot.slane %v2005, %v2804
    %vm2806 = vcmask 458112
    %v2807 = vsel %vm2806, %v2805, %v2800
    %v2808 = vadd.s32 %v2761, 4294967240
    %v2809 = vlaneseq
    %v2810 = vshrl.u32 %v2809, 7
    %v2811 = vsub.s32 %v2808, %v2810
    %v2812 = vrot.slane %v2007, %v2811
    %vm2813 = vcmask 523712
    %v2814 = vsel %vm2813, %v2812, %v2807
    %v2815 = vadd.s32 %v2761, 4294967232
    %v2816 = vlaneseq
    %v2817 = vshrl.u32 %v2816, 7
    %v2818 = vsub.s32 %v2815, %v2817
    %v2819 = vrot.slane %v2009, %v2818
    %vm2820 = vcmask 589312
    %v2821 = vsel %vm2820, %v2819, %v2814
    %v2822 = vadd.s32 %v2761, 4294967224
    %v2823 = vlaneseq
    %v2824 = vshrl.u32 %v2823, 7
    %v2825 = vsub.s32 %v2822, %v2824
    %v2826 = vrot.slane %v2011, %v2825
    %vm2827 = vcmask 654912
    %v2828 = vsel %vm2827, %v2826, %v2821
    %v2829 = vadd.s32 %v2761, 4294967216
    %v2830 = vlaneseq
    %v2831 = vshrl.u32 %v2830, 7
    %v2832 = vsub.s32 %v2829, %v2831
    %v2833 = vrot.slane %v2013, %v2832
    %vm2834 = vcmask 720512
    %v2835 = vsel %vm2834, %v2833, %v2828
    %v2836 = vadd.s32 %v2761, 4294967208
    %v2837 = vlaneseq
    %v2838 = vshrl.u32 %v2837, 7
    %v2839 = vsub.s32 %v2836, %v2838
    %v2840 = vrot.slane %v2015, %v2839
    %vm2841 = vcmask 786112
    %v2842 = vsel %vm2841, %v2840, %v2835
    %v2843 = vadd.s32 %v2761, 4294967200
    %v2844 = vlaneseq
    %v2845 = vshrl.u32 %v2844, 7
    %v2846 = vsub.s32 %v2843, %v2845
    %v2847 = vrot.slane %v2017, %v2846
    %vm2848 = vcmask 851712
    %v2849 = vsel %vm2848, %v2847, %v2842
    %v2850 = vadd.s32 %v2761, 4294967192
    %v2851 = vlaneseq
    %v2852 = vshrl.u32 %v2851, 7
    %v2853 = vsub.s32 %v2850, %v2852
    %v2854 = vrot.slane %v2019, %v2853
    %vm2855 = vcmask 917312
    %v2856 = vsel %vm2855, %v2854, %v2849
    %v2857 = vadd.s32 %v2761, 4294967184
    %v2858 = vlaneseq
    %v2859 = vshrl.u32 %v2858, 7
    %v2860 = vsub.s32 %v2857, %v2859
    %v2861 = vrot.slane %v2021, %v2860
    %vm2862 = vcmask 982912
    %v2863 = vsel %vm2862, %v2861, %v2856
    %v2864 = vadd.s32 %v2761, 4294967176
    %v2865 = vlaneseq
    %v2866 = vshrl.u32 %v2865, 7
    %v2867 = vsub.s32 %v2864, %v2866
    %v2868 = vrot.slane %v2023, %v2867
    %vm2869 = vcmask 1048512
    %v2870 = vsel %vm2869, %v2868, %v2863
    %v2871 = vlaneseq
    %v2872 = vshrl.u32 %v2871, 7
    %v2873 = vsub.s32 %v2761, %v2872
    %v2874 = vrot.slane %v2025, %v2873
    %v2875 = vlaneseq
    %v2876 = vshrl.u32 %v2875, 7
    %v2877 = vsub.s32 %v2766, %v2876
    %v2878 = vrot.slane %v2027, %v2877
    %v2879 = vsel %vm2771, %v2878, %v2874
    %v2880 = vlaneseq
    %v2881 = vshrl.u32 %v2880, 7
    %v2882 = vsub.s32 %v2773, %v2881
    %v2883 = vrot.slane %v2029, %v2882
    %v2884 = vsel %vm2778, %v2883, %v2879
    %v2885 = vlaneseq
    %v2886 = vshrl.u32 %v2885, 7
    %v2887 = vsub.s32 %v2780, %v2886
    %v2888 = vrot.slane %v2031, %v2887
    %v2889 = vsel %vm2785, %v2888, %v2884
    %v2890 = vlaneseq
    %v2891 = vshrl.u32 %v2890, 7
    %v2892 = vsub.s32 %v2787, %v2891
    %v2893 = vrot.slane %v2033, %v2892
    %v2894 = vsel %vm2792, %v2893, %v2889
    %v2895 = vlaneseq
    %v2896 = vshrl.u32 %v2895, 7
    %v2897 = vsub.s32 %v2794, %v2896
    %v2898 = vrot.slane %v2035, %v2897
    %v2899 = vsel %vm2799, %v2898, %v2894
    %v2900 = vlaneseq
    %v2901 = vshrl.u32 %v2900, 7
    %v2902 = vsub.s32 %v2801, %v2901
    %v2903 = vrot.slane %v2037, %v2902
    %v2904 = vsel %vm2806, %v2903, %v2899
    %v2905 = vlaneseq
    %v2906 = vshrl.u32 %v2905, 7
    %v2907 = vsub.s32 %v2808, %v2906
    %v2908 = vrot.slane %v2039, %v2907
    %v2909 = vsel %vm2813, %v2908, %v2904
    %v2910 = vlaneseq
    %v2911 = vshrl.u32 %v2910, 7
    %v2912 = vsub.s32 %v2815, %v2911
    %v2913 = vrot.slane %v2041, %v2912
    %v2914 = vsel %vm2820, %v2913, %v2909
    %v2915 = vlaneseq
    %v2916 = vshrl.u32 %v2915, 7
    %v2917 = vsub.s32 %v2822, %v2916
    %v2918 = vrot.slane %v2043, %v2917
    %v2919 = vsel %vm2827, %v2918, %v2914
    %v2920 = vlaneseq
    %v2921 = vshrl.u32 %v2920, 7
    %v2922 = vsub.s32 %v2829, %v2921
    %v2923 = vrot.slane %v2045, %v2922
    %v2924 = vsel %vm2834, %v2923, %v2919
    %v2925 = vlaneseq
    %v2926 = vshrl.u32 %v2925, 7
    %v2927 = vsub.s32 %v2836, %v2926
    %v2928 = vrot.slane %v2047, %v2927
    %v2929 = vsel %vm2841, %v2928, %v2924
    %v2930 = vlaneseq
    %v2931 = vshrl.u32 %v2930, 7
    %v2932 = vsub.s32 %v2843, %v2931
    %v2933 = vrot.slane %v2049, %v2932
    %v2934 = vsel %vm2848, %v2933, %v2929
    %v2935 = vlaneseq
    %v2936 = vshrl.u32 %v2935, 7
    %v2937 = vsub.s32 %v2850, %v2936
    %v2938 = vrot.slane %v2051, %v2937
    %v2939 = vsel %vm2855, %v2938, %v2934
    %v2940 = vlaneseq
    %v2941 = vshrl.u32 %v2940, 7
    %v2942 = vsub.s32 %v2857, %v2941
    %v2943 = vrot.slane %v2053, %v2942
    %v2944 = vsel %vm2862, %v2943, %v2939
    %v2945 = vlaneseq
    %v2946 = vshrl.u32 %v2945, 7
    %v2947 = vsub.s32 %v2864, %v2946
    %v2948 = vrot.slane %v2055, %v2947
    %v2949 = vsel %vm2869, %v2948, %v2944
    %v2950 = vlaneseq
    %v2951 = vshrl.u32 %v2950, 7
    %v2952 = vsub.s32 %v2761, %v2951
    %v2953 = vrot.slane %v2057, %v2952
    %v2954 = vlaneseq
    %v2955 = vshrl.u32 %v2954, 7
    %v2956 = vsub.s32 %v2766, %v2955
    %v2957 = vrot.slane %v2059, %v2956
    %v2958 = vsel %vm2771, %v2957, %v2953
    %v2959 = vlaneseq
    %v2960 = vshrl.u32 %v2959, 7
    %v2961 = vsub.s32 %v2773, %v2960
    %v2962 = vrot.slane %v2061, %v2961
    %v2963 = vsel %vm2778, %v2962, %v2958
    %v2964 = vlaneseq
    %v2965 = vshrl.u32 %v2964, 7
    %v2966 = vsub.s32 %v2780, %v2965
    %v2967 = vrot.slane %v2063, %v2966
    %v2968 = vsel %vm2785, %v2967, %v2963
    %v2969 = vlaneseq
    %v2970 = vshrl.u32 %v2969, 7
    %v2971 = vsub.s32 %v2787, %v2970
    %v2972 = vrot.slane %v2065, %v2971
    %v2973 = vsel %vm2792, %v2972, %v2968
    %v2974 = vlaneseq
    %v2975 = vshrl.u32 %v2974, 7
    %v2976 = vsub.s32 %v2794, %v2975
    %v2977 = vrot.slane %v2067, %v2976
    %v2978 = vsel %vm2799, %v2977, %v2973
    %v2979 = vlaneseq
    %v2980 = vshrl.u32 %v2979, 7
    %v2981 = vsub.s32 %v2801, %v2980
    %v2982 = vrot.slane %v2069, %v2981
    %v2983 = vsel %vm2806, %v2982, %v2978
    %v2984 = vlaneseq
    %v2985 = vshrl.u32 %v2984, 7
    %v2986 = vsub.s32 %v2808, %v2985
    %v2987 = vrot.slane %v2071, %v2986
    %v2988 = vsel %vm2813, %v2987, %v2983
    %v2989 = vlaneseq
    %v2990 = vshrl.u32 %v2989, 7
    %v2991 = vsub.s32 %v2815, %v2990
    %v2992 = vrot.slane %v2073, %v2991
    %v2993 = vsel %vm2820, %v2992, %v2988
    %v2994 = vlaneseq
    %v2995 = vshrl.u32 %v2994, 7
    %v2996 = vsub.s32 %v2822, %v2995
    %v2997 = vrot.slane %v2075, %v2996
    %v2998 = vsel %vm2827, %v2997, %v2993
    %v2999 = vlaneseq
    %v3000 = vshrl.u32 %v2999, 7
    %v3001 = vsub.s32 %v2829, %v3000
    %v3002 = vrot.slane %v2077, %v3001
    %v3003 = vsel %vm2834, %v3002, %v2998
    %v3004 = vlaneseq
    %v3005 = vshrl.u32 %v3004, 7
    %v3006 = vsub.s32 %v2836, %v3005
    %v3007 = vrot.slane %v2079, %v3006
    %v3008 = vsel %vm2841, %v3007, %v3003
    %v3009 = vlaneseq
    %v3010 = vshrl.u32 %v3009, 7
    %v3011 = vsub.s32 %v2843, %v3010
    %v3012 = vrot.slane %v2081, %v3011
    %v3013 = vsel %vm2848, %v3012, %v3008
    %v3014 = vlaneseq
    %v3015 = vshrl.u32 %v3014, 7
    %v3016 = vsub.s32 %v2850, %v3015
    %v3017 = vrot.slane %v2083, %v3016
    %v3018 = vsel %vm2855, %v3017, %v3013
    %v3019 = vlaneseq
    %v3020 = vshrl.u32 %v3019, 7
    %v3021 = vsub.s32 %v2857, %v3020
    %v3022 = vrot.slane %v2085, %v3021
    %v3023 = vsel %vm2862, %v3022, %v3018
    %v3024 = vlaneseq
    %v3025 = vshrl.u32 %v3024, 7
    %v3026 = vsub.s32 %v2864, %v3025
    %v3027 = vrot.slane %v2087, %v3026
    %v3028 = vsel %vm2869, %v3027, %v3023
    %v3029 = vlaneseq
    %v3030 = vshrl.u32 %v3029, 7
    %v3031 = vsub.s32 %v2761, %v3030
    %v3032 = vrot.slane %v2089, %v3031
    %v3033 = vlaneseq
    %v3034 = vshrl.u32 %v3033, 7
    %v3035 = vsub.s32 %v2766, %v3034
    %v3036 = vrot.slane %v2091, %v3035
    %v3037 = vsel %vm2771, %v3036, %v3032
    %v3038 = vlaneseq
    %v3039 = vshrl.u32 %v3038, 7
    %v3040 = vsub.s32 %v2773, %v3039
    %v3041 = vrot.slane %v2093, %v3040
    %v3042 = vsel %vm2778, %v3041, %v3037
    %v3043 = vlaneseq
    %v3044 = vshrl.u32 %v3043, 7
    %v3045 = vsub.s32 %v2780, %v3044
    %v3046 = vrot.slane %v2095, %v3045
    %v3047 = vsel %vm2785, %v3046, %v3042
    %v3048 = vlaneseq
    %v3049 = vshrl.u32 %v3048, 7
    %v3050 = vsub.s32 %v2787, %v3049
    %v3051 = vrot.slane %v2097, %v3050
    %v3052 = vsel %vm2792, %v3051, %v3047
    %v3053 = vlaneseq
    %v3054 = vshrl.u32 %v3053, 7
    %v3055 = vsub.s32 %v2794, %v3054
    %v3056 = vrot.slane %v2099, %v3055
    %v3057 = vsel %vm2799, %v3056, %v3052
    %v3058 = vlaneseq
    %v3059 = vshrl.u32 %v3058, 7
    %v3060 = vsub.s32 %v2801, %v3059
    %v3061 = vrot.slane %v2101, %v3060
    %v3062 = vsel %vm2806, %v3061, %v3057
    %v3063 = vlaneseq
    %v3064 = vshrl.u32 %v3063, 7
    %v3065 = vsub.s32 %v2808, %v3064
    %v3066 = vrot.slane %v2103, %v3065
    %v3067 = vsel %vm2813, %v3066, %v3062
    %v3068 = vlaneseq
    %v3069 = vshrl.u32 %v3068, 7
    %v3070 = vsub.s32 %v2815, %v3069
    %v3071 = vrot.slane %v2105, %v3070
    %v3072 = vsel %vm2820, %v3071, %v3067
    %v3073 = vlaneseq
    %v3074 = vshrl.u32 %v3073, 7
    %v3075 = vsub.s32 %v2822, %v3074
    %v3076 = vrot.slane %v2107, %v3075
    %v3077 = vsel %vm2827, %v3076, %v3072
    %v3078 = vlaneseq
    %v3079 = vshrl.u32 %v3078, 7
    %v3080 = vsub.s32 %v2829, %v3079
    %v3081 = vrot.slane %v2109, %v3080
    %v3082 = vsel %vm2834, %v3081, %v3077
    %v3083 = vlaneseq
    %v3084 = vshrl.u32 %v3083, 7
    %v3085 = vsub.s32 %v2836, %v3084
    %v3086 = vrot.slane %v2111, %v3085
    %v3087 = vsel %vm2841, %v3086, %v3082
    %v3088 = vlaneseq
    %v3089 = vshrl.u32 %v3088, 7
    %v3090 = vsub.s32 %v2843, %v3089
    %v3091 = vrot.slane %v2113, %v3090
    %v3092 = vsel %vm2848, %v3091, %v3087
    %v3093 = vlaneseq
    %v3094 = vshrl.u32 %v3093, 7
    %v3095 = vsub.s32 %v2850, %v3094
    %v3096 = vrot.slane %v2115, %v3095
    %v3097 = vsel %vm2855, %v3096, %v3092
    %v3098 = vlaneseq
    %v3099 = vshrl.u32 %v3098, 7
    %v3100 = vsub.s32 %v2857, %v3099
    %v3101 = vrot.slane %v2117, %v3100
    %v3102 = vsel %vm2862, %v3101, %v3097
    %v3103 = vlaneseq
    %v3104 = vshrl.u32 %v3103, 7
    %v3105 = vsub.s32 %v2864, %v3104
    %v3106 = vrot.slane %v2119, %v3105
    %v3107 = vsel %vm2869, %v3106, %v3102
    %v3108 = vlaneseq
    %v3109 = vshrl.u32 %v3108, 7
    %v3110 = vsub.s32 %v2761, %v3109
    %v3111 = vrot.slane %v2121, %v3110
    %v3112 = vlaneseq
    %v3113 = vshrl.u32 %v3112, 7
    %v3114 = vsub.s32 %v2766, %v3113
    %v3115 = vrot.slane %v2123, %v3114
    %v3116 = vsel %vm2771, %v3115, %v3111
    %v3117 = vlaneseq
    %v3118 = vshrl.u32 %v3117, 7
    %v3119 = vsub.s32 %v2773, %v3118
    %v3120 = vrot.slane %v2125, %v3119
    %v3121 = vsel %vm2778, %v3120, %v3116
    %v3122 = vlaneseq
    %v3123 = vshrl.u32 %v3122, 7
    %v3124 = vsub.s32 %v2780, %v3123
    %v3125 = vrot.slane %v2127, %v3124
    %v3126 = vsel %vm2785, %v3125, %v3121
    %v3127 = vlaneseq
    %v3128 = vshrl.u32 %v3127, 7
    %v3129 = vsub.s32 %v2787, %v3128
    %v3130 = vrot.slane %v2129, %v3129
    %v3131 = vsel %vm2792, %v3130, %v3126
    %v3132 = vlaneseq
    %v3133 = vshrl.u32 %v3132, 7
    %v3134 = vsub.s32 %v2794, %v3133
    %v3135 = vrot.slane %v2131, %v3134
    %v3136 = vsel %vm2799, %v3135, %v3131
    %v3137 = vlaneseq
    %v3138 = vshrl.u32 %v3137, 7
    %v3139 = vsub.s32 %v2801, %v3138
    %v3140 = vrot.slane %v2133, %v3139
    %v3141 = vsel %vm2806, %v3140, %v3136
    %v3142 = vlaneseq
    %v3143 = vshrl.u32 %v3142, 7
    %v3144 = vsub.s32 %v2808, %v3143
    %v3145 = vrot.slane %v2135, %v3144
    %v3146 = vsel %vm2813, %v3145, %v3141
    %v3147 = vlaneseq
    %v3148 = vshrl.u32 %v3147, 7
    %v3149 = vsub.s32 %v2815, %v3148
    %v3150 = vrot.slane %v2137, %v3149
    %v3151 = vsel %vm2820, %v3150, %v3146
    %v3152 = vlaneseq
    %v3153 = vshrl.u32 %v3152, 7
    %v3154 = vsub.s32 %v2822, %v3153
    %v3155 = vrot.slane %v2139, %v3154
    %v3156 = vsel %vm2827, %v3155, %v3151
    %v3157 = vlaneseq
    %v3158 = vshrl.u32 %v3157, 7
    %v3159 = vsub.s32 %v2829, %v3158
    %v3160 = vrot.slane %v2141, %v3159
    %v3161 = vsel %vm2834, %v3160, %v3156
    %v3162 = vlaneseq
    %v3163 = vshrl.u32 %v3162, 7
    %v3164 = vsub.s32 %v2836, %v3163
    %v3165 = vrot.slane %v2143, %v3164
    %v3166 = vsel %vm2841, %v3165, %v3161
    %v3167 = vlaneseq
    %v3168 = vshrl.u32 %v3167, 7
    %v3169 = vsub.s32 %v2843, %v3168
    %v3170 = vrot.slane %v2145, %v3169
    %v3171 = vsel %vm2848, %v3170, %v3166
    %v3172 = vlaneseq
    %v3173 = vshrl.u32 %v3172, 7
    %v3174 = vsub.s32 %v2850, %v3173
    %v3175 = vrot.slane %v2147, %v3174
    %v3176 = vsel %vm2855, %v3175, %v3171
    %v3177 = vlaneseq
    %v3178 = vshrl.u32 %v3177, 7
    %v3179 = vsub.s32 %v2857, %v3178
    %v3180 = vrot.slane %v2149, %v3179
    %v3181 = vsel %vm2862, %v3180, %v3176
    %v3182 = vlaneseq
    %v3183 = vshrl.u32 %v3182, 7
    %v3184 = vsub.s32 %v2864, %v3183
    %v3185 = vrot.slane %v2151, %v3184
    %v3186 = vsel %vm2869, %v3185, %v3181
    %v3187 = vlaneseq
    %v3188 = vshrl.u32 %v3187, 7
    %v3189 = vsub.s32 %v2761, %v3188
    %v3190 = vrot.slane %v2153, %v3189
    %v3191 = vlaneseq
    %v3192 = vshrl.u32 %v3191, 7
    %v3193 = vsub.s32 %v2766, %v3192
    %v3194 = vrot.slane %v2155, %v3193
    %v3195 = vsel %vm2771, %v3194, %v3190
    %v3196 = vlaneseq
    %v3197 = vshrl.u32 %v3196, 7
    %v3198 = vsub.s32 %v2773, %v3197
    %v3199 = vrot.slane %v2157, %v3198
    %v3200 = vsel %vm2778, %v3199, %v3195
    %v3201 = vlaneseq
    %v3202 = vshrl.u32 %v3201, 7
    %v3203 = vsub.s32 %v2780, %v3202
    %v3204 = vrot.slane %v2159, %v3203
    %v3205 = vsel %vm2785, %v3204, %v3200
    %v3206 = vlaneseq
    %v3207 = vshrl.u32 %v3206, 7
    %v3208 = vsub.s32 %v2787, %v3207
    %v3209 = vrot.slane %v2161, %v3208
    %v3210 = vsel %vm2792, %v3209, %v3205
    %v3211 = vlaneseq
    %v3212 = vshrl.u32 %v3211, 7
    %v3213 = vsub.s32 %v2794, %v3212
    %v3214 = vrot.slane %v2163, %v3213
    %v3215 = vsel %vm2799, %v3214, %v3210
    %v3216 = vlaneseq
    %v3217 = vshrl.u32 %v3216, 7
    %v3218 = vsub.s32 %v2801, %v3217
    %v3219 = vrot.slane %v2165, %v3218
    %v3220 = vsel %vm2806, %v3219, %v3215
    %v3221 = vlaneseq
    %v3222 = vshrl.u32 %v3221, 7
    %v3223 = vsub.s32 %v2808, %v3222
    %v3224 = vrot.slane %v2167, %v3223
    %v3225 = vsel %vm2813, %v3224, %v3220
    %v3226 = vlaneseq
    %v3227 = vshrl.u32 %v3226, 7
    %v3228 = vsub.s32 %v2815, %v3227
    %v3229 = vrot.slane %v2169, %v3228
    %v3230 = vsel %vm2820, %v3229, %v3225
    %v3231 = vlaneseq
    %v3232 = vshrl.u32 %v3231, 7
    %v3233 = vsub.s32 %v2822, %v3232
    %v3234 = vrot.slane %v2171, %v3233
    %v3235 = vsel %vm2827, %v3234, %v3230
    %v3236 = vlaneseq
    %v3237 = vshrl.u32 %v3236, 7
    %v3238 = vsub.s32 %v2829, %v3237
    %v3239 = vrot.slane %v2173, %v3238
    %v3240 = vsel %vm2834, %v3239, %v3235
    %v3241 = vlaneseq
    %v3242 = vshrl.u32 %v3241, 7
    %v3243 = vsub.s32 %v2836, %v3242
    %v3244 = vrot.slane %v2175, %v3243
    %v3245 = vsel %vm2841, %v3244, %v3240
    %v3246 = vlaneseq
    %v3247 = vshrl.u32 %v3246, 7
    %v3248 = vsub.s32 %v2843, %v3247
    %v3249 = vrot.slane %v2177, %v3248
    %v3250 = vsel %vm2848, %v3249, %v3245
    %v3251 = vlaneseq
    %v3252 = vshrl.u32 %v3251, 7
    %v3253 = vsub.s32 %v2850, %v3252
    %v3254 = vrot.slane %v2179, %v3253
    %v3255 = vsel %vm2855, %v3254, %v3250
    %v3256 = vlaneseq
    %v3257 = vshrl.u32 %v3256, 7
    %v3258 = vsub.s32 %v2857, %v3257
    %v3259 = vrot.slane %v2181, %v3258
    %v3260 = vsel %vm2862, %v3259, %v3255
    %v3261 = vlaneseq
    %v3262 = vshrl.u32 %v3261, 7
    %v3263 = vsub.s32 %v2864, %v3262
    %v3264 = vrot.slane %v2183, %v3263
    %v3265 = vsel %vm2869, %v3264, %v3260
    %v3266 = vlaneseq
    %v3267 = vshrl.u32 %v3266, 7
    %v3268 = vsub.s32 %v2761, %v3267
    %v3269 = vrot.slane %v2185, %v3268
    %v3270 = vlaneseq
    %v3271 = vshrl.u32 %v3270, 7
    %v3272 = vsub.s32 %v2766, %v3271
    %v3273 = vrot.slane %v2187, %v3272
    %v3274 = vsel %vm2771, %v3273, %v3269
    %v3275 = vlaneseq
    %v3276 = vshrl.u32 %v3275, 7
    %v3277 = vsub.s32 %v2773, %v3276
    %v3278 = vrot.slane %v2189, %v3277
    %v3279 = vsel %vm2778, %v3278, %v3274
    %v3280 = vlaneseq
    %v3281 = vshrl.u32 %v3280, 7
    %v3282 = vsub.s32 %v2780, %v3281
    %v3283 = vrot.slane %v2191, %v3282
    %v3284 = vsel %vm2785, %v3283, %v3279
    %v3285 = vlaneseq
    %v3286 = vshrl.u32 %v3285, 7
    %v3287 = vsub.s32 %v2787, %v3286
    %v3288 = vrot.slane %v2193, %v3287
    %v3289 = vsel %vm2792, %v3288, %v3284
    %v3290 = vlaneseq
    %v3291 = vshrl.u32 %v3290, 7
    %v3292 = vsub.s32 %v2794, %v3291
    %v3293 = vrot.slane %v2195, %v3292
    %v3294 = vsel %vm2799, %v3293, %v3289
    %v3295 = vlaneseq
    %v3296 = vshrl.u32 %v3295, 7
    %v3297 = vsub.s32 %v2801, %v3296
    %v3298 = vrot.slane %v2197, %v3297
    %v3299 = vsel %vm2806, %v3298, %v3294
    %v3300 = vlaneseq
    %v3301 = vshrl.u32 %v3300, 7
    %v3302 = vsub.s32 %v2808, %v3301
    %v3303 = vrot.slane %v2199, %v3302
    %v3304 = vsel %vm2813, %v3303, %v3299
    %v3305 = vlaneseq
    %v3306 = vshrl.u32 %v3305, 7
    %v3307 = vsub.s32 %v2815, %v3306
    %v3308 = vrot.slane %v2201, %v3307
    %v3309 = vsel %vm2820, %v3308, %v3304
    %v3310 = vlaneseq
    %v3311 = vshrl.u32 %v3310, 7
    %v3312 = vsub.s32 %v2822, %v3311
    %v3313 = vrot.slane %v2203, %v3312
    %v3314 = vsel %vm2827, %v3313, %v3309
    %v3315 = vlaneseq
    %v3316 = vshrl.u32 %v3315, 7
    %v3317 = vsub.s32 %v2829, %v3316
    %v3318 = vrot.slane %v2205, %v3317
    %v3319 = vsel %vm2834, %v3318, %v3314
    %v3320 = vlaneseq
    %v3321 = vshrl.u32 %v3320, 7
    %v3322 = vsub.s32 %v2836, %v3321
    %v3323 = vrot.slane %v2207, %v3322
    %v3324 = vsel %vm2841, %v3323, %v3319
    %v3325 = vlaneseq
    %v3326 = vshrl.u32 %v3325, 7
    %v3327 = vsub.s32 %v2843, %v3326
    %v3328 = vrot.slane %v2209, %v3327
    %v3329 = vsel %vm2848, %v3328, %v3324
    %v3330 = vlaneseq
    %v3331 = vshrl.u32 %v3330, 7
    %v3332 = vsub.s32 %v2850, %v3331
    %v3333 = vrot.slane %v2211, %v3332
    %v3334 = vsel %vm2855, %v3333, %v3329
    %v3335 = vlaneseq
    %v3336 = vshrl.u32 %v3335, 7
    %v3337 = vsub.s32 %v2857, %v3336
    %v3338 = vrot.slane %v2213, %v3337
    %v3339 = vsel %vm2862, %v3338, %v3334
    %v3340 = vlaneseq
    %v3341 = vshrl.u32 %v3340, 7
    %v3342 = vsub.s32 %v2864, %v3341
    %v3343 = vrot.slane %v2215, %v3342
    %v3344 = vsel %vm2869, %v3343, %v3339
    %v3345 = vlaneseq
    %v3346 = vshrl.u32 %v3345, 7
    %v3347 = vsub.s32 %v2761, %v3346
    %v3348 = vrot.slane %v2217, %v3347
    %v3349 = vlaneseq
    %v3350 = vshrl.u32 %v3349, 7
    %v3351 = vsub.s32 %v2766, %v3350
    %v3352 = vrot.slane %v2219, %v3351
    %v3353 = vsel %vm2771, %v3352, %v3348
    %v3354 = vlaneseq
    %v3355 = vshrl.u32 %v3354, 7
    %v3356 = vsub.s32 %v2773, %v3355
    %v3357 = vrot.slane %v2221, %v3356
    %v3358 = vsel %vm2778, %v3357, %v3353
    %v3359 = vlaneseq
    %v3360 = vshrl.u32 %v3359, 7
    %v3361 = vsub.s32 %v2780, %v3360
    %v3362 = vrot.slane %v2223, %v3361
    %v3363 = vsel %vm2785, %v3362, %v3358
    %v3364 = vlaneseq
    %v3365 = vshrl.u32 %v3364, 7
    %v3366 = vsub.s32 %v2787, %v3365
    %v3367 = vrot.slane %v2225, %v3366
    %v3368 = vsel %vm2792, %v3367, %v3363
    %v3369 = vlaneseq
    %v3370 = vshrl.u32 %v3369, 7
    %v3371 = vsub.s32 %v2794, %v3370
    %v3372 = vrot.slane %v2227, %v3371
    %v3373 = vsel %vm2799, %v3372, %v3368
    %v3374 = vlaneseq
    %v3375 = vshrl.u32 %v3374, 7
    %v3376 = vsub.s32 %v2801, %v3375
    %v3377 = vrot.slane %v2229, %v3376
    %v3378 = vsel %vm2806, %v3377, %v3373
    %v3379 = vlaneseq
    %v3380 = vshrl.u32 %v3379, 7
    %v3381 = vsub.s32 %v2808, %v3380
    %v3382 = vrot.slane %v2231, %v3381
    %v3383 = vsel %vm2813, %v3382, %v3378
    %v3384 = vlaneseq
    %v3385 = vshrl.u32 %v3384, 7
    %v3386 = vsub.s32 %v2815, %v3385
    %v3387 = vrot.slane %v2233, %v3386
    %v3388 = vsel %vm2820, %v3387, %v3383
    %v3389 = vlaneseq
    %v3390 = vshrl.u32 %v3389, 7
    %v3391 = vsub.s32 %v2822, %v3390
    %v3392 = vrot.slane %v2235, %v3391
    %v3393 = vsel %vm2827, %v3392, %v3388
    %v3394 = vlaneseq
    %v3395 = vshrl.u32 %v3394, 7
    %v3396 = vsub.s32 %v2829, %v3395
    %v3397 = vrot.slane %v2237, %v3396
    %v3398 = vsel %vm2834, %v3397, %v3393
    %v3399 = vlaneseq
    %v3400 = vshrl.u32 %v3399, 7
    %v3401 = vsub.s32 %v2836, %v3400
    %v3402 = vrot.slane %v2239, %v3401
    %v3403 = vsel %vm2841, %v3402, %v3398
    %v3404 = vlaneseq
    %v3405 = vshrl.u32 %v3404, 7
    %v3406 = vsub.s32 %v2843, %v3405
    %v3407 = vrot.slane %v2241, %v3406
    %v3408 = vsel %vm2848, %v3407, %v3403
    %v3409 = vlaneseq
    %v3410 = vshrl.u32 %v3409, 7
    %v3411 = vsub.s32 %v2850, %v3410
    %v3412 = vrot.slane %v2243, %v3411
    %v3413 = vsel %vm2855, %v3412, %v3408
    %v3414 = vlaneseq
    %v3415 = vshrl.u32 %v3414, 7
    %v3416 = vsub.s32 %v2857, %v3415
    %v3417 = vrot.slane %v2245, %v3416
    %v3418 = vsel %vm2862, %v3417, %v3413
    %v3419 = vlaneseq
    %v3420 = vshrl.u32 %v3419, 7
    %v3421 = vsub.s32 %v2864, %v3420
    %v3422 = vrot.slane %v2247, %v3421
    %v3423 = vsel %vm2869, %v3422, %v3418
    %v3424 = vlaneseq
    %v3425 = vshrl.u32 %v3424, 7
    %v3426 = vsub.s32 %v2761, %v3425
    %v3427 = vrot.slane %v2249, %v3426
    %v3428 = vlaneseq
    %v3429 = vshrl.u32 %v3428, 7
    %v3430 = vsub.s32 %v2766, %v3429
    %v3431 = vrot.slane %v2251, %v3430
    %v3432 = vsel %vm2771, %v3431, %v3427
    %v3433 = vlaneseq
    %v3434 = vshrl.u32 %v3433, 7
    %v3435 = vsub.s32 %v2773, %v3434
    %v3436 = vrot.slane %v2253, %v3435
    %v3437 = vsel %vm2778, %v3436, %v3432
    %v3438 = vlaneseq
    %v3439 = vshrl.u32 %v3438, 7
    %v3440 = vsub.s32 %v2780, %v3439
    %v3441 = vrot.slane %v2255, %v3440
    %v3442 = vsel %vm2785, %v3441, %v3437
    %v3443 = vlaneseq
    %v3444 = vshrl.u32 %v3443, 7
    %v3445 = vsub.s32 %v2787, %v3444
    %v3446 = vrot.slane %v2257, %v3445
    %v3447 = vsel %vm2792, %v3446, %v3442
    %v3448 = vlaneseq
    %v3449 = vshrl.u32 %v3448, 7
    %v3450 = vsub.s32 %v2794, %v3449
    %v3451 = vrot.slane %v2259, %v3450
    %v3452 = vsel %vm2799, %v3451, %v3447
    %v3453 = vlaneseq
    %v3454 = vshrl.u32 %v3453, 7
    %v3455 = vsub.s32 %v2801, %v3454
    %v3456 = vrot.slane %v2261, %v3455
    %v3457 = vsel %vm2806, %v3456, %v3452
    %v3458 = vlaneseq
    %v3459 = vshrl.u32 %v3458, 7
    %v3460 = vsub.s32 %v2808, %v3459
    %v3461 = vrot.slane %v2263, %v3460
    %v3462 = vsel %vm2813, %v3461, %v3457
    %v3463 = vlaneseq
    %v3464 = vshrl.u32 %v3463, 7
    %v3465 = vsub.s32 %v2815, %v3464
    %v3466 = vrot.slane %v2265, %v3465
    %v3467 = vsel %vm2820, %v3466, %v3462
    %v3468 = vlaneseq
    %v3469 = vshrl.u32 %v3468, 7
    %v3470 = vsub.s32 %v2822, %v3469
    %v3471 = vrot.slane %v2267, %v3470
    %v3472 = vsel %vm2827, %v3471, %v3467
    %v3473 = vlaneseq
    %v3474 = vshrl.u32 %v3473, 7
    %v3475 = vsub.s32 %v2829, %v3474
    %v3476 = vrot.slane %v2269, %v3475
    %v3477 = vsel %vm2834, %v3476, %v3472
    %v3478 = vlaneseq
    %v3479 = vshrl.u32 %v3478, 7
    %v3480 = vsub.s32 %v2836, %v3479
    %v3481 = vrot.slane %v2271, %v3480
    %v3482 = vsel %vm2841, %v3481, %v3477
    %v3483 = vlaneseq
    %v3484 = vshrl.u32 %v3483, 7
    %v3485 = vsub.s32 %v2843, %v3484
    %v3486 = vrot.slane %v2273, %v3485
    %v3487 = vsel %vm2848, %v3486, %v3482
    %v3488 = vlaneseq
    %v3489 = vshrl.u32 %v3488, 7
    %v3490 = vsub.s32 %v2850, %v3489
    %v3491 = vrot.slane %v2275, %v3490
    %v3492 = vsel %vm2855, %v3491, %v3487
    %v3493 = vlaneseq
    %v3494 = vshrl.u32 %v3493, 7
    %v3495 = vsub.s32 %v2857, %v3494
    %v3496 = vrot.slane %v2277, %v3495
    %v3497 = vsel %vm2862, %v3496, %v3492
    %v3498 = vlaneseq
    %v3499 = vshrl.u32 %v3498, 7
    %v3500 = vsub.s32 %v2864, %v3499
    %v3501 = vrot.slane %v2279, %v3500
    %v3502 = vsel %vm2869, %v3501, %v3497
    %v3503 = vlaneseq
    %v3504 = vshrl.u32 %v3503, 7
    %v3505 = vsub.s32 %v2761, %v3504
    %v3506 = vrot.slane %v2281, %v3505
    %v3507 = vlaneseq
    %v3508 = vshrl.u32 %v3507, 7
    %v3509 = vsub.s32 %v2766, %v3508
    %v3510 = vrot.slane %v2283, %v3509
    %v3511 = vsel %vm2771, %v3510, %v3506
    %v3512 = vlaneseq
    %v3513 = vshrl.u32 %v3512, 7
    %v3514 = vsub.s32 %v2773, %v3513
    %v3515 = vrot.slane %v2285, %v3514
    %v3516 = vsel %vm2778, %v3515, %v3511
    %v3517 = vlaneseq
    %v3518 = vshrl.u32 %v3517, 7
    %v3519 = vsub.s32 %v2780, %v3518
    %v3520 = vrot.slane %v2287, %v3519
    %v3521 = vsel %vm2785, %v3520, %v3516
    %v3522 = vlaneseq
    %v3523 = vshrl.u32 %v3522, 7
    %v3524 = vsub.s32 %v2787, %v3523
    %v3525 = vrot.slane %v2289, %v3524
    %v3526 = vsel %vm2792, %v3525, %v3521
    %v3527 = vlaneseq
    %v3528 = vshrl.u32 %v3527, 7
    %v3529 = vsub.s32 %v2794, %v3528
    %v3530 = vrot.slane %v2291, %v3529
    %v3531 = vsel %vm2799, %v3530, %v3526
    %v3532 = vlaneseq
    %v3533 = vshrl.u32 %v3532, 7
    %v3534 = vsub.s32 %v2801, %v3533
    %v3535 = vrot.slane %v2293, %v3534
    %v3536 = vsel %vm2806, %v3535, %v3531
    %v3537 = vlaneseq
    %v3538 = vshrl.u32 %v3537, 7
    %v3539 = vsub.s32 %v2808, %v3538
    %v3540 = vrot.slane %v2295, %v3539
    %v3541 = vsel %vm2813, %v3540, %v3536
    %v3542 = vlaneseq
    %v3543 = vshrl.u32 %v3542, 7
    %v3544 = vsub.s32 %v2815, %v3543
    %v3545 = vrot.slane %v2297, %v3544
    %v3546 = vsel %vm2820, %v3545, %v3541
    %v3547 = vlaneseq
    %v3548 = vshrl.u32 %v3547, 7
    %v3549 = vsub.s32 %v2822, %v3548
    %v3550 = vrot.slane %v2299, %v3549
    %v3551 = vsel %vm2827, %v3550, %v3546
    %v3552 = vlaneseq
    %v3553 = vshrl.u32 %v3552, 7
    %v3554 = vsub.s32 %v2829, %v3553
    %v3555 = vrot.slane %v2301, %v3554
    %v3556 = vsel %vm2834, %v3555, %v3551
    %v3557 = vlaneseq
    %v3558 = vshrl.u32 %v3557, 7
    %v3559 = vsub.s32 %v2836, %v3558
    %v3560 = vrot.slane %v2303, %v3559
    %v3561 = vsel %vm2841, %v3560, %v3556
    %v3562 = vlaneseq
    %v3563 = vshrl.u32 %v3562, 7
    %v3564 = vsub.s32 %v2843, %v3563
    %v3565 = vrot.slane %v2305, %v3564
    %v3566 = vsel %vm2848, %v3565, %v3561
    %v3567 = vlaneseq
    %v3568 = vshrl.u32 %v3567, 7
    %v3569 = vsub.s32 %v2850, %v3568
    %v3570 = vrot.slane %v2307, %v3569
    %v3571 = vsel %vm2855, %v3570, %v3566
    %v3572 = vlaneseq
    %v3573 = vshrl.u32 %v3572, 7
    %v3574 = vsub.s32 %v2857, %v3573
    %v3575 = vrot.slane %v2309, %v3574
    %v3576 = vsel %vm2862, %v3575, %v3571
    %v3577 = vlaneseq
    %v3578 = vshrl.u32 %v3577, 7
    %v3579 = vsub.s32 %v2864, %v3578
    %v3580 = vrot.slane %v2311, %v3579
    %v3581 = vsel %vm2869, %v3580, %v3576
    %v3582 = vlaneseq
    %v3583 = vshrl.u32 %v3582, 7
    %v3584 = vsub.s32 %v2761, %v3583
    %v3585 = vrot.slane %v2313, %v3584
    %v3586 = vlaneseq
    %v3587 = vshrl.u32 %v3586, 7
    %v3588 = vsub.s32 %v2766, %v3587
    %v3589 = vrot.slane %v2315, %v3588
    %v3590 = vsel %vm2771, %v3589, %v3585
    %v3591 = vlaneseq
    %v3592 = vshrl.u32 %v3591, 7
    %v3593 = vsub.s32 %v2773, %v3592
    %v3594 = vrot.slane %v2317, %v3593
    %v3595 = vsel %vm2778, %v3594, %v3590
    %v3596 = vlaneseq
    %v3597 = vshrl.u32 %v3596, 7
    %v3598 = vsub.s32 %v2780, %v3597
    %v3599 = vrot.slane %v2319, %v3598
    %v3600 = vsel %vm2785, %v3599, %v3595
    %v3601 = vlaneseq
    %v3602 = vshrl.u32 %v3601, 7
    %v3603 = vsub.s32 %v2787, %v3602
    %v3604 = vrot.slane %v2321, %v3603
    %v3605 = vsel %vm2792, %v3604, %v3600
    %v3606 = vlaneseq
    %v3607 = vshrl.u32 %v3606, 7
    %v3608 = vsub.s32 %v2794, %v3607
    %v3609 = vrot.slane %v2323, %v3608
    %v3610 = vsel %vm2799, %v3609, %v3605
    %v3611 = vlaneseq
    %v3612 = vshrl.u32 %v3611, 7
    %v3613 = vsub.s32 %v2801, %v3612
    %v3614 = vrot.slane %v2325, %v3613
    %v3615 = vsel %vm2806, %v3614, %v3610
    %v3616 = vlaneseq
    %v3617 = vshrl.u32 %v3616, 7
    %v3618 = vsub.s32 %v2808, %v3617
    %v3619 = vrot.slane %v2327, %v3618
    %v3620 = vsel %vm2813, %v3619, %v3615
    %v3621 = vlaneseq
    %v3622 = vshrl.u32 %v3621, 7
    %v3623 = vsub.s32 %v2815, %v3622
    %v3624 = vrot.slane %v2329, %v3623
    %v3625 = vsel %vm2820, %v3624, %v3620
    %v3626 = vlaneseq
    %v3627 = vshrl.u32 %v3626, 7
    %v3628 = vsub.s32 %v2822, %v3627
    %v3629 = vrot.slane %v2331, %v3628
    %v3630 = vsel %vm2827, %v3629, %v3625
    %v3631 = vlaneseq
    %v3632 = vshrl.u32 %v3631, 7
    %v3633 = vsub.s32 %v2829, %v3632
    %v3634 = vrot.slane %v2333, %v3633
    %v3635 = vsel %vm2834, %v3634, %v3630
    %v3636 = vlaneseq
    %v3637 = vshrl.u32 %v3636, 7
    %v3638 = vsub.s32 %v2836, %v3637
    %v3639 = vrot.slane %v2335, %v3638
    %v3640 = vsel %vm2841, %v3639, %v3635
    %v3641 = vlaneseq
    %v3642 = vshrl.u32 %v3641, 7
    %v3643 = vsub.s32 %v2843, %v3642
    %v3644 = vrot.slane %v2337, %v3643
    %v3645 = vsel %vm2848, %v3644, %v3640
    %v3646 = vlaneseq
    %v3647 = vshrl.u32 %v3646, 7
    %v3648 = vsub.s32 %v2850, %v3647
    %v3649 = vrot.slane %v2339, %v3648
    %v3650 = vsel %vm2855, %v3649, %v3645
    %v3651 = vlaneseq
    %v3652 = vshrl.u32 %v3651, 7
    %v3653 = vsub.s32 %v2857, %v3652
    %v3654 = vrot.slane %v2341, %v3653
    %v3655 = vsel %vm2862, %v3654, %v3650
    %v3656 = vlaneseq
    %v3657 = vshrl.u32 %v3656, 7
    %v3658 = vsub.s32 %v2864, %v3657
    %v3659 = vrot.slane %v2343, %v3658
    %v3660 = vsel %vm2869, %v3659, %v3655
    %v3661 = vlaneseq
    %v3662 = vshrl.u32 %v3661, 7
    %v3663 = vsub.s32 %v2761, %v3662
    %v3664 = vrot.slane %v2345, %v3663
    %v3665 = vlaneseq
    %v3666 = vshrl.u32 %v3665, 7
    %v3667 = vsub.s32 %v2766, %v3666
    %v3668 = vrot.slane %v2347, %v3667
    %v3669 = vsel %vm2771, %v3668, %v3664
    %v3670 = vlaneseq
    %v3671 = vshrl.u32 %v3670, 7
    %v3672 = vsub.s32 %v2773, %v3671
    %v3673 = vrot.slane %v2349, %v3672
    %v3674 = vsel %vm2778, %v3673, %v3669
    %v3675 = vlaneseq
    %v3676 = vshrl.u32 %v3675, 7
    %v3677 = vsub.s32 %v2780, %v3676
    %v3678 = vrot.slane %v2351, %v3677
    %v3679 = vsel %vm2785, %v3678, %v3674
    %v3680 = vlaneseq
    %v3681 = vshrl.u32 %v3680, 7
    %v3682 = vsub.s32 %v2787, %v3681
    %v3683 = vrot.slane %v2353, %v3682
    %v3684 = vsel %vm2792, %v3683, %v3679
    %v3685 = vlaneseq
    %v3686 = vshrl.u32 %v3685, 7
    %v3687 = vsub.s32 %v2794, %v3686
    %v3688 = vrot.slane %v2355, %v3687
    %v3689 = vsel %vm2799, %v3688, %v3684
    %v3690 = vlaneseq
    %v3691 = vshrl.u32 %v3690, 7
    %v3692 = vsub.s32 %v2801, %v3691
    %v3693 = vrot.slane %v2357, %v3692
    %v3694 = vsel %vm2806, %v3693, %v3689
    %v3695 = vlaneseq
    %v3696 = vshrl.u32 %v3695, 7
    %v3697 = vsub.s32 %v2808, %v3696
    %v3698 = vrot.slane %v2359, %v3697
    %v3699 = vsel %vm2813, %v3698, %v3694
    %v3700 = vlaneseq
    %v3701 = vshrl.u32 %v3700, 7
    %v3702 = vsub.s32 %v2815, %v3701
    %v3703 = vrot.slane %v2361, %v3702
    %v3704 = vsel %vm2820, %v3703, %v3699
    %v3705 = vlaneseq
    %v3706 = vshrl.u32 %v3705, 7
    %v3707 = vsub.s32 %v2822, %v3706
    %v3708 = vrot.slane %v2363, %v3707
    %v3709 = vsel %vm2827, %v3708, %v3704
    %v3710 = vlaneseq
    %v3711 = vshrl.u32 %v3710, 7
    %v3712 = vsub.s32 %v2829, %v3711
    %v3713 = vrot.slane %v2365, %v3712
    %v3714 = vsel %vm2834, %v3713, %v3709
    %v3715 = vlaneseq
    %v3716 = vshrl.u32 %v3715, 7
    %v3717 = vsub.s32 %v2836, %v3716
    %v3718 = vrot.slane %v2367, %v3717
    %v3719 = vsel %vm2841, %v3718, %v3714
    %v3720 = vlaneseq
    %v3721 = vshrl.u32 %v3720, 7
    %v3722 = vsub.s32 %v2843, %v3721
    %v3723 = vrot.slane %v2369, %v3722
    %v3724 = vsel %vm2848, %v3723, %v3719
    %v3725 = vlaneseq
    %v3726 = vshrl.u32 %v3725, 7
    %v3727 = vsub.s32 %v2850, %v3726
    %v3728 = vrot.slane %v2371, %v3727
    %v3729 = vsel %vm2855, %v3728, %v3724
    %v3730 = vlaneseq
    %v3731 = vshrl.u32 %v3730, 7
    %v3732 = vsub.s32 %v2857, %v3731
    %v3733 = vrot.slane %v2373, %v3732
    %v3734 = vsel %vm2862, %v3733, %v3729
    %v3735 = vlaneseq
    %v3736 = vshrl.u32 %v3735, 7
    %v3737 = vsub.s32 %v2864, %v3736
    %v3738 = vrot.slane %v2375, %v3737
    %v3739 = vsel %vm2869, %v3738, %v3734
    %v3740 = vlaneseq
    %v3741 = vshrl.u32 %v3740, 7
    %v3742 = vsub.s32 %v2761, %v3741
    %v3743 = vrot.slane %v2377, %v3742
    %v3744 = vlaneseq
    %v3745 = vshrl.u32 %v3744, 7
    %v3746 = vsub.s32 %v2766, %v3745
    %v3747 = vrot.slane %v2379, %v3746
    %v3748 = vsel %vm2771, %v3747, %v3743
    %v3749 = vlaneseq
    %v3750 = vshrl.u32 %v3749, 7
    %v3751 = vsub.s32 %v2773, %v3750
    %v3752 = vrot.slane %v2381, %v3751
    %v3753 = vsel %vm2778, %v3752, %v3748
    %v3754 = vlaneseq
    %v3755 = vshrl.u32 %v3754, 7
    %v3756 = vsub.s32 %v2780, %v3755
    %v3757 = vrot.slane %v2383, %v3756
    %v3758 = vsel %vm2785, %v3757, %v3753
    %v3759 = vlaneseq
    %v3760 = vshrl.u32 %v3759, 7
    %v3761 = vsub.s32 %v2787, %v3760
    %v3762 = vrot.slane %v2385, %v3761
    %v3763 = vsel %vm2792, %v3762, %v3758
    %v3764 = vlaneseq
    %v3765 = vshrl.u32 %v3764, 7
    %v3766 = vsub.s32 %v2794, %v3765
    %v3767 = vrot.slane %v2387, %v3766
    %v3768 = vsel %vm2799, %v3767, %v3763
    %v3769 = vlaneseq
    %v3770 = vshrl.u32 %v3769, 7
    %v3771 = vsub.s32 %v2801, %v3770
    %v3772 = vrot.slane %v2389, %v3771
    %v3773 = vsel %vm2806, %v3772, %v3768
    %v3774 = vlaneseq
    %v3775 = vshrl.u32 %v3774, 7
    %v3776 = vsub.s32 %v2808, %v3775
    %v3777 = vrot.slane %v2391, %v3776
    %v3778 = vsel %vm2813, %v3777, %v3773
    %v3779 = vlaneseq
    %v3780 = vshrl.u32 %v3779, 7
    %v3781 = vsub.s32 %v2815, %v3780
    %v3782 = vrot.slane %v2393, %v3781
    %v3783 = vsel %vm2820, %v3782, %v3778
    %v3784 = vlaneseq
    %v3785 = vshrl.u32 %v3784, 7
    %v3786 = vsub.s32 %v2822, %v3785
    %v3787 = vrot.slane %v2395, %v3786
    %v3788 = vsel %vm2827, %v3787, %v3783
    %v3789 = vlaneseq
    %v3790 = vshrl.u32 %v3789, 7
    %v3791 = vsub.s32 %v2829, %v3790
    %v3792 = vrot.slane %v2397, %v3791
    %v3793 = vsel %vm2834, %v3792, %v3788
    %v3794 = vlaneseq
    %v3795 = vshrl.u32 %v3794, 7
    %v3796 = vsub.s32 %v2836, %v3795
    %v3797 = vrot.slane %v2399, %v3796
    %v3798 = vsel %vm2841, %v3797, %v3793
    %v3799 = vlaneseq
    %v3800 = vshrl.u32 %v3799, 7
    %v3801 = vsub.s32 %v2843, %v3800
    %v3802 = vrot.slane %v2401, %v3801
    %v3803 = vsel %vm2848, %v3802, %v3798
    %v3804 = vlaneseq
    %v3805 = vshrl.u32 %v3804, 7
    %v3806 = vsub.s32 %v2850, %v3805
    %v3807 = vrot.slane %v2403, %v3806
    %v3808 = vsel %vm2855, %v3807, %v3803
    %v3809 = vlaneseq
    %v3810 = vshrl.u32 %v3809, 7
    %v3811 = vsub.s32 %v2857, %v3810
    %v3812 = vrot.slane %v2405, %v3811
    %v3813 = vsel %vm2862, %v3812, %v3808
    %v3814 = vlaneseq
    %v3815 = vshrl.u32 %v3814, 7
    %v3816 = vsub.s32 %v2864, %v3815
    %v3817 = vrot.slane %v2407, %v3816
    %v3818 = vsel %vm2869, %v3817, %v3813
    %v3819 = vlaneseq
    %v3820 = vshrl.u32 %v3819, 7
    %v3821 = vsub.s32 %v2761, %v3820
    %v3822 = vrot.slane %v2409, %v3821
    %v3823 = vlaneseq
    %v3824 = vshrl.u32 %v3823, 7
    %v3825 = vsub.s32 %v2766, %v3824
    %v3826 = vrot.slane %v2411, %v3825
    %v3827 = vsel %vm2771, %v3826, %v3822
    %v3828 = vlaneseq
    %v3829 = vshrl.u32 %v3828, 7
    %v3830 = vsub.s32 %v2773, %v3829
    %v3831 = vrot.slane %v2413, %v3830
    %v3832 = vsel %vm2778, %v3831, %v3827
    %v3833 = vlaneseq
    %v3834 = vshrl.u32 %v3833, 7
    %v3835 = vsub.s32 %v2780, %v3834
    %v3836 = vrot.slane %v2415, %v3835
    %v3837 = vsel %vm2785, %v3836, %v3832
    %v3838 = vlaneseq
    %v3839 = vshrl.u32 %v3838, 7
    %v3840 = vsub.s32 %v2787, %v3839
    %v3841 = vrot.slane %v2417, %v3840
    %v3842 = vsel %vm2792, %v3841, %v3837
    %v3843 = vlaneseq
    %v3844 = vshrl.u32 %v3843, 7
    %v3845 = vsub.s32 %v2794, %v3844
    %v3846 = vrot.slane %v2419, %v3845
    %v3847 = vsel %vm2799, %v3846, %v3842
    %v3848 = vlaneseq
    %v3849 = vshrl.u32 %v3848, 7
    %v3850 = vsub.s32 %v2801, %v3849
    %v3851 = vrot.slane %v2421, %v3850
    %v3852 = vsel %vm2806, %v3851, %v3847
    %v3853 = vlaneseq
    %v3854 = vshrl.u32 %v3853, 7
    %v3855 = vsub.s32 %v2808, %v3854
    %v3856 = vrot.slane %v2423, %v3855
    %v3857 = vsel %vm2813, %v3856, %v3852
    %v3858 = vlaneseq
    %v3859 = vshrl.u32 %v3858, 7
    %v3860 = vsub.s32 %v2815, %v3859
    %v3861 = vrot.slane %v2425, %v3860
    %v3862 = vsel %vm2820, %v3861, %v3857
    %v3863 = vlaneseq
    %v3864 = vshrl.u32 %v3863, 7
    %v3865 = vsub.s32 %v2822, %v3864
    %v3866 = vrot.slane %v2427, %v3865
    %v3867 = vsel %vm2827, %v3866, %v3862
    %v3868 = vlaneseq
    %v3869 = vshrl.u32 %v3868, 7
    %v3870 = vsub.s32 %v2829, %v3869
    %v3871 = vrot.slane %v2429, %v3870
    %v3872 = vsel %vm2834, %v3871, %v3867
    %v3873 = vlaneseq
    %v3874 = vshrl.u32 %v3873, 7
    %v3875 = vsub.s32 %v2836, %v3874
    %v3876 = vrot.slane %v2431, %v3875
    %v3877 = vsel %vm2841, %v3876, %v3872
    %v3878 = vlaneseq
    %v3879 = vshrl.u32 %v3878, 7
    %v3880 = vsub.s32 %v2843, %v3879
    %v3881 = vrot.slane %v2433, %v3880
    %v3882 = vsel %vm2848, %v3881, %v3877
    %v3883 = vlaneseq
    %v3884 = vshrl.u32 %v3883, 7
    %v3885 = vsub.s32 %v2850, %v3884
    %v3886 = vrot.slane %v2435, %v3885
    %v3887 = vsel %vm2855, %v3886, %v3882
    %v3888 = vlaneseq
    %v3889 = vshrl.u32 %v3888, 7
    %v3890 = vsub.s32 %v2857, %v3889
    %v3891 = vrot.slane %v2437, %v3890
    %v3892 = vsel %vm2862, %v3891, %v3887
    %v3893 = vlaneseq
    %v3894 = vshrl.u32 %v3893, 7
    %v3895 = vsub.s32 %v2864, %v3894
    %v3896 = vrot.slane %v2439, %v3895
    %v3897 = vsel %vm2869, %v3896, %v3892
    %v3898 = vlaneseq
    %v3899 = vshrl.u32 %v3898, 7
    %v3900 = vsub.s32 %v2761, %v3899
    %v3901 = vrot.slane %v2441, %v3900
    %v3902 = vlaneseq
    %v3903 = vshrl.u32 %v3902, 7
    %v3904 = vsub.s32 %v2766, %v3903
    %v3905 = vrot.slane %v2443, %v3904
    %v3906 = vsel %vm2771, %v3905, %v3901
    %v3907 = vlaneseq
    %v3908 = vshrl.u32 %v3907, 7
    %v3909 = vsub.s32 %v2773, %v3908
    %v3910 = vrot.slane %v2445, %v3909
    %v3911 = vsel %vm2778, %v3910, %v3906
    %v3912 = vlaneseq
    %v3913 = vshrl.u32 %v3912, 7
    %v3914 = vsub.s32 %v2780, %v3913
    %v3915 = vrot.slane %v2447, %v3914
    %v3916 = vsel %vm2785, %v3915, %v3911
    %v3917 = vlaneseq
    %v3918 = vshrl.u32 %v3917, 7
    %v3919 = vsub.s32 %v2787, %v3918
    %v3920 = vrot.slane %v2449, %v3919
    %v3921 = vsel %vm2792, %v3920, %v3916
    %v3922 = vlaneseq
    %v3923 = vshrl.u32 %v3922, 7
    %v3924 = vsub.s32 %v2794, %v3923
    %v3925 = vrot.slane %v2451, %v3924
    %v3926 = vsel %vm2799, %v3925, %v3921
    %v3927 = vlaneseq
    %v3928 = vshrl.u32 %v3927, 7
    %v3929 = vsub.s32 %v2801, %v3928
    %v3930 = vrot.slane %v2453, %v3929
    %v3931 = vsel %vm2806, %v3930, %v3926
    %v3932 = vlaneseq
    %v3933 = vshrl.u32 %v3932, 7
    %v3934 = vsub.s32 %v2808, %v3933
    %v3935 = vrot.slane %v2455, %v3934
    %v3936 = vsel %vm2813, %v3935, %v3931
    %v3937 = vlaneseq
    %v3938 = vshrl.u32 %v3937, 7
    %v3939 = vsub.s32 %v2815, %v3938
    %v3940 = vrot.slane %v2457, %v3939
    %v3941 = vsel %vm2820, %v3940, %v3936
    %v3942 = vlaneseq
    %v3943 = vshrl.u32 %v3942, 7
    %v3944 = vsub.s32 %v2822, %v3943
    %v3945 = vrot.slane %v2459, %v3944
    %v3946 = vsel %vm2827, %v3945, %v3941
    %v3947 = vlaneseq
    %v3948 = vshrl.u32 %v3947, 7
    %v3949 = vsub.s32 %v2829, %v3948
    %v3950 = vrot.slane %v2461, %v3949
    %v3951 = vsel %vm2834, %v3950, %v3946
    %v3952 = vlaneseq
    %v3953 = vshrl.u32 %v3952, 7
    %v3954 = vsub.s32 %v2836, %v3953
    %v3955 = vrot.slane %v2463, %v3954
    %v3956 = vsel %vm2841, %v3955, %v3951
    %v3957 = vlaneseq
    %v3958 = vshrl.u32 %v3957, 7
    %v3959 = vsub.s32 %v2843, %v3958
    %v3960 = vrot.slane %v2465, %v3959
    %v3961 = vsel %vm2848, %v3960, %v3956
    %v3962 = vlaneseq
    %v3963 = vshrl.u32 %v3962, 7
    %v3964 = vsub.s32 %v2850, %v3963
    %v3965 = vrot.slane %v2467, %v3964
    %v3966 = vsel %vm2855, %v3965, %v3961
    %v3967 = vlaneseq
    %v3968 = vshrl.u32 %v3967, 7
    %v3969 = vsub.s32 %v2857, %v3968
    %v3970 = vrot.slane %v2469, %v3969
    %v3971 = vsel %vm2862, %v3970, %v3966
    %v3972 = vlaneseq
    %v3973 = vshrl.u32 %v3972, 7
    %v3974 = vsub.s32 %v2864, %v3973
    %v3975 = vrot.slane %v2471, %v3974
    %v3976 = vsel %vm2869, %v3975, %v3971
    %v3977 = vlaneseq
    %v3978 = vshrl.u32 %v3977, 7
    %v3979 = vsub.s32 %v2761, %v3978
    %v3980 = vrot.slane %v2473, %v3979
    %v3981 = vlaneseq
    %v3982 = vshrl.u32 %v3981, 7
    %v3983 = vsub.s32 %v2766, %v3982
    %v3984 = vrot.slane %v2475, %v3983
    %v3985 = vsel %vm2771, %v3984, %v3980
    %v3986 = vlaneseq
    %v3987 = vshrl.u32 %v3986, 7
    %v3988 = vsub.s32 %v2773, %v3987
    %v3989 = vrot.slane %v2477, %v3988
    %v3990 = vsel %vm2778, %v3989, %v3985
    %v3991 = vlaneseq
    %v3992 = vshrl.u32 %v3991, 7
    %v3993 = vsub.s32 %v2780, %v3992
    %v3994 = vrot.slane %v2479, %v3993
    %v3995 = vsel %vm2785, %v3994, %v3990
    %v3996 = vlaneseq
    %v3997 = vshrl.u32 %v3996, 7
    %v3998 = vsub.s32 %v2787, %v3997
    %v3999 = vrot.slane %v2481, %v3998
    %v4000 = vsel %vm2792, %v3999, %v3995
    %v4001 = vlaneseq
    %v4002 = vshrl.u32 %v4001, 7
    %v4003 = vsub.s32 %v2794, %v4002
    %v4004 = vrot.slane %v2483, %v4003
    %v4005 = vsel %vm2799, %v4004, %v4000
    %v4006 = vlaneseq
    %v4007 = vshrl.u32 %v4006, 7
    %v4008 = vsub.s32 %v2801, %v4007
    %v4009 = vrot.slane %v2485, %v4008
    %v4010 = vsel %vm2806, %v4009, %v4005
    %v4011 = vlaneseq
    %v4012 = vshrl.u32 %v4011, 7
    %v4013 = vsub.s32 %v2808, %v4012
    %v4014 = vrot.slane %v2487, %v4013
    %v4015 = vsel %vm2813, %v4014, %v4010
    %v4016 = vlaneseq
    %v4017 = vshrl.u32 %v4016, 7
    %v4018 = vsub.s32 %v2815, %v4017
    %v4019 = vrot.slane %v2489, %v4018
    %v4020 = vsel %vm2820, %v4019, %v4015
    %v4021 = vlaneseq
    %v4022 = vshrl.u32 %v4021, 7
    %v4023 = vsub.s32 %v2822, %v4022
    %v4024 = vrot.slane %v2491, %v4023
    %v4025 = vsel %vm2827, %v4024, %v4020
    %v4026 = vlaneseq
    %v4027 = vshrl.u32 %v4026, 7
    %v4028 = vsub.s32 %v2829, %v4027
    %v4029 = vrot.slane %v2493, %v4028
    %v4030 = vsel %vm2834, %v4029, %v4025
    %v4031 = vlaneseq
    %v4032 = vshrl.u32 %v4031, 7
    %v4033 = vsub.s32 %v2836, %v4032
    %v4034 = vrot.slane %v2495, %v4033
    %v4035 = vsel %vm2841, %v4034, %v4030
    %v4036 = vlaneseq
    %v4037 = vshrl.u32 %v4036, 7
    %v4038 = vsub.s32 %v2843, %v4037
    %v4039 = vrot.slane %v2497, %v4038
    %v4040 = vsel %vm2848, %v4039, %v4035
    %v4041 = vlaneseq
    %v4042 = vshrl.u32 %v4041, 7
    %v4043 = vsub.s32 %v2850, %v4042
    %v4044 = vrot.slane %v2499, %v4043
    %v4045 = vsel %vm2855, %v4044, %v4040
    %v4046 = vlaneseq
    %v4047 = vshrl.u32 %v4046, 7
    %v4048 = vsub.s32 %v2857, %v4047
    %v4049 = vrot.slane %v2501, %v4048
    %v4050 = vsel %vm2862, %v4049, %v4045
    %v4051 = vlaneseq
    %v4052 = vshrl.u32 %v4051, 7
    %v4053 = vsub.s32 %v2864, %v4052
    %v4054 = vrot.slane %v2503, %v4053
    %v4055 = vsel %vm2869, %v4054, %v4050
    %vm4056 = vcmask 1041409
    %v4057 = vsel %vm4056, %v2949, %v2870
    %vm4058 = vcmask 1042434
    %v4059 = vsel %vm4058, %v3028, %v4057
    %vm4060 = vcmask 1043459
    %v4061 = vsel %vm4060, %v3107, %v4059
    %vm4062 = vcmask 1044484
    %v4063 = vsel %vm4062, %v3186, %v4061
    %vm4064 = vcmask 1045509
    %v4065 = vsel %vm4064, %v3265, %v4063
    %vm4066 = vcmask 1046534
    %v4067 = vsel %vm4066, %v3344, %v4065
    %vm4068 = vcmask 1047559
    %v4069 = vsel %vm4068, %v3423, %v4067
    %v4070 = vsel %vm4056, %v3581, %v3502
    %v4071 = vsel %vm4058, %v3660, %v4070
    %v4072 = vsel %vm4060, %v3739, %v4071
    %v4073 = vsel %vm4062, %v3818, %v4072
    %v4074 = vsel %vm4064, %v3897, %v4073
    %v4075 = vsel %vm4066, %v3976, %v4074
    %v4076 = vsel %vm4068, %v4055, %v4075
    %4079 = vst [vmem:[#allocation7] sm:$0xff] %v4069
    %4080 = vst [vmem:[#allocation7 + $0x8] sm:$0xff] %v4076
    // Predicated region
    $region26: #{tpu_custom_call.1} parent=1 // pred_check
      _
    $region27: #{tpu_custom_call.1} parent=1 // pred_check_branch
      %4082 = sbr.rel (0) target = $region29
    $region28: #{tpu_custom_call.1} parent=1 // pred_region
      %s4084 = ssub.s32 256, 256
      %4085 = vsyncadd [#allocation4], %s4084
      %s4086 = sshll.u32 [#allocation7], 4
      %s4087 = int_to_ptr.vmem [resolvable:$true] %s4086
      %4092 = dma.vmem_to_hbm [thread:$0]  %s4087, 256, %s4, [#allocation4], 128, 128, 8
    $region29: #{tpu_custom_call.1} parent=1 // pred_fallthru
      _
    // Predicated region
    $region30: #{tpu_custom_call.1} parent=1 // pred_check
      _
    $region31: #{tpu_custom_call.1} parent=1 // pred_check_branch
      %4094 = sbr.rel (0) target = $region33
    $region32: #{tpu_custom_call.1} parent=1 // pred_region
      %s4096 = ssub.s32 2048, 2048
      %4097 = vsyncadd [#allocation9], %s4096
      %s4098 = sshll.u32 [#allocation8], 4
      %s4099 = int_to_ptr.vmem [resolvable:$true] %s4098
      %4104 = dma.vmem_to_hbm [thread:$0]  %s4099, 2048, %s5, [#allocation9], 128, 128, 8
    $region33: #{tpu_custom_call.1} parent=1 // pred_fallthru
      _
    // Predicated region
    $region34: #{tpu_custom_call.1} parent=1 // pred_check
      _
    $region35: #{tpu_custom_call.1} parent=1 // pred_check_branch
      %4106 = sbr.rel (0) target = $region37
    $region36: #{tpu_custom_call.1} parent=1 // pred_region
      %4107 = dma.done [#allocation4], 256
    $region37: #{tpu_custom_call.1} parent=1 // pred_fallthru
      _
    // Predicated region
    $region38: #{tpu_custom_call.1} parent=1 // pred_check
      _
    $region39: #{tpu_custom_call.1} parent=1 // pred_check_branch
      %4109 = sbr.rel (0) target = $region41
    $region40: #{tpu_custom_call.1} parent=1 // pred_region
      %4110 = dma.done [#allocation9], 2048
    $region41: #{tpu_custom_call.1} parent=1 // pred_fallthru
      _
    %4111 = vsyncpa [#allocation3], 1
    %4112 = vsyncpa [#allocation6], 1
    %4113 = vsyncpa [#allocation4], 1
    %4114 = vsyncpa [#allocation9], 1

</llo_original>
